<compile_context>
chip_gen: v5e
topology: v5e:2x2
jax: 0.10.0
libtpu: 0.0.40
codegen_flags: <defaults>
</compile_context>

<pallas_src>
from functools import partial

import numpy as np
import jax
import jax.numpy as jnp
from jax import lax
from jax.experimental import pallas as pl
from jax.experimental.pallas import tpu as pltpu

# Module defaults: Blurkernel(blur_type='gaussian', kernel_size=31, std=3.0)
BLUR_TYPE = "gaussian"
KERNEL_SIZE = 31
STD = 3.0


def gaussian_blur_taps_1d(kernel_size: int, std: float) -> np.ndarray:
    """1D separable factor of scipy.ndimage.gaussian_filter applied to a KxK delta.

    scipy applies a truncated (truncate=4.0), normalized 1D Gaussian separably
    with 'reflect' (numpy 'symmetric') boundary handling, so the 2D kernel that
    weights_init() writes is exactly outer(out1d, out1d).
    """
    radius = int(4.0 * std + 0.5)
    t = np.arange(-radius, radius + 1, dtype=np.float64)
    g = np.exp(-0.5 * (t / std) ** 2)
    g = g / g.sum()

    c = kernel_size // 2
    delta = np.zeros(kernel_size, dtype=np.float64)
    delta[c] = 1.0
    padded = np.pad(delta, radius, mode="symmetric")  # scipy 'reflect' boundary
    out1d = np.array(
        [np.dot(padded[i: i + 2 * radius + 1], g) for i in range(kernel_size)]
    )
    return out1d


def _sep_blur_kernel(x_ref, o_ref, xpad_ref, ypad_ref, *, taps, H, W, p):
    """One block of B (n, c) planes per grid step.

    x_ref   : VMEM (B, H, W)          unpadded input planes.
    o_ref   : VMEM (B, H, W)          output planes.
    xpad_ref: VMEM (B, H+2p, W) f32   scratch, H-reflection-padded input.
    ypad_ref: VMEM (B, H, W+2p) f32   scratch, W-reflection-padded vertical result.
    taps    : tuple of K python floats (compile-time constants).
    """
    K = 2 * p + 1
    x = x_ref[...].astype(jnp.float32)                        # (B, H, W)

    # ---- reflection pad along H (sublane axis): full-width row copies ----
    xpad_ref[:, p:p + H, :] = x
    for j in range(p):
        xpad_ref[:, p - 1 - j:p - j, :] = x[:, j + 1:j + 2, :]
        xpad_ref[:, p + H + j:p + H + j + 1, :] = x[:, H - 2 - j:H - 1 - j, :]

    # ---- vertical pass: K shifted-slab mul-adds, taps folded as constants ----
    xpad = xpad_ref[...]                                       # (B, H+2p, W)
    yv = taps[0] * xpad[:, 0:H, :]
    for t in range(1, K):
        yv = yv + taps[t] * xpad[:, t:t + H, :]                # (B, H, W) f32

    # ---- reflection pad along W (lane axis) into second scratch ----
    ypad_ref[:, :, p:p + W] = yv
    for j in range(p):
        ypad_ref[:, :, p - 1 - j:p - j] = yv[:, :, j + 1:j + 2]
        ypad_ref[:, :, p + W + j:p + W + j + 1] = yv[:, :, W - 2 - j:W - 1 - j]

    # ---- horizontal pass ----
    ypad = ypad_ref[...]                                       # (B, H, W+2p)
    acc = taps[0] * ypad[:, :, 0:W]
    for t in range(1, K):
        acc = acc + taps[t] * ypad[:, :, t:t + W]

    o_ref[...] = acc.astype(o_ref.dtype)


def _planes_per_block(num_planes: int, H: int, W: int, p: int,
                      vmem_budget_bytes: int = 8 * 1024 * 1024) -> int:
    """Largest divisor of num_planes that fits the VMEM budget and keeps grid >= 2."""
    Hp, Wp = H + 2 * p, W + 2 * p
    bytes_per_plane = 4 * (2 * H * W           # double-buffered input block
                           + 2 * H * W         # double-buffered output block
                           + Hp * W + H * Wp)  # scratches
    max_b = max(1, vmem_budget_bytes // max(bytes_per_plane, 1))
    best = 1
    for b in range(1, num_planes + 1):
        if num_planes % b:
            continue
        if b > max_b:
            break
        if num_planes // b >= 2 or num_planes == 1:
            best = b
    return best


def blur_forward(x: jax.Array, taps_1d: np.ndarray) -> jax.Array:
    """Blurkernel.forward: reflection pad + depthwise (groups=3) Gaussian blur."""
    N, C, H, W = x.shape
    K = int(taps_1d.shape[0])
    p = K // 2
    if p >= H or p >= W:
        raise ValueError("ReflectionPad2d requires kernel_size // 2 < H and < W")

    NC = N * C
    x_flat = x.reshape(NC, H, W)
    B = _planes_per_block(NC, H, W, p)
    Hp, Wp = H + 2 * p, W + 2 * p
    taps = tuple(float(v) for v in taps_1d)      # compile-time constants

    kernel = partial(_sep_blur_kernel, taps=taps, H=H, W=W, p=p)

    out = pl.pallas_call(
        kernel,
        out_shape=jax.ShapeDtypeStruct((NC, H, W), x.dtype),
        grid_spec=pltpu.PrefetchScalarGridSpec(
            num_scalar_prefetch=0,
            grid=(NC // B,),
            in_specs=[pl.BlockSpec((B, H, W), lambda i: (i, 0, 0))],
            out_specs=pl.BlockSpec((B, H, W), lambda i: (i, 0, 0)),
            scratch_shapes=[
                pltpu.VMEM((B, Hp, W), jnp.float32),   # H-padded input
                pltpu.VMEM((B, H, Wp), jnp.float32),   # W-padded intermediate
            ],
        ),
        compiler_params=pltpu.CompilerParams(
            dimension_semantics=("parallel",),
        ),
    )(x_flat)

    return out.reshape(N, C, H, W)


if __name__ == "__main__":
    # Conv2d(3, 3, K, groups=3) => channels must be 3.
    N, C, H, W = 2, 3, 16, 16
    key = jax.random.PRNGKey(0)
    x = jax.random.normal(key, (N, C, H, W), dtype=jnp.float32)

    # Deterministic parameter init (what weights_init() would write), 1D factor.
    taps_1d = gaussian_blur_taps_1d(KERNEL_SIZE, STD)

    y = blur_forward(x, taps_1d)
    y = jax.block_until_ready(y)
    assert y.shape == (N, C, H, W)

    # Pure-JAX reference: same forward pass with the full 2D kernel
    # (reflect pad + grouped valid conv) at HIGHEST precision.
    p = KERNEL_SIZE // 2
    k2d = jnp.asarray(np.outer(taps_1d, taps_1d), dtype=jnp.float32)
    xp_ref = jnp.pad(x, ((0, 0), (0, 0), (p, p), (p, p)), mode="reflect")
    w_ref = jnp.broadcast_to(k2d, (C, 1, KERNEL_SIZE, KERNEL_SIZE))
    ref = lax.conv_general_dilated(
        xp_ref,
        w_ref,
        window_strides=(1, 1),
        padding="VALID",
        feature_group_count=C,
        dimension_numbers=("NCHW", "OIHW", "NCHW"),
        precision=lax.Precision.HIGHEST,
    )

    if bool(jnp.allclose(y, ref, atol=1e-4, rtol=1e-4)):
        print("KERNEL_OK")
    else:
        print("MISMATCH", float(jnp.max(jnp.abs(y - ref))))
</pallas_src>

<mosaic_0001>
module attributes {stable_mosaic.version = 11 : i64} {
  func.func @_sep_blur_kernel(%arg0: i32, %arg1: memref<3x16x16xf32, #tpu.memory_space<vmem>>, %arg2: memref<3x16x16xf32, #tpu.memory_space<vmem>>, %arg3: memref<3x46x16xf32, #tpu.memory_space<vmem>>, %arg4: memref<3x16x46xf32, #tpu.memory_space<vmem>>) attributes {dimension_semantics = [#tpu.dimension_semantics<parallel>], iteration_bounds = array<i64: 2>, scalar_prefetch = 0 : i64, scratch_operands = 2 : i64, tpu.core_type = #tpu.core_type<tc>, window_params = [{transform_indices = @transform_0, window_bounds = array<i64: 3, 16, 16>}, {transform_indices = @transform_1, window_bounds = array<i64: 3, 16, 16>}]} {
    %c0 = arith.constant 0 : index
    %c0_0 = arith.constant 0 : index
    %c0_1 = arith.constant 0 : index
    %0 = vector.load %arg1[%c0, %c0_0, %c0_1] : memref<3x16x16xf32, #tpu.memory_space<vmem>>, vector<3x16x16xf32>
    %c0_2 = arith.constant 0 : index
    %c15 = arith.constant 15 : index
    %c0_3 = arith.constant 0 : index
    %1 = vector.load %arg3[%c0_2, %c15, %c0_3] : memref<3x46x16xf32, #tpu.memory_space<vmem>>, vector<3x16x16xf32>
    tpu.vector_store %arg3[%c0_2, %c15, %c0_3], %0 {strides = array<i32>} : memref<3x46x16xf32, #tpu.memory_space<vmem>>, vector<3x16x16xf32>,
    %2 = vector.extract_strided_slice %0 {offsets = [0, 1, 0], sizes = [3, 1, 16], strides = [1, 1, 1]} : vector<3x16x16xf32> to vector<3x1x16xf32>
    %c0_4 = arith.constant 0 : index
    %c14 = arith.constant 14 : index
    %c0_5 = arith.constant 0 : index
    %3 = vector.load %arg3[%c0_4, %c14, %c0_5] : memref<3x46x16xf32, #tpu.memory_space<vmem>>, vector<3x1x16xf32>
    tpu.vector_store %arg3[%c0_4, %c14, %c0_5], %2 {strides = array<i32>} : memref<3x46x16xf32, #tpu.memory_space<vmem>>, vector<3x1x16xf32>,
    %4 = vector.extract_strided_slice %0 {offsets = [0, 14, 0], sizes = [3, 1, 16], strides = [1, 1, 1]} : vector<3x16x16xf32> to vector<3x1x16xf32>
    %c0_6 = arith.constant 0 : index
    %c31 = arith.constant 31 : index
    %c0_7 = arith.constant 0 : index
    %5 = vector.load %arg3[%c0_6, %c31, %c0_7] : memref<3x46x16xf32, #tpu.memory_space<vmem>>, vector<3x1x16xf32>
    tpu.vector_store %arg3[%c0_6, %c31, %c0_7], %4 {strides = array<i32>} : memref<3x46x16xf32, #tpu.memory_space<vmem>>, vector<3x1x16xf32>,
    %6 = vector.extract_strided_slice %0 {offsets = [0, 2, 0], sizes = [3, 1, 16], strides = [1, 1, 1]} : vector<3x16x16xf32> to vector<3x1x16xf32>
    %c0_8 = arith.constant 0 : index
    %c13 = arith.constant 13 : index
    %c0_9 = arith.constant 0 : index
    %7 = vector.load %arg3[%c0_8, %c13, %c0_9] : memref<3x46x16xf32, #tpu.memory_space<vmem>>, vector<3x1x16xf32>
    tpu.vector_store %arg3[%c0_8, %c13, %c0_9], %6 {strides = array<i32>} : memref<3x46x16xf32, #tpu.memory_space<vmem>>, vector<3x1x16xf32>,
    %8 = vector.extract_strided_slice %0 {offsets = [0, 13, 0], sizes = [3, 1, 16], strides = [1, 1, 1]} : vector<3x16x16xf32> to vector<3x1x16xf32>
    %c0_10 = arith.constant 0 : index
    %c32 = arith.constant 32 : index
    %c0_11 = arith.constant 0 : index
    %9 = vector.load %arg3[%c0_10, %c32, %c0_11] : memref<3x46x16xf32, #tpu.memory_space<vmem>>, vector<3x1x16xf32>
    tpu.vector_store %arg3[%c0_10, %c32, %c0_11], %8 {strides = array<i32>} : memref<3x46x16xf32, #tpu.memory_space<vmem>>, vector<3x1x16xf32>,
    %10 = vector.extract_strided_slice %0 {offsets = [0, 3, 0], sizes = [3, 1, 16], strides = [1, 1, 1]} : vector<3x16x16xf32> to vector<3x1x16xf32>
    %c0_12 = arith.constant 0 : index
    %c12 = arith.constant 12 : index
    %c0_13 = arith.constant 0 : index
    %11 = vector.load %arg3[%c0_12, %c12, %c0_13] : memref<3x46x16xf32, #tpu.memory_space<vmem>>, vector<3x1x16xf32>
    tpu.vector_store %arg3[%c0_12, %c12, %c0_13], %10 {strides = array<i32>} : memref<3x46x16xf32, #tpu.memory_space<vmem>>, vector<3x1x16xf32>,
    %12 = vector.extract_strided_slice %0 {offsets = [0, 12, 0], sizes = [3, 1, 16], strides = [1, 1, 1]} : vector<3x16x16xf32> to vector<3x1x16xf32>
    %c0_14 = arith.constant 0 : index
    %c33 = arith.constant 33 : index
    %c0_15 = arith.constant 0 : index
    %13 = vector.load %arg3[%c0_14, %c33, %c0_15] : memref<3x46x16xf32, #tpu.memory_space<vmem>>, vector<3x1x16xf32>
    tpu.vector_store %arg3[%c0_14, %c33, %c0_15], %12 {strides = array<i32>} : memref<3x46x16xf32, #tpu.memory_space<vmem>>, vector<3x1x16xf32>,
    %14 = vector.extract_strided_slice %0 {offsets = [0, 4, 0], sizes = [3, 1, 16], strides = [1, 1, 1]} : vector<3x16x16xf32> to vector<3x1x16xf32>
    %c0_16 = arith.constant 0 : index
    %c11 = arith.constant 11 : index
    %c0_17 = arith.constant 0 : index
    %15 = vector.load %arg3[%c0_16, %c11, %c0_17] : memref<3x46x16xf32, #tpu.memory_space<vmem>>, vector<3x1x16xf32>
    tpu.vector_store %arg3[%c0_16, %c11, %c0_17], %14 {strides = array<i32>} : memref<3x46x16xf32, #tpu.memory_space<vmem>>, vector<3x1x16xf32>,
    %16 = vector.extract_strided_slice %0 {offsets = [0, 11, 0], sizes = [3, 1, 16], strides = [1, 1, 1]} : vector<3x16x16xf32> to vector<3x1x16xf32>
    %c0_18 = arith.constant 0 : index
    %c34 = arith.constant 34 : index
    %c0_19 = arith.constant 0 : index
    %17 = vector.load %arg3[%c0_18, %c34, %c0_19] : memref<3x46x16xf32, #tpu.memory_space<vmem>>, vector<3x1x16xf32>
    tpu.vector_store %arg3[%c0_18, %c34, %c0_19], %16 {strides = array<i32>} : memref<3x46x16xf32, #tpu.memory_space<vmem>>, vector<3x1x16xf32>,
    %18 = vector.extract_strided_slice %0 {offsets = [0, 5, 0], sizes = [3, 1, 16], strides = [1, 1, 1]} : vector<3x16x16xf32> to vector<3x1x16xf32>
    %c0_20 = arith.constant 0 : index
    %c10 = arith.constant 10 : index
    %c0_21 = arith.constant 0 : index
    %19 = vector.load %arg3[%c0_20, %c10, %c0_21] : memref<3x46x16xf32, #tpu.memory_space<vmem>>, vector<3x1x16xf32>
    tpu.vector_store %arg3[%c0_20, %c10, %c0_21], %18 {strides = array<i32>} : memref<3x46x16xf32, #tpu.memory_space<vmem>>, vector<3x1x16xf32>,
    %20 = vector.extract_strided_slice %0 {offsets = [0, 10, 0], sizes = [3, 1, 16], strides = [1, 1, 1]} : vector<3x16x16xf32> to vector<3x1x16xf32>
    %c0_22 = arith.constant 0 : index
    %c35 = arith.constant 35 : index
    %c0_23 = arith.constant 0 : index
    %21 = vector.load %arg3[%c0_22, %c35, %c0_23] : memref<3x46x16xf32, #tpu.memory_space<vmem>>, vector<3x1x16xf32>
    tpu.vector_store %arg3[%c0_22, %c35, %c0_23], %20 {strides = array<i32>} : memref<3x46x16xf32, #tpu.memory_space<vmem>>, vector<3x1x16xf32>,
    %22 = vector.extract_strided_slice %0 {offsets = [0, 6, 0], sizes = [3, 1, 16], strides = [1, 1, 1]} : vector<3x16x16xf32> to vector<3x1x16xf32>
    %c0_24 = arith.constant 0 : index
    %c9 = arith.constant 9 : index
    %c0_25 = arith.constant 0 : index
    %23 = vector.load %arg3[%c0_24, %c9, %c0_25] : memref<3x46x16xf32, #tpu.memory_space<vmem>>, vector<3x1x16xf32>
    tpu.vector_store %arg3[%c0_24, %c9, %c0_25], %22 {strides = array<i32>} : memref<3x46x16xf32, #tpu.memory_space<vmem>>, vector<3x1x16xf32>,
    %24 = vector.extract_strided_slice %0 {offsets = [0, 9, 0], sizes = [3, 1, 16], strides = [1, 1, 1]} : vector<3x16x16xf32> to vector<3x1x16xf32>
    %c0_26 = arith.constant 0 : index
    %c36 = arith.constant 36 : index
    %c0_27 = arith.constant 0 : index
    %25 = vector.load %arg3[%c0_26, %c36, %c0_27] : memref<3x46x16xf32, #tpu.memory_space<vmem>>, vector<3x1x16xf32>
    tpu.vector_store %arg3[%c0_26, %c36, %c0_27], %24 {strides = array<i32>} : memref<3x46x16xf32, #tpu.memory_space<vmem>>, vector<3x1x16xf32>,
    %26 = vector.extract_strided_slice %0 {offsets = [0, 7, 0], sizes = [3, 1, 16], strides = [1, 1, 1]} : vector<3x16x16xf32> to vector<3x1x16xf32>
    %c0_28 = arith.constant 0 : index
    %c8 = arith.constant 8 : index
    %c0_29 = arith.constant 0 : index
    %27 = vector.load %arg3[%c0_28, %c8, %c0_29] : memref<3x46x16xf32, #tpu.memory_space<vmem>>, vector<3x1x16xf32>
    tpu.vector_store %arg3[%c0_28, %c8, %c0_29], %26 {strides = array<i32>} : memref<3x46x16xf32, #tpu.memory_space<vmem>>, vector<3x1x16xf32>,
    %28 = vector.extract_strided_slice %0 {offsets = [0, 8, 0], sizes = [3, 1, 16], strides = [1, 1, 1]} : vector<3x16x16xf32> to vector<3x1x16xf32>
    %c0_30 = arith.constant 0 : index
    %c37 = arith.constant 37 : index
    %c0_31 = arith.constant 0 : index
    %29 = vector.load %arg3[%c0_30, %c37, %c0_31] : memref<3x46x16xf32, #tpu.memory_space<vmem>>, vector<3x1x16xf32>
    tpu.vector_store %arg3[%c0_30, %c37, %c0_31], %28 {strides = array<i32>} : memref<3x46x16xf32, #tpu.memory_space<vmem>>, vector<3x1x16xf32>,
    %30 = vector.extract_strided_slice %0 {offsets = [0, 8, 0], sizes = [3, 1, 16], strides = [1, 1, 1]} : vector<3x16x16xf32> to vector<3x1x16xf32>
    %c0_32 = arith.constant 0 : index
    %c7 = arith.constant 7 : index
    %c0_33 = arith.constant 0 : index
    %31 = vector.load %arg3[%c0_32, %c7, %c0_33] : memref<3x46x16xf32, #tpu.memory_space<vmem>>, vector<3x1x16xf32>
    tpu.vector_store %arg3[%c0_32, %c7, %c0_33], %30 {strides = array<i32>} : memref<3x46x16xf32, #tpu.memory_space<vmem>>, vector<3x1x16xf32>,
    %32 = vector.extract_strided_slice %0 {offsets = [0, 7, 0], sizes = [3, 1, 16], strides = [1, 1, 1]} : vector<3x16x16xf32> to vector<3x1x16xf32>
    %c0_34 = arith.constant 0 : index
    %c38 = arith.constant 38 : index
    %c0_35 = arith.constant 0 : index
    %33 = vector.load %arg3[%c0_34, %c38, %c0_35] : memref<3x46x16xf32, #tpu.memory_space<vmem>>, vector<3x1x16xf32>
    tpu.vector_store %arg3[%c0_34, %c38, %c0_35], %32 {strides = array<i32>} : memref<3x46x16xf32, #tpu.memory_space<vmem>>, vector<3x1x16xf32>,
    %34 = vector.extract_strided_slice %0 {offsets = [0, 9, 0], sizes = [3, 1, 16], strides = [1, 1, 1]} : vector<3x16x16xf32> to vector<3x1x16xf32>
    %c0_36 = arith.constant 0 : index
    %c6 = arith.constant 6 : index
    %c0_37 = arith.constant 0 : index
    %35 = vector.load %arg3[%c0_36, %c6, %c0_37] : memref<3x46x16xf32, #tpu.memory_space<vmem>>, vector<3x1x16xf32>
    tpu.vector_store %arg3[%c0_36, %c6, %c0_37], %34 {strides = array<i32>} : memref<3x46x16xf32, #tpu.memory_space<vmem>>, vector<3x1x16xf32>,
    %36 = vector.extract_strided_slice %0 {offsets = [0, 6, 0], sizes = [3, 1, 16], strides = [1, 1, 1]} : vector<3x16x16xf32> to vector<3x1x16xf32>
    %c0_38 = arith.constant 0 : index
    %c39 = arith.constant 39 : index
    %c0_39 = arith.constant 0 : index
    %37 = vector.load %arg3[%c0_38, %c39, %c0_39] : memref<3x46x16xf32, #tpu.memory_space<vmem>>, vector<3x1x16xf32>
    tpu.vector_store %arg3[%c0_38, %c39, %c0_39], %36 {strides = array<i32>} : memref<3x46x16xf32, #tpu.memory_space<vmem>>, vector<3x1x16xf32>,
    %38 = vector.extract_strided_slice %0 {offsets = [0, 10, 0], sizes = [3, 1, 16], strides = [1, 1, 1]} : vector<3x16x16xf32> to vector<3x1x16xf32>
    %c0_40 = arith.constant 0 : index
    %c5 = arith.constant 5 : index
    %c0_41 = arith.constant 0 : index
    %39 = vector.load %arg3[%c0_40, %c5, %c0_41] : memref<3x46x16xf32, #tpu.memory_space<vmem>>, vector<3x1x16xf32>
    tpu.vector_store %arg3[%c0_40, %c5, %c0_41], %38 {strides = array<i32>} : memref<3x46x16xf32, #tpu.memory_space<vmem>>, vector<3x1x16xf32>,
    %40 = vector.extract_strided_slice %0 {offsets = [0, 5, 0], sizes = [3, 1, 16], strides = [1, 1, 1]} : vector<3x16x16xf32> to vector<3x1x16xf32>
    %c0_42 = arith.constant 0 : index
    %c40 = arith.constant 40 : index
    %c0_43 = arith.constant 0 : index
    %41 = vector.load %arg3[%c0_42, %c40, %c0_43] : memref<3x46x16xf32, #tpu.memory_space<vmem>>, vector<3x1x16xf32>
    tpu.vector_store %arg3[%c0_42, %c40, %c0_43], %40 {strides = array<i32>} : memref<3x46x16xf32, #tpu.memory_space<vmem>>, vector<3x1x16xf32>,
    %42 = vector.extract_strided_slice %0 {offsets = [0, 11, 0], sizes = [3, 1, 16], strides = [1, 1, 1]} : vector<3x16x16xf32> to vector<3x1x16xf32>
    %c0_44 = arith.constant 0 : index
    %c4 = arith.constant 4 : index
    %c0_45 = arith.constant 0 : index
    %43 = vector.load %arg3[%c0_44, %c4, %c0_45] : memref<3x46x16xf32, #tpu.memory_space<vmem>>, vector<3x1x16xf32>
    tpu.vector_store %arg3[%c0_44, %c4, %c0_45], %42 {strides = array<i32>} : memref<3x46x16xf32, #tpu.memory_space<vmem>>, vector<3x1x16xf32>,
    %44 = vector.extract_strided_slice %0 {offsets = [0, 4, 0], sizes = [3, 1, 16], strides = [1, 1, 1]} : vector<3x16x16xf32> to vector<3x1x16xf32>
    %c0_46 = arith.constant 0 : index
    %c41 = arith.constant 41 : index
    %c0_47 = arith.constant 0 : index
    %45 = vector.load %arg3[%c0_46, %c41, %c0_47] : memref<3x46x16xf32, #tpu.memory_space<vmem>>, vector<3x1x16xf32>
    tpu.vector_store %arg3[%c0_46, %c41, %c0_47], %44 {strides = array<i32>} : memref<3x46x16xf32, #tpu.memory_space<vmem>>, vector<3x1x16xf32>,
    %46 = vector.extract_strided_slice %0 {offsets = [0, 12, 0], sizes = [3, 1, 16], strides = [1, 1, 1]} : vector<3x16x16xf32> to vector<3x1x16xf32>
    %c0_48 = arith.constant 0 : index
    %c3 = arith.constant 3 : index
    %c0_49 = arith.constant 0 : index
    %47 = vector.load %arg3[%c0_48, %c3, %c0_49] : memref<3x46x16xf32, #tpu.memory_space<vmem>>, vector<3x1x16xf32>
    tpu.vector_store %arg3[%c0_48, %c3, %c0_49], %46 {strides = array<i32>} : memref<3x46x16xf32, #tpu.memory_space<vmem>>, vector<3x1x16xf32>,
    %48 = vector.extract_strided_slice %0 {offsets = [0, 3, 0], sizes = [3, 1, 16], strides = [1, 1, 1]} : vector<3x16x16xf32> to vector<3x1x16xf32>
    %c0_50 = arith.constant 0 : index
    %c42 = arith.constant 42 : index
    %c0_51 = arith.constant 0 : index
    %49 = vector.load %arg3[%c0_50, %c42, %c0_51] : memref<3x46x16xf32, #tpu.memory_space<vmem>>, vector<3x1x16xf32>
    tpu.vector_store %arg3[%c0_50, %c42, %c0_51], %48 {strides = array<i32>} : memref<3x46x16xf32, #tpu.memory_space<vmem>>, vector<3x1x16xf32>,
    %50 = vector.extract_strided_slice %0 {offsets = [0, 13, 0], sizes = [3, 1, 16], strides = [1, 1, 1]} : vector<3x16x16xf32> to vector<3x1x16xf32>
    %c0_52 = arith.constant 0 : index
    %c2 = arith.constant 2 : index
    %c0_53 = arith.constant 0 : index
    %51 = vector.load %arg3[%c0_52, %c2, %c0_53] : memref<3x46x16xf32, #tpu.memory_space<vmem>>, vector<3x1x16xf32>
    tpu.vector_store %arg3[%c0_52, %c2, %c0_53], %50 {strides = array<i32>} : memref<3x46x16xf32, #tpu.memory_space<vmem>>, vector<3x1x16xf32>,
    %52 = vector.extract_strided_slice %0 {offsets = [0, 2, 0], sizes = [3, 1, 16], strides = [1, 1, 1]} : vector<3x16x16xf32> to vector<3x1x16xf32>
    %c0_54 = arith.constant 0 : index
    %c43 = arith.constant 43 : index
    %c0_55 = arith.constant 0 : index
    %53 = vector.load %arg3[%c0_54, %c43, %c0_55] : memref<3x46x16xf32, #tpu.memory_space<vmem>>, vector<3x1x16xf32>
    tpu.vector_store %arg3[%c0_54, %c43, %c0_55], %52 {strides = array<i32>} : memref<3x46x16xf32, #tpu.memory_space<vmem>>, vector<3x1x16xf32>,
    %54 = vector.extract_strided_slice %0 {offsets = [0, 14, 0], sizes = [3, 1, 16], strides = [1, 1, 1]} : vector<3x16x16xf32> to vector<3x1x16xf32>
    %c0_56 = arith.constant 0 : index
    %c1 = arith.constant 1 : index
    %c0_57 = arith.constant 0 : index
    %55 = vector.load %arg3[%c0_56, %c1, %c0_57] : memref<3x46x16xf32, #tpu.memory_space<vmem>>, vector<3x1x16xf32>
    tpu.vector_store %arg3[%c0_56, %c1, %c0_57], %54 {strides = array<i32>} : memref<3x46x16xf32, #tpu.memory_space<vmem>>, vector<3x1x16xf32>,
    %56 = vector.extract_strided_slice %0 {offsets = [0, 1, 0], sizes = [3, 1, 16], strides = [1, 1, 1]} : vector<3x16x16xf32> to vector<3x1x16xf32>
    %c0_58 = arith.constant 0 : index
    %c44 = arith.constant 44 : index
    %c0_59 = arith.constant 0 : index
    %57 = vector.load %arg3[%c0_58, %c44, %c0_59] : memref<3x46x16xf32, #tpu.memory_space<vmem>>, vector<3x1x16xf32>
    tpu.vector_store %arg3[%c0_58, %c44, %c0_59], %56 {strides = array<i32>} : memref<3x46x16xf32, #tpu.memory_space<vmem>>, vector<3x1x16xf32>,
    %58 = vector.extract_strided_slice %0 {offsets = [0, 15, 0], sizes = [3, 1, 16], strides = [1, 1, 1]} : vector<3x16x16xf32> to vector<3x1x16xf32>
    %c0_60 = arith.constant 0 : index
    %c0_61 = arith.constant 0 : index
    %c0_62 = arith.constant 0 : index
    %59 = vector.load %arg3[%c0_60, %c0_61, %c0_62] : memref<3x46x16xf32, #tpu.memory_space<vmem>>, vector<3x1x16xf32>
    tpu.vector_store %arg3[%c0_60, %c0_61, %c0_62], %58 {strides = array<i32>} : memref<3x46x16xf32, #tpu.memory_space<vmem>>, vector<3x1x16xf32>,
    %60 = vector.extract_strided_slice %0 {offsets = [0, 0, 0], sizes = [3, 1, 16], strides = [1, 1, 1]} : vector<3x16x16xf32> to vector<3x1x16xf32>
    %c0_63 = arith.constant 0 : index
    %c45 = arith.constant 45 : index
    %c0_64 = arith.constant 0 : index
    %61 = vector.load %arg3[%c0_63, %c45, %c0_64] : memref<3x46x16xf32, #tpu.memory_space<vmem>>, vector<3x1x16xf32>
    tpu.vector_store %arg3[%c0_63, %c45, %c0_64], %60 {strides = array<i32>} : memref<3x46x16xf32, #tpu.memory_space<vmem>>, vector<3x1x16xf32>,
    %c0_65 = arith.constant 0 : index
    %c0_66 = arith.constant 0 : index
    %c0_67 = arith.constant 0 : index
    %62 = vector.load %arg3[%c0_65, %c0_66, %c0_67] : memref<3x46x16xf32, #tpu.memory_space<vmem>>, vector<3x46x16xf32>
    %63 = vector.extract_strided_slice %62 {offsets = [0, 0, 0], sizes = [3, 16, 16], strides = [1, 1, 1]} : vector<3x46x16xf32> to vector<3x16x16xf32>
    %cst = arith.constant 0.000000e+00 : f32
    %64 = vector.broadcast %cst : f32 to vector<3x16x16xf32>
    %65 = arith.mulf %64, %63 : vector<3x16x16xf32>
    %66 = vector.extract_strided_slice %62 {offsets = [0, 1, 0], sizes = [3, 16, 16], strides = [1, 1, 1]} : vector<3x46x16xf32> to vector<3x16x16xf32>
    %cst_68 = arith.constant 0.000000e+00 : f32
    %67 = vector.broadcast %cst_68 : f32 to vector<3x16x16xf32>
    %68 = arith.mulf %67, %66 : vector<3x16x16xf32>
    %69 = arith.addf %65, %68 : vector<3x16x16xf32>
    %70 = vector.extract_strided_slice %62 {offsets = [0, 2, 0], sizes = [3, 16, 16], strides = [1, 1, 1]} : vector<3x46x16xf32> to vector<3x16x16xf32>
    %cst_69 = arith.constant 0.000000e+00 : f32
    %71 = vector.broadcast %cst_69 : f32 to vector<3x16x16xf32>
    %72 = arith.mulf %71, %70 : vector<3x16x16xf32>
    %73 = arith.addf %69, %72 : vector<3x16x16xf32>
    %74 = vector.extract_strided_slice %62 {offsets = [0, 3, 0], sizes = [3, 16, 16], strides = [1, 1, 1]} : vector<3x46x16xf32> to vector<3x16x16xf32>
    %cst_70 = arith.constant 4.46113445E-5 : f32
    %75 = vector.broadcast %cst_70 : f32 to vector<3x16x16xf32>
    %76 = arith.mulf %75, %74 : vector<3x16x16xf32>
    %77 = arith.addf %73, %76 : vector<3x16x16xf32>
    %78 = vector.extract_strided_slice %62 {offsets = [0, 4, 0], sizes = [3, 16, 16], strides = [1, 1, 1]} : vector<3x46x16xf32> to vector<3x16x16xf32>
    %cst_71 = arith.constant 1.60094773E-4 : f32
    %79 = vector.broadcast %cst_71 : f32 to vector<3x16x16xf32>
    %80 = arith.mulf %79, %78 : vector<3x16x16xf32>
    %81 = arith.addf %77, %80 : vector<3x16x16xf32>
    %82 = vector.extract_strided_slice %62 {offsets = [0, 5, 0], sizes = [3, 16, 16], strides = [1, 1, 1]} : vector<3x46x16xf32> to vector<3x16x16xf32>
    %cst_72 = arith.constant 5.14107582E-4 : f32
    %83 = vector.broadcast %cst_72 : f32 to vector<3x16x16xf32>
    %84 = arith.mulf %83, %82 : vector<3x16x16xf32>
    %85 = arith.addf %81, %84 : vector<3x16x16xf32>
    %86 = vector.extract_strided_slice %62 {offsets = [0, 6, 0], sizes = [3, 16, 16], strides = [1, 1, 1]} : vector<3x46x16xf32> to vector<3x16x16xf32>
    %cst_73 = arith.constant 0.00147732475 : f32
    %87 = vector.broadcast %cst_73 : f32 to vector<3x16x16xf32>
    %88 = arith.mulf %87, %86 : vector<3x16x16xf32>
    %89 = arith.addf %85, %88 : vector<3x16x16xf32>
    %90 = vector.extract_strided_slice %62 {offsets = [0, 7, 0], sizes = [3, 16, 16], strides = [1, 1, 1]} : vector<3x46x16xf32> to vector<3x16x16xf32>
    %cst_74 = arith.constant 3.798770e-03 : f32
    %91 = vector.broadcast %cst_74 : f32 to vector<3x16x16xf32>
    %92 = arith.mulf %91, %90 : vector<3x16x16xf32>
    %93 = arith.addf %89, %92 : vector<3x16x16xf32>
    %94 = vector.extract_strided_slice %62 {offsets = [0, 8, 0], sizes = [3, 16, 16], strides = [1, 1, 1]} : vector<3x46x16xf32> to vector<3x16x16xf32>
    %cst_75 = arith.constant 0.00874087773 : f32
    %95 = vector.broadcast %cst_75 : f32 to vector<3x16x16xf32>
    %96 = arith.mulf %95, %94 : vector<3x16x16xf32>
    %97 = arith.addf %93, %96 : vector<3x16x16xf32>
    %98 = vector.extract_strided_slice %62 {offsets = [0, 9, 0], sizes = [3, 16, 16], strides = [1, 1, 1]} : vector<3x46x16xf32> to vector<3x16x16xf32>
    %cst_76 = arith.constant 1.799750e-02 : f32
    %99 = vector.broadcast %cst_76 : f32 to vector<3x16x16xf32>
    %100 = arith.mulf %99, %98 : vector<3x16x16xf32>
    %101 = arith.addf %97, %100 : vector<3x16x16xf32>
    %102 = vector.extract_strided_slice %62 {offsets = [0, 10, 0], sizes = [3, 16, 16], strides = [1, 1, 1]} : vector<3x46x16xf32> to vector<3x16x16xf32>
    %cst_77 = arith.constant 0.0331599899 : f32
    %103 = vector.broadcast %cst_77 : f32 to vector<3x16x16xf32>
    %104 = arith.mulf %103, %102 : vector<3x16x16xf32>
    %105 = arith.addf %101, %104 : vector<3x16x16xf32>
    %106 = vector.extract_strided_slice %62 {offsets = [0, 11, 0], sizes = [3, 16, 16], strides = [1, 1, 1]} : vector<3x46x16xf32> to vector<3x16x16xf32>
    %cst_78 = arith.constant 0.0546715781 : f32
    %107 = vector.broadcast %cst_78 : f32 to vector<3x16x16xf32>
    %108 = arith.mulf %107, %106 : vector<3x16x16xf32>
    %109 = arith.addf %105, %108 : vector<3x16x16xf32>
    %110 = vector.extract_strided_slice %62 {offsets = [0, 12, 0], sizes = [3, 16, 16], strides = [1, 1, 1]} : vector<3x46x16xf32> to vector<3x16x16xf32>
    %cst_79 = arith.constant 8.065920e-02 : f32
    %111 = vector.broadcast %cst_79 : f32 to vector<3x16x16xf32>
    %112 = arith.mulf %111, %110 : vector<3x16x16xf32>
    %113 = arith.addf %109, %112 : vector<3x16x16xf32>
    %114 = vector.extract_strided_slice %62 {offsets = [0, 13, 0], sizes = [3, 16, 16], strides = [1, 1, 1]} : vector<3x46x16xf32> to vector<3x16x16xf32>
    %cst_80 = arith.constant 0.106485695 : f32
    %115 = vector.broadcast %cst_80 : f32 to vector<3x16x16xf32>
    %116 = arith.mulf %115, %114 : vector<3x16x16xf32>
    %117 = arith.addf %113, %116 : vector<3x16x16xf32>
    %118 = vector.extract_strided_slice %62 {offsets = [0, 14, 0], sizes = [3, 16, 16], strides = [1, 1, 1]} : vector<3x46x16xf32> to vector<3x16x16xf32>
    %cst_81 = arith.constant 0.125797987 : f32
    %119 = vector.broadcast %cst_81 : f32 to vector<3x16x16xf32>
    %120 = arith.mulf %119, %118 : vector<3x16x16xf32>
    %121 = arith.addf %117, %120 : vector<3x16x16xf32>
    %122 = vector.extract_strided_slice %62 {offsets = [0, 15, 0], sizes = [3, 16, 16], strides = [1, 1, 1]} : vector<3x46x16xf32> to vector<3x16x16xf32>
    %cst_82 = arith.constant 0.132984534 : f32
    %123 = vector.broadcast %cst_82 : f32 to vector<3x16x16xf32>
    %124 = arith.mulf %123, %122 : vector<3x16x16xf32>
    %125 = arith.addf %121, %124 : vector<3x16x16xf32>
    %126 = vector.extract_strided_slice %62 {offsets = [0, 16, 0], sizes = [3, 16, 16], strides = [1, 1, 1]} : vector<3x46x16xf32> to vector<3x16x16xf32>
    %cst_83 = arith.constant 0.125797987 : f32
    %127 = vector.broadcast %cst_83 : f32 to vector<3x16x16xf32>
    %128 = arith.mulf %127, %126 : vector<3x16x16xf32>
    %129 = arith.addf %125, %128 : vector<3x16x16xf32>
    %130 = vector.extract_strided_slice %62 {offsets = [0, 17, 0], sizes = [3, 16, 16], strides = [1, 1, 1]} : vector<3x46x16xf32> to vector<3x16x16xf32>
    %cst_84 = arith.constant 0.106485695 : f32
    %131 = vector.broadcast %cst_84 : f32 to vector<3x16x16xf32>
    %132 = arith.mulf %131, %130 : vector<3x16x16xf32>
    %133 = arith.addf %129, %132 : vector<3x16x16xf32>
    %134 = vector.extract_strided_slice %62 {offsets = [0, 18, 0], sizes = [3, 16, 16], strides = [1, 1, 1]} : vector<3x46x16xf32> to vector<3x16x16xf32>
    %cst_85 = arith.constant 8.065920e-02 : f32
    %135 = vector.broadcast %cst_85 : f32 to vector<3x16x16xf32>
    %136 = arith.mulf %135, %134 : vector<3x16x16xf32>
    %137 = arith.addf %133, %136 : vector<3x16x16xf32>
    %138 = vector.extract_strided_slice %62 {offsets = [0, 19, 0], sizes = [3, 16, 16], strides = [1, 1, 1]} : vector<3x46x16xf32> to vector<3x16x16xf32>
    %cst_86 = arith.constant 0.0546715781 : f32
    %139 = vector.broadcast %cst_86 : f32 to vector<3x16x16xf32>
    %140 = arith.mulf %139, %138 : vector<3x16x16xf32>
    %141 = arith.addf %137, %140 : vector<3x16x16xf32>
    %142 = vector.extract_strided_slice %62 {offsets = [0, 20, 0], sizes = [3, 16, 16], strides = [1, 1, 1]} : vector<3x46x16xf32> to vector<3x16x16xf32>
    %cst_87 = arith.constant 0.0331599899 : f32
    %143 = vector.broadcast %cst_87 : f32 to vector<3x16x16xf32>
    %144 = arith.mulf %143, %142 : vector<3x16x16xf32>
    %145 = arith.addf %141, %144 : vector<3x16x16xf32>
    %146 = vector.extract_strided_slice %62 {offsets = [0, 21, 0], sizes = [3, 16, 16], strides = [1, 1, 1]} : vector<3x46x16xf32> to vector<3x16x16xf32>
    %cst_88 = arith.constant 1.799750e-02 : f32
    %147 = vector.broadcast %cst_88 : f32 to vector<3x16x16xf32>
    %148 = arith.mulf %147, %146 : vector<3x16x16xf32>
    %149 = arith.addf %145, %148 : vector<3x16x16xf32>
    %150 = vector.extract_strided_slice %62 {offsets = [0, 22, 0], sizes = [3, 16, 16], strides = [1, 1, 1]} : vector<3x46x16xf32> to vector<3x16x16xf32>
    %cst_89 = arith.constant 0.00874087773 : f32
    %151 = vector.broadcast %cst_89 : f32 to vector<3x16x16xf32>
    %152 = arith.mulf %151, %150 : vector<3x16x16xf32>
    %153 = arith.addf %149, %152 : vector<3x16x16xf32>
    %154 = vector.extract_strided_slice %62 {offsets = [0, 23, 0], sizes = [3, 16, 16], strides = [1, 1, 1]} : vector<3x46x16xf32> to vector<3x16x16xf32>
    %cst_90 = arith.constant 3.798770e-03 : f32
    %155 = vector.broadcast %cst_90 : f32 to vector<3x16x16xf32>
    %156 = arith.mulf %155, %154 : vector<3x16x16xf32>
    %157 = arith.addf %153, %156 : vector<3x16x16xf32>
    %158 = vector.extract_strided_slice %62 {offsets = [0, 24, 0], sizes = [3, 16, 16], strides = [1, 1, 1]} : vector<3x46x16xf32> to vector<3x16x16xf32>
    %cst_91 = arith.constant 0.00147732475 : f32
    %159 = vector.broadcast %cst_91 : f32 to vector<3x16x16xf32>
    %160 = arith.mulf %159, %158 : vector<3x16x16xf32>
    %161 = arith.addf %157, %160 : vector<3x16x16xf32>
    %162 = vector.extract_strided_slice %62 {offsets = [0, 25, 0], sizes = [3, 16, 16], strides = [1, 1, 1]} : vector<3x46x16xf32> to vector<3x16x16xf32>
    %cst_92 = arith.constant 5.14107582E-4 : f32
    %163 = vector.broadcast %cst_92 : f32 to vector<3x16x16xf32>
    %164 = arith.mulf %163, %162 : vector<3x16x16xf32>
    %165 = arith.addf %161, %164 : vector<3x16x16xf32>
    %166 = vector.extract_strided_slice %62 {offsets = [0, 26, 0], sizes = [3, 16, 16], strides = [1, 1, 1]} : vector<3x46x16xf32> to vector<3x16x16xf32>
    %cst_93 = arith.constant 1.60094773E-4 : f32
    %167 = vector.broadcast %cst_93 : f32 to vector<3x16x16xf32>
    %168 = arith.mulf %167, %166 : vector<3x16x16xf32>
    %169 = arith.addf %165, %168 : vector<3x16x16xf32>
    %170 = vector.extract_strided_slice %62 {offsets = [0, 27, 0], sizes = [3, 16, 16], strides = [1, 1, 1]} : vector<3x46x16xf32> to vector<3x16x16xf32>
    %cst_94 = arith.constant 4.46113445E-5 : f32
    %171 = vector.broadcast %cst_94 : f32 to vector<3x16x16xf32>
    %172 = arith.mulf %171, %170 : vector<3x16x16xf32>
    %173 = arith.addf %169, %172 : vector<3x16x16xf32>
    %174 = vector.extract_strided_slice %62 {offsets = [0, 28, 0], sizes = [3, 16, 16], strides = [1, 1, 1]} : vector<3x46x16xf32> to vector<3x16x16xf32>
    %cst_95 = arith.constant 0.000000e+00 : f32
    %175 = vector.broadcast %cst_95 : f32 to vector<3x16x16xf32>
    %176 = arith.mulf %175, %174 : vector<3x16x16xf32>
    %177 = arith.addf %173, %176 : vector<3x16x16xf32>
    %178 = vector.extract_strided_slice %62 {offsets = [0, 29, 0], sizes = [3, 16, 16], strides = [1, 1, 1]} : vector<3x46x16xf32> to vector<3x16x16xf32>
    %cst_96 = arith.constant 0.000000e+00 : f32
    %179 = vector.broadcast %cst_96 : f32 to vector<3x16x16xf32>
    %180 = arith.mulf %179, %178 : vector<3x16x16xf32>
    %181 = arith.addf %177, %180 : vector<3x16x16xf32>
    %182 = vector.extract_strided_slice %62 {offsets = [0, 30, 0], sizes = [3, 16, 16], strides = [1, 1, 1]} : vector<3x46x16xf32> to vector<3x16x16xf32>
    %cst_97 = arith.constant 0.000000e+00 : f32
    %183 = vector.broadcast %cst_97 : f32 to vector<3x16x16xf32>
    %184 = arith.mulf %183, %182 : vector<3x16x16xf32>
    %185 = arith.addf %181, %184 : vector<3x16x16xf32>
    %c0_98 = arith.constant 0 : index
    %c0_99 = arith.constant 0 : index
    %c15_100 = arith.constant 15 : index
    %186 = vector.load %arg4[%c0_98, %c0_99, %c15_100] : memref<3x16x46xf32, #tpu.memory_space<vmem>>, vector<3x16x16xf32>
    tpu.vector_store %arg4[%c0_98, %c0_99, %c15_100], %185 {strides = array<i32>} : memref<3x16x46xf32, #tpu.memory_space<vmem>>, vector<3x16x16xf32>,
    %187 = vector.extract_strided_slice %185 {offsets = [0, 0, 1], sizes = [3, 16, 1], strides = [1, 1, 1]} : vector<3x16x16xf32> to vector<3x16x1xf32>
    %c0_101 = arith.constant 0 : index
    %c0_102 = arith.constant 0 : index
    %c14_103 = arith.constant 14 : index
    %188 = vector.load %arg4[%c0_101, %c0_102, %c14_103] : memref<3x16x46xf32, #tpu.memory_space<vmem>>, vector<3x16x1xf32>
    tpu.vector_store %arg4[%c0_101, %c0_102, %c14_103], %187 {strides = array<i32>} : memref<3x16x46xf32, #tpu.memory_space<vmem>>, vector<3x16x1xf32>,
    %189 = vector.extract_strided_slice %185 {offsets = [0, 0, 14], sizes = [3, 16, 1], strides = [1, 1, 1]} : vector<3x16x16xf32> to vector<3x16x1xf32>
    %c0_104 = arith.constant 0 : index
    %c0_105 = arith.constant 0 : index
    %c31_106 = arith.constant 31 : index
    %190 = vector.load %arg4[%c0_104, %c0_105, %c31_106] : memref<3x16x46xf32, #tpu.memory_space<vmem>>, vector<3x16x1xf32>
    tpu.vector_store %arg4[%c0_104, %c0_105, %c31_106], %189 {strides = array<i32>} : memref<3x16x46xf32, #tpu.memory_space<vmem>>, vector<3x16x1xf32>,
    %191 = vector.extract_strided_slice %185 {offsets = [0, 0, 2], sizes = [3, 16, 1], strides = [1, 1, 1]} : vector<3x16x16xf32> to vector<3x16x1xf32>
    %c0_107 = arith.constant 0 : index
    %c0_108 = arith.constant 0 : index
    %c13_109 = arith.constant 13 : index
    %192 = vector.load %arg4[%c0_107, %c0_108, %c13_109] : memref<3x16x46xf32, #tpu.memory_space<vmem>>, vector<3x16x1xf32>
    tpu.vector_store %arg4[%c0_107, %c0_108, %c13_109], %191 {strides = array<i32>} : memref<3x16x46xf32, #tpu.memory_space<vmem>>, vector<3x16x1xf32>,
    %193 = vector.extract_strided_slice %185 {offsets = [0, 0, 13], sizes = [3, 16, 1], strides = [1, 1, 1]} : vector<3x16x16xf32> to vector<3x16x1xf32>
    %c0_110 = arith.constant 0 : index
    %c0_111 = arith.constant 0 : index
    %c32_112 = arith.constant 32 : index
    %194 = vector.load %arg4[%c0_110, %c0_111, %c32_112] : memref<3x16x46xf32, #tpu.memory_space<vmem>>, vector<3x16x1xf32>
    tpu.vector_store %arg4[%c0_110, %c0_111, %c32_112], %193 {strides = array<i32>} : memref<3x16x46xf32, #tpu.memory_space<vmem>>, vector<3x16x1xf32>,
    %195 = vector.extract_strided_slice %185 {offsets = [0, 0, 3], sizes = [3, 16, 1], strides = [1, 1, 1]} : vector<3x16x16xf32> to vector<3x16x1xf32>
    %c0_113 = arith.constant 0 : index
    %c0_114 = arith.constant 0 : index
    %c12_115 = arith.constant 12 : index
    %196 = vector.load %arg4[%c0_113, %c0_114, %c12_115] : memref<3x16x46xf32, #tpu.memory_space<vmem>>, vector<3x16x1xf32>
    tpu.vector_store %arg4[%c0_113, %c0_114, %c12_115], %195 {strides = array<i32>} : memref<3x16x46xf32, #tpu.memory_space<vmem>>, vector<3x16x1xf32>,
    %197 = vector.extract_strided_slice %185 {offsets = [0, 0, 12], sizes = [3, 16, 1], strides = [1, 1, 1]} : vector<3x16x16xf32> to vector<3x16x1xf32>
    %c0_116 = arith.constant 0 : index
    %c0_117 = arith.constant 0 : index
    %c33_118 = arith.constant 33 : index
    %198 = vector.load %arg4[%c0_116, %c0_117, %c33_118] : memref<3x16x46xf32, #tpu.memory_space<vmem>>, vector<3x16x1xf32>
    tpu.vector_store %arg4[%c0_116, %c0_117, %c33_118], %197 {strides = array<i32>} : memref<3x16x46xf32, #tpu.memory_space<vmem>>, vector<3x16x1xf32>,
    %199 = vector.extract_strided_slice %185 {offsets = [0, 0, 4], sizes = [3, 16, 1], strides = [1, 1, 1]} : vector<3x16x16xf32> to vector<3x16x1xf32>
    %c0_119 = arith.constant 0 : index
    %c0_120 = arith.constant 0 : index
    %c11_121 = arith.constant 11 : index
    %200 = vector.load %arg4[%c0_119, %c0_120, %c11_121] : memref<3x16x46xf32, #tpu.memory_space<vmem>>, vector<3x16x1xf32>
    tpu.vector_store %arg4[%c0_119, %c0_120, %c11_121], %199 {strides = array<i32>} : memref<3x16x46xf32, #tpu.memory_space<vmem>>, vector<3x16x1xf32>,
    %201 = vector.extract_strided_slice %185 {offsets = [0, 0, 11], sizes = [3, 16, 1], strides = [1, 1, 1]} : vector<3x16x16xf32> to vector<3x16x1xf32>
    %c0_122 = arith.constant 0 : index
    %c0_123 = arith.constant 0 : index
    %c34_124 = arith.constant 34 : index
    %202 = vector.load %arg4[%c0_122, %c0_123, %c34_124] : memref<3x16x46xf32, #tpu.memory_space<vmem>>, vector<3x16x1xf32>
    tpu.vector_store %arg4[%c0_122, %c0_123, %c34_124], %201 {strides = array<i32>} : memref<3x16x46xf32, #tpu.memory_space<vmem>>, vector<3x16x1xf32>,
    %203 = vector.extract_strided_slice %185 {offsets = [0, 0, 5], sizes = [3, 16, 1], strides = [1, 1, 1]} : vector<3x16x16xf32> to vector<3x16x1xf32>
    %c0_125 = arith.constant 0 : index
    %c0_126 = arith.constant 0 : index
    %c10_127 = arith.constant 10 : index
    %204 = vector.load %arg4[%c0_125, %c0_126, %c10_127] : memref<3x16x46xf32, #tpu.memory_space<vmem>>, vector<3x16x1xf32>
    tpu.vector_store %arg4[%c0_125, %c0_126, %c10_127], %203 {strides = array<i32>} : memref<3x16x46xf32, #tpu.memory_space<vmem>>, vector<3x16x1xf32>,
    %205 = vector.extract_strided_slice %185 {offsets = [0, 0, 10], sizes = [3, 16, 1], strides = [1, 1, 1]} : vector<3x16x16xf32> to vector<3x16x1xf32>
    %c0_128 = arith.constant 0 : index
    %c0_129 = arith.constant 0 : index
    %c35_130 = arith.constant 35 : index
    %206 = vector.load %arg4[%c0_128, %c0_129, %c35_130] : memref<3x16x46xf32, #tpu.memory_space<vmem>>, vector<3x16x1xf32>
    tpu.vector_store %arg4[%c0_128, %c0_129, %c35_130], %205 {strides = array<i32>} : memref<3x16x46xf32, #tpu.memory_space<vmem>>, vector<3x16x1xf32>,
    %207 = vector.extract_strided_slice %185 {offsets = [0, 0, 6], sizes = [3, 16, 1], strides = [1, 1, 1]} : vector<3x16x16xf32> to vector<3x16x1xf32>
    %c0_131 = arith.constant 0 : index
    %c0_132 = arith.constant 0 : index
    %c9_133 = arith.constant 9 : index
    %208 = vector.load %arg4[%c0_131, %c0_132, %c9_133] : memref<3x16x46xf32, #tpu.memory_space<vmem>>, vector<3x16x1xf32>
    tpu.vector_store %arg4[%c0_131, %c0_132, %c9_133], %207 {strides = array<i32>} : memref<3x16x46xf32, #tpu.memory_space<vmem>>, vector<3x16x1xf32>,
    %209 = vector.extract_strided_slice %185 {offsets = [0, 0, 9], sizes = [3, 16, 1], strides = [1, 1, 1]} : vector<3x16x16xf32> to vector<3x16x1xf32>
    %c0_134 = arith.constant 0 : index
    %c0_135 = arith.constant 0 : index
    %c36_136 = arith.constant 36 : index
    %210 = vector.load %arg4[%c0_134, %c0_135, %c36_136] : memref<3x16x46xf32, #tpu.memory_space<vmem>>, vector<3x16x1xf32>
    tpu.vector_store %arg4[%c0_134, %c0_135, %c36_136], %209 {strides = array<i32>} : memref<3x16x46xf32, #tpu.memory_space<vmem>>, vector<3x16x1xf32>,
    %211 = vector.extract_strided_slice %185 {offsets = [0, 0, 7], sizes = [3, 16, 1], strides = [1, 1, 1]} : vector<3x16x16xf32> to vector<3x16x1xf32>
    %c0_137 = arith.constant 0 : index
    %c0_138 = arith.constant 0 : index
    %c8_139 = arith.constant 8 : index
    %212 = vector.load %arg4[%c0_137, %c0_138, %c8_139] : memref<3x16x46xf32, #tpu.memory_space<vmem>>, vector<3x16x1xf32>
    tpu.vector_store %arg4[%c0_137, %c0_138, %c8_139], %211 {strides = array<i32>} : memref<3x16x46xf32, #tpu.memory_space<vmem>>, vector<3x16x1xf32>,
    %213 = vector.extract_strided_slice %185 {offsets = [0, 0, 8], sizes = [3, 16, 1], strides = [1, 1, 1]} : vector<3x16x16xf32> to vector<3x16x1xf32>
    %c0_140 = arith.constant 0 : index
    %c0_141 = arith.constant 0 : index
    %c37_142 = arith.constant 37 : index
    %214 = vector.load %arg4[%c0_140, %c0_141, %c37_142] : memref<3x16x46xf32, #tpu.memory_space<vmem>>, vector<3x16x1xf32>
    tpu.vector_store %arg4[%c0_140, %c0_141, %c37_142], %213 {strides = array<i32>} : memref<3x16x46xf32, #tpu.memory_space<vmem>>, vector<3x16x1xf32>,
    %215 = vector.extract_strided_slice %185 {offsets = [0, 0, 8], sizes = [3, 16, 1], strides = [1, 1, 1]} : vector<3x16x16xf32> to vector<3x16x1xf32>
    %c0_143 = arith.constant 0 : index
    %c0_144 = arith.constant 0 : index
    %c7_145 = arith.constant 7 : index
    %216 = vector.load %arg4[%c0_143, %c0_144, %c7_145] : memref<3x16x46xf32, #tpu.memory_space<vmem>>, vector<3x16x1xf32>
    tpu.vector_store %arg4[%c0_143, %c0_144, %c7_145], %215 {strides = array<i32>} : memref<3x16x46xf32, #tpu.memory_space<vmem>>, vector<3x16x1xf32>,
    %217 = vector.extract_strided_slice %185 {offsets = [0, 0, 7], sizes = [3, 16, 1], strides = [1, 1, 1]} : vector<3x16x16xf32> to vector<3x16x1xf32>
    %c0_146 = arith.constant 0 : index
    %c0_147 = arith.constant 0 : index
    %c38_148 = arith.constant 38 : index
    %218 = vector.load %arg4[%c0_146, %c0_147, %c38_148] : memref<3x16x46xf32, #tpu.memory_space<vmem>>, vector<3x16x1xf32>
    tpu.vector_store %arg4[%c0_146, %c0_147, %c38_148], %217 {strides = array<i32>} : memref<3x16x46xf32, #tpu.memory_space<vmem>>, vector<3x16x1xf32>,
    %219 = vector.extract_strided_slice %185 {offsets = [0, 0, 9], sizes = [3, 16, 1], strides = [1, 1, 1]} : vector<3x16x16xf32> to vector<3x16x1xf32>
    %c0_149 = arith.constant 0 : index
    %c0_150 = arith.constant 0 : index
    %c6_151 = arith.constant 6 : index
    %220 = vector.load %arg4[%c0_149, %c0_150, %c6_151] : memref<3x16x46xf32, #tpu.memory_space<vmem>>, vector<3x16x1xf32>
    tpu.vector_store %arg4[%c0_149, %c0_150, %c6_151], %219 {strides = array<i32>} : memref<3x16x46xf32, #tpu.memory_space<vmem>>, vector<3x16x1xf32>,
    %221 = vector.extract_strided_slice %185 {offsets = [0, 0, 6], sizes = [3, 16, 1], strides = [1, 1, 1]} : vector<3x16x16xf32> to vector<3x16x1xf32>
    %c0_152 = arith.constant 0 : index
    %c0_153 = arith.constant 0 : index
    %c39_154 = arith.constant 39 : index
    %222 = vector.load %arg4[%c0_152, %c0_153, %c39_154] : memref<3x16x46xf32, #tpu.memory_space<vmem>>, vector<3x16x1xf32>
    tpu.vector_store %arg4[%c0_152, %c0_153, %c39_154], %221 {strides = array<i32>} : memref<3x16x46xf32, #tpu.memory_space<vmem>>, vector<3x16x1xf32>,
    %223 = vector.extract_strided_slice %185 {offsets = [0, 0, 10], sizes = [3, 16, 1], strides = [1, 1, 1]} : vector<3x16x16xf32> to vector<3x16x1xf32>
    %c0_155 = arith.constant 0 : index
    %c0_156 = arith.constant 0 : index
    %c5_157 = arith.constant 5 : index
    %224 = vector.load %arg4[%c0_155, %c0_156, %c5_157] : memref<3x16x46xf32, #tpu.memory_space<vmem>>, vector<3x16x1xf32>
    tpu.vector_store %arg4[%c0_155, %c0_156, %c5_157], %223 {strides = array<i32>} : memref<3x16x46xf32, #tpu.memory_space<vmem>>, vector<3x16x1xf32>,
    %225 = vector.extract_strided_slice %185 {offsets = [0, 0, 5], sizes = [3, 16, 1], strides = [1, 1, 1]} : vector<3x16x16xf32> to vector<3x16x1xf32>
    %c0_158 = arith.constant 0 : index
    %c0_159 = arith.constant 0 : index
    %c40_160 = arith.constant 40 : index
    %226 = vector.load %arg4[%c0_158, %c0_159, %c40_160] : memref<3x16x46xf32, #tpu.memory_space<vmem>>, vector<3x16x1xf32>
    tpu.vector_store %arg4[%c0_158, %c0_159, %c40_160], %225 {strides = array<i32>} : memref<3x16x46xf32, #tpu.memory_space<vmem>>, vector<3x16x1xf32>,
    %227 = vector.extract_strided_slice %185 {offsets = [0, 0, 11], sizes = [3, 16, 1], strides = [1, 1, 1]} : vector<3x16x16xf32> to vector<3x16x1xf32>
    %c0_161 = arith.constant 0 : index
    %c0_162 = arith.constant 0 : index
    %c4_163 = arith.constant 4 : index
    %228 = vector.load %arg4[%c0_161, %c0_162, %c4_163] : memref<3x16x46xf32, #tpu.memory_space<vmem>>, vector<3x16x1xf32>
    tpu.vector_store %arg4[%c0_161, %c0_162, %c4_163], %227 {strides = array<i32>} : memref<3x16x46xf32, #tpu.memory_space<vmem>>, vector<3x16x1xf32>,
    %229 = vector.extract_strided_slice %185 {offsets = [0, 0, 4], sizes = [3, 16, 1], strides = [1, 1, 1]} : vector<3x16x16xf32> to vector<3x16x1xf32>
    %c0_164 = arith.constant 0 : index
    %c0_165 = arith.constant 0 : index
    %c41_166 = arith.constant 41 : index
    %230 = vector.load %arg4[%c0_164, %c0_165, %c41_166] : memref<3x16x46xf32, #tpu.memory_space<vmem>>, vector<3x16x1xf32>
    tpu.vector_store %arg4[%c0_164, %c0_165, %c41_166], %229 {strides = array<i32>} : memref<3x16x46xf32, #tpu.memory_space<vmem>>, vector<3x16x1xf32>,
    %231 = vector.extract_strided_slice %185 {offsets = [0, 0, 12], sizes = [3, 16, 1], strides = [1, 1, 1]} : vector<3x16x16xf32> to vector<3x16x1xf32>
    %c0_167 = arith.constant 0 : index
    %c0_168 = arith.constant 0 : index
    %c3_169 = arith.constant 3 : index
    %232 = vector.load %arg4[%c0_167, %c0_168, %c3_169] : memref<3x16x46xf32, #tpu.memory_space<vmem>>, vector<3x16x1xf32>
    tpu.vector_store %arg4[%c0_167, %c0_168, %c3_169], %231 {strides = array<i32>} : memref<3x16x46xf32, #tpu.memory_space<vmem>>, vector<3x16x1xf32>,
    %233 = vector.extract_strided_slice %185 {offsets = [0, 0, 3], sizes = [3, 16, 1], strides = [1, 1, 1]} : vector<3x16x16xf32> to vector<3x16x1xf32>
    %c0_170 = arith.constant 0 : index
    %c0_171 = arith.constant 0 : index
    %c42_172 = arith.constant 42 : index
    %234 = vector.load %arg4[%c0_170, %c0_171, %c42_172] : memref<3x16x46xf32, #tpu.memory_space<vmem>>, vector<3x16x1xf32>
    tpu.vector_store %arg4[%c0_170, %c0_171, %c42_172], %233 {strides = array<i32>} : memref<3x16x46xf32, #tpu.memory_space<vmem>>, vector<3x16x1xf32>,
    %235 = vector.extract_strided_slice %185 {offsets = [0, 0, 13], sizes = [3, 16, 1], strides = [1, 1, 1]} : vector<3x16x16xf32> to vector<3x16x1xf32>
    %c0_173 = arith.constant 0 : index
    %c0_174 = arith.constant 0 : index
    %c2_175 = arith.constant 2 : index
    %236 = vector.load %arg4[%c0_173, %c0_174, %c2_175] : memref<3x16x46xf32, #tpu.memory_space<vmem>>, vector<3x16x1xf32>
    tpu.vector_store %arg4[%c0_173, %c0_174, %c2_175], %235 {strides = array<i32>} : memref<3x16x46xf32, #tpu.memory_space<vmem>>, vector<3x16x1xf32>,
    %237 = vector.extract_strided_slice %185 {offsets = [0, 0, 2], sizes = [3, 16, 1], strides = [1, 1, 1]} : vector<3x16x16xf32> to vector<3x16x1xf32>
    %c0_176 = arith.constant 0 : index
    %c0_177 = arith.constant 0 : index
    %c43_178 = arith.constant 43 : index
    %238 = vector.load %arg4[%c0_176, %c0_177, %c43_178] : memref<3x16x46xf32, #tpu.memory_space<vmem>>, vector<3x16x1xf32>
    tpu.vector_store %arg4[%c0_176, %c0_177, %c43_178], %237 {strides = array<i32>} : memref<3x16x46xf32, #tpu.memory_space<vmem>>, vector<3x16x1xf32>,
    %239 = vector.extract_strided_slice %185 {offsets = [0, 0, 14], sizes = [3, 16, 1], strides = [1, 1, 1]} : vector<3x16x16xf32> to vector<3x16x1xf32>
    %c0_179 = arith.constant 0 : index
    %c0_180 = arith.constant 0 : index
    %c1_181 = arith.constant 1 : index
    %240 = vector.load %arg4[%c0_179, %c0_180, %c1_181] : memref<3x16x46xf32, #tpu.memory_space<vmem>>, vector<3x16x1xf32>
    tpu.vector_store %arg4[%c0_179, %c0_180, %c1_181], %239 {strides = array<i32>} : memref<3x16x46xf32, #tpu.memory_space<vmem>>, vector<3x16x1xf32>,
    %241 = vector.extract_strided_slice %185 {offsets = [0, 0, 1], sizes = [3, 16, 1], strides = [1, 1, 1]} : vector<3x16x16xf32> to vector<3x16x1xf32>
    %c0_182 = arith.constant 0 : index
    %c0_183 = arith.constant 0 : index
    %c44_184 = arith.constant 44 : index
    %242 = vector.load %arg4[%c0_182, %c0_183, %c44_184] : memref<3x16x46xf32, #tpu.memory_space<vmem>>, vector<3x16x1xf32>
    tpu.vector_store %arg4[%c0_182, %c0_183, %c44_184], %241 {strides = array<i32>} : memref<3x16x46xf32, #tpu.memory_space<vmem>>, vector<3x16x1xf32>,
    %243 = vector.extract_strided_slice %185 {offsets = [0, 0, 15], sizes = [3, 16, 1], strides = [1, 1, 1]} : vector<3x16x16xf32> to vector<3x16x1xf32>
    %c0_185 = arith.constant 0 : index
    %c0_186 = arith.constant 0 : index
    %c0_187 = arith.constant 0 : index
    %244 = vector.load %arg4[%c0_185, %c0_186, %c0_187] : memref<3x16x46xf32, #tpu.memory_space<vmem>>, vector<3x16x1xf32>
    tpu.vector_store %arg4[%c0_185, %c0_186, %c0_187], %243 {strides = array<i32>} : memref<3x16x46xf32, #tpu.memory_space<vmem>>, vector<3x16x1xf32>,
    %245 = vector.extract_strided_slice %185 {offsets = [0, 0, 0], sizes = [3, 16, 1], strides = [1, 1, 1]} : vector<3x16x16xf32> to vector<3x16x1xf32>
    %c0_188 = arith.constant 0 : index
    %c0_189 = arith.constant 0 : index
    %c45_190 = arith.constant 45 : index
    %246 = vector.load %arg4[%c0_188, %c0_189, %c45_190] : memref<3x16x46xf32, #tpu.memory_space<vmem>>, vector<3x16x1xf32>
    tpu.vector_store %arg4[%c0_188, %c0_189, %c45_190], %245 {strides = array<i32>} : memref<3x16x46xf32, #tpu.memory_space<vmem>>, vector<3x16x1xf32>,
    %c0_191 = arith.constant 0 : index
    %c0_192 = arith.constant 0 : index
    %c0_193 = arith.constant 0 : index
    %247 = vector.load %arg4[%c0_191, %c0_192, %c0_193] : memref<3x16x46xf32, #tpu.memory_space<vmem>>, vector<3x16x46xf32>
    %248 = vector.extract_strided_slice %247 {offsets = [0, 0, 0], sizes = [3, 16, 16], strides = [1, 1, 1]} : vector<3x16x46xf32> to vector<3x16x16xf32>
    %cst_194 = arith.constant 0.000000e+00 : f32
    %249 = vector.broadcast %cst_194 : f32 to vector<3x16x16xf32>
    %250 = arith.mulf %249, %248 : vector<3x16x16xf32>
    %251 = vector.extract_strided_slice %247 {offsets = [0, 0, 1], sizes = [3, 16, 16], strides = [1, 1, 1]} : vector<3x16x46xf32> to vector<3x16x16xf32>
    %cst_195 = arith.constant 0.000000e+00 : f32
    %252 = vector.broadcast %cst_195 : f32 to vector<3x16x16xf32>
    %253 = arith.mulf %252, %251 : vector<3x16x16xf32>
    %254 = arith.addf %250, %253 : vector<3x16x16xf32>
    %255 = vector.extract_strided_slice %247 {offsets = [0, 0, 2], sizes = [3, 16, 16], strides = [1, 1, 1]} : vector<3x16x46xf32> to vector<3x16x16xf32>
    %cst_196 = arith.constant 0.000000e+00 : f32
    %256 = vector.broadcast %cst_196 : f32 to vector<3x16x16xf32>
    %257 = arith.mulf %256, %255 : vector<3x16x16xf32>
    %258 = arith.addf %254, %257 : vector<3x16x16xf32>
    %259 = vector.extract_strided_slice %247 {offsets = [0, 0, 3], sizes = [3, 16, 16], strides = [1, 1, 1]} : vector<3x16x46xf32> to vector<3x16x16xf32>
    %cst_197 = arith.constant 4.46113445E-5 : f32
    %260 = vector.broadcast %cst_197 : f32 to vector<3x16x16xf32>
    %261 = arith.mulf %260, %259 : vector<3x16x16xf32>
    %262 = arith.addf %258, %261 : vector<3x16x16xf32>
    %263 = vector.extract_strided_slice %247 {offsets = [0, 0, 4], sizes = [3, 16, 16], strides = [1, 1, 1]} : vector<3x16x46xf32> to vector<3x16x16xf32>
    %cst_198 = arith.constant 1.60094773E-4 : f32
    %264 = vector.broadcast %cst_198 : f32 to vector<3x16x16xf32>
    %265 = arith.mulf %264, %263 : vector<3x16x16xf32>
    %266 = arith.addf %262, %265 : vector<3x16x16xf32>
    %267 = vector.extract_strided_slice %247 {offsets = [0, 0, 5], sizes = [3, 16, 16], strides = [1, 1, 1]} : vector<3x16x46xf32> to vector<3x16x16xf32>
    %cst_199 = arith.constant 5.14107582E-4 : f32
    %268 = vector.broadcast %cst_199 : f32 to vector<3x16x16xf32>
    %269 = arith.mulf %268, %267 : vector<3x16x16xf32>
    %270 = arith.addf %266, %269 : vector<3x16x16xf32>
    %271 = vector.extract_strided_slice %247 {offsets = [0, 0, 6], sizes = [3, 16, 16], strides = [1, 1, 1]} : vector<3x16x46xf32> to vector<3x16x16xf32>
    %cst_200 = arith.constant 0.00147732475 : f32
    %272 = vector.broadcast %cst_200 : f32 to vector<3x16x16xf32>
    %273 = arith.mulf %272, %271 : vector<3x16x16xf32>
    %274 = arith.addf %270, %273 : vector<3x16x16xf32>
    %275 = vector.extract_strided_slice %247 {offsets = [0, 0, 7], sizes = [3, 16, 16], strides = [1, 1, 1]} : vector<3x16x46xf32> to vector<3x16x16xf32>
    %cst_201 = arith.constant 3.798770e-03 : f32
    %276 = vector.broadcast %cst_201 : f32 to vector<3x16x16xf32>
    %277 = arith.mulf %276, %275 : vector<3x16x16xf32>
    %278 = arith.addf %274, %277 : vector<3x16x16xf32>
    %279 = vector.extract_strided_slice %247 {offsets = [0, 0, 8], sizes = [3, 16, 16], strides = [1, 1, 1]} : vector<3x16x46xf32> to vector<3x16x16xf32>
    %cst_202 = arith.constant 0.00874087773 : f32
    %280 = vector.broadcast %cst_202 : f32 to vector<3x16x16xf32>
    %281 = arith.mulf %280, %279 : vector<3x16x16xf32>
    %282 = arith.addf %278, %281 : vector<3x16x16xf32>
    %283 = vector.extract_strided_slice %247 {offsets = [0, 0, 9], sizes = [3, 16, 16], strides = [1, 1, 1]} : vector<3x16x46xf32> to vector<3x16x16xf32>
    %cst_203 = arith.constant 1.799750e-02 : f32
    %284 = vector.broadcast %cst_203 : f32 to vector<3x16x16xf32>
    %285 = arith.mulf %284, %283 : vector<3x16x16xf32>
    %286 = arith.addf %282, %285 : vector<3x16x16xf32>
    %287 = vector.extract_strided_slice %247 {offsets = [0, 0, 10], sizes = [3, 16, 16], strides = [1, 1, 1]} : vector<3x16x46xf32> to vector<3x16x16xf32>
    %cst_204 = arith.constant 0.0331599899 : f32
    %288 = vector.broadcast %cst_204 : f32 to vector<3x16x16xf32>
    %289 = arith.mulf %288, %287 : vector<3x16x16xf32>
    %290 = arith.addf %286, %289 : vector<3x16x16xf32>
    %291 = vector.extract_strided_slice %247 {offsets = [0, 0, 11], sizes = [3, 16, 16], strides = [1, 1, 1]} : vector<3x16x46xf32> to vector<3x16x16xf32>
    %cst_205 = arith.constant 0.0546715781 : f32
    %292 = vector.broadcast %cst_205 : f32 to vector<3x16x16xf32>
    %293 = arith.mulf %292, %291 : vector<3x16x16xf32>
    %294 = arith.addf %290, %293 : vector<3x16x16xf32>
    %295 = vector.extract_strided_slice %247 {offsets = [0, 0, 12], sizes = [3, 16, 16], strides = [1, 1, 1]} : vector<3x16x46xf32> to vector<3x16x16xf32>
    %cst_206 = arith.constant 8.065920e-02 : f32
    %296 = vector.broadcast %cst_206 : f32 to vector<3x16x16xf32>
    %297 = arith.mulf %296, %295 : vector<3x16x16xf32>
    %298 = arith.addf %294, %297 : vector<3x16x16xf32>
    %299 = vector.extract_strided_slice %247 {offsets = [0, 0, 13], sizes = [3, 16, 16], strides = [1, 1, 1]} : vector<3x16x46xf32> to vector<3x16x16xf32>
    %cst_207 = arith.constant 0.106485695 : f32
    %300 = vector.broadcast %cst_207 : f32 to vector<3x16x16xf32>
    %301 = arith.mulf %300, %299 : vector<3x16x16xf32>
    %302 = arith.addf %298, %301 : vector<3x16x16xf32>
    %303 = vector.extract_strided_slice %247 {offsets = [0, 0, 14], sizes = [3, 16, 16], strides = [1, 1, 1]} : vector<3x16x46xf32> to vector<3x16x16xf32>
    %cst_208 = arith.constant 0.125797987 : f32
    %304 = vector.broadcast %cst_208 : f32 to vector<3x16x16xf32>
    %305 = arith.mulf %304, %303 : vector<3x16x16xf32>
    %306 = arith.addf %302, %305 : vector<3x16x16xf32>
    %307 = vector.extract_strided_slice %247 {offsets = [0, 0, 15], sizes = [3, 16, 16], strides = [1, 1, 1]} : vector<3x16x46xf32> to vector<3x16x16xf32>
    %cst_209 = arith.constant 0.132984534 : f32
    %308 = vector.broadcast %cst_209 : f32 to vector<3x16x16xf32>
    %309 = arith.mulf %308, %307 : vector<3x16x16xf32>
    %310 = arith.addf %306, %309 : vector<3x16x16xf32>
    %311 = vector.extract_strided_slice %247 {offsets = [0, 0, 16], sizes = [3, 16, 16], strides = [1, 1, 1]} : vector<3x16x46xf32> to vector<3x16x16xf32>
    %cst_210 = arith.constant 0.125797987 : f32
    %312 = vector.broadcast %cst_210 : f32 to vector<3x16x16xf32>
    %313 = arith.mulf %312, %311 : vector<3x16x16xf32>
    %314 = arith.addf %310, %313 : vector<3x16x16xf32>
    %315 = vector.extract_strided_slice %247 {offsets = [0, 0, 17], sizes = [3, 16, 16], strides = [1, 1, 1]} : vector<3x16x46xf32> to vector<3x16x16xf32>
    %cst_211 = arith.constant 0.106485695 : f32
    %316 = vector.broadcast %cst_211 : f32 to vector<3x16x16xf32>
    %317 = arith.mulf %316, %315 : vector<3x16x16xf32>
    %318 = arith.addf %314, %317 : vector<3x16x16xf32>
    %319 = vector.extract_strided_slice %247 {offsets = [0, 0, 18], sizes = [3, 16, 16], strides = [1, 1, 1]} : vector<3x16x46xf32> to vector<3x16x16xf32>
    %cst_212 = arith.constant 8.065920e-02 : f32
    %320 = vector.broadcast %cst_212 : f32 to vector<3x16x16xf32>
    %321 = arith.mulf %320, %319 : vector<3x16x16xf32>
    %322 = arith.addf %318, %321 : vector<3x16x16xf32>
    %323 = vector.extract_strided_slice %247 {offsets = [0, 0, 19], sizes = [3, 16, 16], strides = [1, 1, 1]} : vector<3x16x46xf32> to vector<3x16x16xf32>
    %cst_213 = arith.constant 0.0546715781 : f32
    %324 = vector.broadcast %cst_213 : f32 to vector<3x16x16xf32>
    %325 = arith.mulf %324, %323 : vector<3x16x16xf32>
    %326 = arith.addf %322, %325 : vector<3x16x16xf32>
    %327 = vector.extract_strided_slice %247 {offsets = [0, 0, 20], sizes = [3, 16, 16], strides = [1, 1, 1]} : vector<3x16x46xf32> to vector<3x16x16xf32>
    %cst_214 = arith.constant 0.0331599899 : f32
    %328 = vector.broadcast %cst_214 : f32 to vector<3x16x16xf32>
    %329 = arith.mulf %328, %327 : vector<3x16x16xf32>
    %330 = arith.addf %326, %329 : vector<3x16x16xf32>
    %331 = vector.extract_strided_slice %247 {offsets = [0, 0, 21], sizes = [3, 16, 16], strides = [1, 1, 1]} : vector<3x16x46xf32> to vector<3x16x16xf32>
    %cst_215 = arith.constant 1.799750e-02 : f32
    %332 = vector.broadcast %cst_215 : f32 to vector<3x16x16xf32>
    %333 = arith.mulf %332, %331 : vector<3x16x16xf32>
    %334 = arith.addf %330, %333 : vector<3x16x16xf32>
    %335 = vector.extract_strided_slice %247 {offsets = [0, 0, 22], sizes = [3, 16, 16], strides = [1, 1, 1]} : vector<3x16x46xf32> to vector<3x16x16xf32>
    %cst_216 = arith.constant 0.00874087773 : f32
    %336 = vector.broadcast %cst_216 : f32 to vector<3x16x16xf32>
    %337 = arith.mulf %336, %335 : vector<3x16x16xf32>
    %338 = arith.addf %334, %337 : vector<3x16x16xf32>
    %339 = vector.extract_strided_slice %247 {offsets = [0, 0, 23], sizes = [3, 16, 16], strides = [1, 1, 1]} : vector<3x16x46xf32> to vector<3x16x16xf32>
    %cst_217 = arith.constant 3.798770e-03 : f32
    %340 = vector.broadcast %cst_217 : f32 to vector<3x16x16xf32>
    %341 = arith.mulf %340, %339 : vector<3x16x16xf32>
    %342 = arith.addf %338, %341 : vector<3x16x16xf32>
    %343 = vector.extract_strided_slice %247 {offsets = [0, 0, 24], sizes = [3, 16, 16], strides = [1, 1, 1]} : vector<3x16x46xf32> to vector<3x16x16xf32>
    %cst_218 = arith.constant 0.00147732475 : f32
    %344 = vector.broadcast %cst_218 : f32 to vector<3x16x16xf32>
    %345 = arith.mulf %344, %343 : vector<3x16x16xf32>
    %346 = arith.addf %342, %345 : vector<3x16x16xf32>
    %347 = vector.extract_strided_slice %247 {offsets = [0, 0, 25], sizes = [3, 16, 16], strides = [1, 1, 1]} : vector<3x16x46xf32> to vector<3x16x16xf32>
    %cst_219 = arith.constant 5.14107582E-4 : f32
    %348 = vector.broadcast %cst_219 : f32 to vector<3x16x16xf32>
    %349 = arith.mulf %348, %347 : vector<3x16x16xf32>
    %350 = arith.addf %346, %349 : vector<3x16x16xf32>
    %351 = vector.extract_strided_slice %247 {offsets = [0, 0, 26], sizes = [3, 16, 16], strides = [1, 1, 1]} : vector<3x16x46xf32> to vector<3x16x16xf32>
    %cst_220 = arith.constant 1.60094773E-4 : f32
    %352 = vector.broadcast %cst_220 : f32 to vector<3x16x16xf32>
    %353 = arith.mulf %352, %351 : vector<3x16x16xf32>
    %354 = arith.addf %350, %353 : vector<3x16x16xf32>
    %355 = vector.extract_strided_slice %247 {offsets = [0, 0, 27], sizes = [3, 16, 16], strides = [1, 1, 1]} : vector<3x16x46xf32> to vector<3x16x16xf32>
    %cst_221 = arith.constant 4.46113445E-5 : f32
    %356 = vector.broadcast %cst_221 : f32 to vector<3x16x16xf32>
    %357 = arith.mulf %356, %355 : vector<3x16x16xf32>
    %358 = arith.addf %354, %357 : vector<3x16x16xf32>
    %359 = vector.extract_strided_slice %247 {offsets = [0, 0, 28], sizes = [3, 16, 16], strides = [1, 1, 1]} : vector<3x16x46xf32> to vector<3x16x16xf32>
    %cst_222 = arith.constant 0.000000e+00 : f32
    %360 = vector.broadcast %cst_222 : f32 to vector<3x16x16xf32>
    %361 = arith.mulf %360, %359 : vector<3x16x16xf32>
    %362 = arith.addf %358, %361 : vector<3x16x16xf32>
    %363 = vector.extract_strided_slice %247 {offsets = [0, 0, 29], sizes = [3, 16, 16], strides = [1, 1, 1]} : vector<3x16x46xf32> to vector<3x16x16xf32>
    %cst_223 = arith.constant 0.000000e+00 : f32
    %364 = vector.broadcast %cst_223 : f32 to vector<3x16x16xf32>
    %365 = arith.mulf %364, %363 : vector<3x16x16xf32>
    %366 = arith.addf %362, %365 : vector<3x16x16xf32>
    %367 = vector.extract_strided_slice %247 {offsets = [0, 0, 30], sizes = [3, 16, 16], strides = [1, 1, 1]} : vector<3x16x46xf32> to vector<3x16x16xf32>
    %cst_224 = arith.constant 0.000000e+00 : f32
    %368 = vector.broadcast %cst_224 : f32 to vector<3x16x16xf32>
    %369 = arith.mulf %368, %367 : vector<3x16x16xf32>
    %370 = arith.addf %366, %369 : vector<3x16x16xf32>
    %c0_225 = arith.constant 0 : index
    %c0_226 = arith.constant 0 : index
    %c0_227 = arith.constant 0 : index
    %371 = vector.load %arg2[%c0_225, %c0_226, %c0_227] : memref<3x16x16xf32, #tpu.memory_space<vmem>>, vector<3x16x16xf32>
    tpu.vector_store %arg2[%c0_225, %c0_226, %c0_227], %370 {strides = array<i32>} : memref<3x16x16xf32, #tpu.memory_space<vmem>>, vector<3x16x16xf32>,
    return
  }
  func.func @transform_0(%arg0: i32) -> (i32, i32, i32) {
    %c0_i32 = arith.constant 0 : i32
    %c0_i32_0 = arith.constant 0 : i32
    %c0_i32_1 = arith.constant 0 : i32
    return %arg0, %c0_i32, %c0_i32_0 : i32, i32, i32
  }
  func.func @transform_1(%arg0: i32) -> (i32, i32, i32) {
    %c0_i32 = arith.constant 0 : i32
    %c0_i32_0 = arith.constant 0 : i32
    %c0_i32_1 = arith.constant 0 : i32
    return %arg0, %c0_i32, %c0_i32_0 : i32, i32, i32
  }
}

</mosaic_0001>

<llo_original>
// kernel: tpu_custom_call.1
$region0: #{tpu_custom_call.1}
  #allocation0 [shape = 'u32[]', space=smem, size = 0x4, offset = 0x4, fixed_abs, tag = 'smem constant byte address 0x4 - core index']
  #allocation1 [shape = 'u32[72,128]{1,0:T(1,128)}', space=vmem, size = 0x9000, scoped, tag = 'internal scratch']
  #allocation2 [shape = 'f32[3,46,16]{2,1,0:T(8,128)}', space=vmem, size = 0x12000, scoped, tag = 'scratch operand']
  #allocation3 [shape = 'f32[3,16,46]{2,1,0:T(8,128)}', space=vmem, size = 0x6000, scoped, tag = 'scratch operand']
  %s0 = inlined_call_operand.hbm [shape: f32[6,16,16], index: 0, kind: input, shape index: {}]
  %s1 = inlined_call_operand.hbm [shape: f32[6,16,16], index: 1, kind: output, shape index: {}]
  %s2 = sld [smem:[#allocation0]]
  $region41: #{tpu_custom_call.1} parent=0
    _
  %s4 = ssub.s32 1, %s2
  %s5 = scalar_select 0, %s4, %s2
  $region1: #{tpu_custom_call.1} parent=0
    #allocation4 [shape = 'u8[49152]{0}', space=vmem, size = 0xc000, scoped, tag = 'input window, operand 0']
    #allocation5 [shape = 's32[2]{0}', space=sflag, size = 0x8, scoped, tag = 'scoped memory for tpu_custom_call.1']
    #allocation6 [shape = 's32[2]{0}', space=sflag, size = 0x8, scoped, tag = 'scoped memory for tpu_custom_call.1']
    #allocation7 [shape = 'u8[49152]{0}', space=vmem, size = 0xc000, scoped, tag = 'output window, operand 0']
    %6 = vsyncpa [#allocation5], 0
    %s7 = scalar_lea.sflag [#allocation5], 1
    %8 = vsyncpa %s7, 0
    %9 = vsyncpa [#allocation6], 0
    %s10 = scalar_lea.sflag [#allocation6], 1
    %11 = vsyncpa %s10, 0
    loop: start=0, step=1, limit=4
    $region2: #{tpu_custom_call.1} parent=1 // loop_pre_header
      _
    $region3: #{tpu_custom_call.1} parent=1 // loop_header
      %s13 = sphi 0, %s17
      %p14 = scmp.ge.s32.totalorder %s13, 4
      %s23 = sphi 0, %s25
      %s26 = sphi 0, %s23
      %s27 = sphi 0, %s26
      %s43 = sphi 0, %s27
      %s49 = sphi 0, %s51
      %s52 = sphi 0, %s49
      %s53 = sphi 0, %s52
      %s69 = sphi 0, %s53
    $region4: #{tpu_custom_call.1} parent=1 // loop_header_branch
      %16 = sbr.rel (%p14) target = $region8
    $region5: #{tpu_custom_call.1} parent=1 // loop_body
      %s18 = ssub.s32 %s13, 1
      %s19 = ssub.s32 %s13, 2
      %s20 = sadd.s32 %s13, 1
      %s21 = ssub.s32 %s13, %s20
      %p22 = scmp.eq.s32.totalorder %s21, 0
      %s24 = sadd.s32 %s23, 1
      %s25 = scalar_select %p22, %s23, %s24
      %p28 = pneg %p22
      %p29 = scmp.eq.s32.totalorder %s13, 1
      %p30 = por %p28, %p29
      %p31 = scmp.ne.s32.totalorder %s23, %s26
      %p32 = scmp.eq.s32.totalorder %s13, 0
      %p33 = por %p31, %p32
      %p34 = scmp.ne.s32.totalorder %s23, %s26
      %p35 = scmp.eq.s32.totalorder %s18, 1
      %p36 = por %p34, %p35
      %p37 = scmp.ne.s32.totalorder %s26, %s27
      %p38 = scmp.eq.s32.totalorder %s18, 0
      %p39 = por %p37, %p38
      %p40 = scmp.ne.s32.totalorder %s26, %s27
      %p41 = scmp.eq.s32.totalorder %s19, 1
      %p42 = por %p40, %p41
      %p44 = scmp.ne.s32.totalorder %s27, %s43
      %p45 = scmp.eq.s32.totalorder %s19, 0
      %p46 = por %p44, %p45
      %s47 = ssub.s32 %s13, %s20
      %p48 = scmp.eq.s32.totalorder %s47, 0
      %s50 = sadd.s32 %s49, 1
      %s51 = scalar_select %p48, %s49, %s50
      %p54 = pneg %p48
      %p55 = scmp.eq.s32.totalorder %s13, 1
      %p56 = por %p54, %p55
      %p57 = scmp.ne.s32.totalorder %s49, %s52
      %p58 = scmp.eq.s32.totalorder %s13, 0
      %p59 = por %p57, %p58
      %p60 = scmp.ne.s32.totalorder %s49, %s52
      %p61 = scmp.eq.s32.totalorder %s18, 1
      %p62 = por %p60, %p61
      %p63 = scmp.ne.s32.totalorder %s52, %s53
      %p64 = scmp.eq.s32.totalorder %s18, 0
      %p65 = por %p63, %p64
      %p66 = scmp.ne.s32.totalorder %s52, %s53
      %p67 = scmp.eq.s32.totalorder %s19, 1
      %p68 = por %p66, %p67
      %p70 = scmp.ne.s32.totalorder %s53, %s69
      %p71 = scmp.eq.s32.totalorder %s19, 0
      %p72 = por %p70, %p71
      %p73 = scmp.le.s32.totalorder 1, %s13
      %p74 = scmp.lt.s32.totalorder %s13, 3
      %p75 = pnand %p73, %p74
      %p76 = pneg %p75
      // Predicated region
      $region9: #{tpu_custom_call.1} parent=5 // pred_check
        _
      $region10: #{tpu_custom_call.1} parent=5 // pred_check_branch
        %78 = sbr.rel (%p75) target = $region12
      $region11: #{tpu_custom_call.1} parent=5 // pred_region
        %s79 = ssub.s32 %s13, 1
      $region12: #{tpu_custom_call.1} parent=5 // pred_fallthru
        _
      %p80 = scmp.lt.s32.totalorder %s13, 2
      // Predicated region
      $region13: #{tpu_custom_call.1} parent=5 // pred_check
        %p81 = pneg %p80
      $region14: #{tpu_custom_call.1} parent=5 // pred_check_branch
        %83 = sbr.rel (%p81) target = $region16
      $region15: #{tpu_custom_call.1} parent=5 // pred_region
        // Predicated region
        $region17: #{tpu_custom_call.1} parent=15 // pred_check
          %p84 = pneg %p33
        $region18: #{tpu_custom_call.1} parent=15 // pred_check_branch
          %86 = sbr.rel (%p84) target = $region20
        $region19: #{tpu_custom_call.1} parent=15 // pred_region
          %s87 = sand.u32 %s23, 1
          %s88 = scalar_lea.sflag [#allocation5], %s87
          %s89 = sand.u32 %s23, 1
          %s90 = smul.addr %s89, 48
          %s91 = scalar_lea.vmem [#allocation4], %s90
          %s92 = smul.u32 3, %s13
          %94 = vsyncadd %s88, 0
          %s95 = smul.addr %s92, 2
          %s96 = smul.addr %s95, 8
          %s97 = scalar_lea.hbm %s0, %s96
          %s98 = sshll.u32 %s97, 4
          %s99 = int_to_ptr.hbm [resolvable:$true] %s98
          %s100 = sshll.u32 %s91, 4
          %s101 = int_to_ptr.vmem [resolvable:$true] %s100
          %106 = dma.hbm_to_vmem [thread:$0]  %s99, 768, %s101, %s88, 128, 128, 8
        $region20: #{tpu_custom_call.1} parent=15 // pred_fallthru
          _
      $region16: #{tpu_custom_call.1} parent=5 // pred_fallthru
        _
      %p107 = scmp.le.s32.totalorder 1, %s13
      %p108 = scmp.lt.s32.totalorder %s13, 3
      %p109 = pnand %p107, %p108
      %p110 = pneg %p109
      // Predicated region
      $region21: #{tpu_custom_call.1} parent=5 // pred_check
        _
      $region22: #{tpu_custom_call.1} parent=5 // pred_check_branch
        %112 = sbr.rel (%p109) target = $region24
      $region23: #{tpu_custom_call.1} parent=5 // pred_region
        %s113 = ssub.s32 %s13, 1
        %s114 = sand.u32 %s26, 1
        %s115 = scalar_lea.sflag [#allocation5], %s114
        %s116 = sand.u32 %s26, 1
        %s117 = smul.addr %s116, 48
        %s118 = scalar_lea.vmem [#allocation4], %s117
        // Predicated region
        $region25: #{tpu_custom_call.1} parent=23 // pred_check
          %p119 = pneg %p39
        $region26: #{tpu_custom_call.1} parent=23 // pred_check_branch
          %121 = sbr.rel (%p119) target = $region28
        $region27: #{tpu_custom_call.1} parent=23 // pred_region
          %123 = dma.done %s115, 768
        $region28: #{tpu_custom_call.1} parent=23 // pred_fallthru
          _
        %s124 = sand.u32 %s26, 1
        %s125 = scalar_lea.sflag [#allocation5], %s124
        %s126 = sand.u32 %s26, 1
        %s127 = smul.addr %s126, 48
        %s128 = scalar_lea.vmem [#allocation4], %s127
        %p129 = pneg %p39
        %p130 = pneg %p36
        %p131 = pneg %p65
        %p132 = pneg %p62
        %s133 = sand.u32 %s52, 1
        %s134 = scalar_lea.sflag [#allocation6], %s133
        %s135 = sand.u32 %s52, 1
        %s136 = smul.addr %s135, 48
        %s137 = scalar_lea.vmem [#allocation7], %s136
        %s138 = smul.u32 3, %s18
        %s139 = smul.u32 3, %s18
        %v140 = vld [vmem:[%s118] sm:$0xff]
        %v141 = vld [vmem:[%s118 + $0x8] sm:$0xff]
        %v142 = vld [vmem:[%s118 + $0x10] sm:$0xff]
        %v143 = vld [vmem:[%s118 + $0x18] sm:$0xff]
        %v144 = vld [vmem:[%s118 + $0x20] sm:$0xff]
        %v145 = vld [vmem:[%s118 + $0x28] sm:$0xff]
        %vm146 = vcmask 130048
        %147 = vst.msk [vmem:[#allocation2 + $0xf] sm:$0xff] %vm146, %v140
        %148 = vst.msk [vmem:[#allocation2 + $0x17] sm:$0xff] %vm146, %v141
        %149 = vst.msk [vmem:[#allocation2 + $0x3f] sm:$0xff] %vm146, %v142
        %150 = vst.msk [vmem:[#allocation2 + $0x47] sm:$0xff] %vm146, %v143
        %151 = vst.msk [vmem:[#allocation2 + $0x6f] sm:$0xff] %vm146, %v144
        %152 = vst.msk [vmem:[#allocation2 + $0x77] sm:$0xff] %vm146, %v145
        %vm153 = vcmask 123905
        %154 = vst.msk [vmem:[#allocation2 + $0xd] sm:$0x2] %vm153, %v140
        %155 = vst.msk [vmem:[#allocation2 + $0x3d] sm:$0x2] %vm153, %v142
        %156 = vst.msk [vmem:[#allocation2 + $0x6d] sm:$0x2] %vm153, %v144
        %vm157 = vcmask 129030
        %158 = vst.msk [vmem:[#allocation2 + $0x19] sm:$0x40] %vm157, %v141
        %159 = vst.msk [vmem:[#allocation2 + $0x49] sm:$0x40] %vm157, %v143
        %160 = vst.msk [vmem:[#allocation2 + $0x79] sm:$0x40] %vm157, %v145
        %vm161 = vcmask 124930
        %162 = vst.msk [vmem:[#allocation2 + $0xb] sm:$0x4] %vm161, %v140
        %163 = vst.msk [vmem:[#allocation2 + $0x3b] sm:$0x4] %vm161, %v142
        %164 = vst.msk [vmem:[#allocation2 + $0x6b] sm:$0x4] %vm161, %v144
        %vm165 = vcmask 128005
        %166 = vst.msk [vmem:[#allocation2 + $0x1b] sm:$0x20] %vm165, %v141
        %167 = vst.msk [vmem:[#allocation2 + $0x4b] sm:$0x20] %vm165, %v143
        %168 = vst.msk [vmem:[#allocation2 + $0x7b] sm:$0x20] %vm165, %v145
        %vm169 = vcmask 125955
        %170 = vst.msk [vmem:[#allocation2 + $0x9] sm:$0x8] %vm169, %v140
        %171 = vst.msk [vmem:[#allocation2 + $0x39] sm:$0x8] %vm169, %v142
        %172 = vst.msk [vmem:[#allocation2 + $0x69] sm:$0x8] %vm169, %v144
        %vm173 = vcmask 126980
        %174 = vst.msk [vmem:[#allocation2 + $0x1d] sm:$0x10] %vm173, %v141
        %175 = vst.msk [vmem:[#allocation2 + $0x4d] sm:$0x10] %vm173, %v143
        %176 = vst.msk [vmem:[#allocation2 + $0x7d] sm:$0x10] %vm173, %v145
        %177 = vst.msk [vmem:[#allocation2 + $0x7] sm:$0x10] %vm173, %v140
        %178 = vst.msk [vmem:[#allocation2 + $0x37] sm:$0x10] %vm173, %v142
        %179 = vst.msk [vmem:[#allocation2 + $0x67] sm:$0x10] %vm173, %v144
        %180 = vst.msk [vmem:[#allocation2 + $0x1f] sm:$0x8] %vm169, %v141
        %181 = vst.msk [vmem:[#allocation2 + $0x4f] sm:$0x8] %vm169, %v143
        %182 = vst.msk [vmem:[#allocation2 + $0x7f] sm:$0x8] %vm169, %v145
        %183 = vst.msk [vmem:[#allocation2 + $0x5] sm:$0x20] %vm165, %v140
        %184 = vst.msk [vmem:[#allocation2 + $0x35] sm:$0x20] %vm165, %v142
        %185 = vst.msk [vmem:[#allocation2 + $0x65] sm:$0x20] %vm165, %v144
        %186 = vst.msk [vmem:[#allocation2 + $0x21] sm:$0x4] %vm161, %v141
        %187 = vst.msk [vmem:[#allocation2 + $0x51] sm:$0x4] %vm161, %v143
        %188 = vst.msk [vmem:[#allocation2 + $0x81] sm:$0x4] %vm161, %v145
        %189 = vst.msk [vmem:[#allocation2 + $0x3] sm:$0x40] %vm157, %v140
        %190 = vst.msk [vmem:[#allocation2 + $0x33] sm:$0x40] %vm157, %v142
        %191 = vst.msk [vmem:[#allocation2 + $0x63] sm:$0x40] %vm157, %v144
        %192 = vst.msk [vmem:[#allocation2 + $0x23] sm:$0x2] %vm153, %v141
        %193 = vst.msk [vmem:[#allocation2 + $0x53] sm:$0x2] %vm153, %v143
        %194 = vst.msk [vmem:[#allocation2 + $0x83] sm:$0x2] %vm153, %v145
        %vm195 = vcmask 130055
        %196 = vst.msk [vmem:[#allocation2 + $0x1] sm:$0x80] %vm195, %v140
        %197 = vst.msk [vmem:[#allocation2 + $0x31] sm:$0x80] %vm195, %v142
        %198 = vst.msk [vmem:[#allocation2 + $0x61] sm:$0x80] %vm195, %v144
        %vm199 = vcmask 122880
        %200 = vst.msk [vmem:[#allocation2 + $0x25] sm:$0x1] %vm199, %v141
        %201 = vst.msk [vmem:[#allocation2 + $0x55] sm:$0x1] %vm199, %v143
        %202 = vst.msk [vmem:[#allocation2 + $0x85] sm:$0x1] %vm199, %v145
        %203 = vst.msk [vmem:[#allocation2 + $0x7] sm:$0x1] %vm199, %v141
        %204 = vst.msk [vmem:[#allocation2 + $0x37] sm:$0x1] %vm199, %v143
        %205 = vst.msk [vmem:[#allocation2 + $0x67] sm:$0x1] %vm199, %v145
        %206 = vst.msk [vmem:[#allocation2 + $0x1f] sm:$0x80] %vm195, %v140
        %207 = vst.msk [vmem:[#allocation2 + $0x4f] sm:$0x80] %vm195, %v142
        %208 = vst.msk [vmem:[#allocation2 + $0x7f] sm:$0x80] %vm195, %v144
        %209 = vst.msk [vmem:[#allocation2 + $0x5] sm:$0x2] %vm153, %v141
        %210 = vst.msk [vmem:[#allocation2 + $0x35] sm:$0x2] %vm153, %v143
        %211 = vst.msk [vmem:[#allocation2 + $0x65] sm:$0x2] %vm153, %v145
        %212 = vst.msk [vmem:[#allocation2 + $0x21] sm:$0x40] %vm157, %v140
        %213 = vst.msk [vmem:[#allocation2 + $0x51] sm:$0x40] %vm157, %v142
        %214 = vst.msk [vmem:[#allocation2 + $0x81] sm:$0x40] %vm157, %v144
        %215 = vst.msk [vmem:[#allocation2 + $0x3] sm:$0x4] %vm161, %v141
        %216 = vst.msk [vmem:[#allocation2 + $0x33] sm:$0x4] %vm161, %v143
        %217 = vst.msk [vmem:[#allocation2 + $0x63] sm:$0x4] %vm161, %v145
        %218 = vst.msk [vmem:[#allocation2 + $0x23] sm:$0x20] %vm165, %v140
        %219 = vst.msk [vmem:[#allocation2 + $0x53] sm:$0x20] %vm165, %v142
        %220 = vst.msk [vmem:[#allocation2 + $0x83] sm:$0x20] %vm165, %v144
        %221 = vst.msk [vmem:[#allocation2 + $0x1] sm:$0x8] %vm169, %v141
        %222 = vst.msk [vmem:[#allocation2 + $0x31] sm:$0x8] %vm169, %v143
        %223 = vst.msk [vmem:[#allocation2 + $0x61] sm:$0x8] %vm169, %v145
        %224 = vst.msk [vmem:[#allocation2 + $0x25] sm:$0x10] %vm173, %v140
        %225 = vst.msk [vmem:[#allocation2 + $0x55] sm:$0x10] %vm173, %v142
        %226 = vst.msk [vmem:[#allocation2 + $0x85] sm:$0x10] %vm173, %v144
        %227 = vst.msk [vmem:[#allocation2 - $0x1] sm:$0x10] %vm173, %v141
        %228 = vst.msk [vmem:[#allocation2 + $0x2f] sm:$0x10] %vm173, %v143
        %229 = vst.msk [vmem:[#allocation2 + $0x5f] sm:$0x10] %vm173, %v145
        %230 = vst.msk [vmem:[#allocation2 + $0x27] sm:$0x8] %vm169, %v140
        %231 = vst.msk [vmem:[#allocation2 + $0x57] sm:$0x8] %vm169, %v142
        %232 = vst.msk [vmem:[#allocation2 + $0x87] sm:$0x8] %vm169, %v144
        %233 = vst.msk [vmem:[#allocation2 - $0x3] sm:$0x20] %vm165, %v141
        %234 = vst.msk [vmem:[#allocation2 + $0x2d] sm:$0x20] %vm165, %v143
        %235 = vst.msk [vmem:[#allocation2 + $0x5d] sm:$0x20] %vm165, %v145
        %236 = vst.msk [vmem:[#allocation2 + $0x29] sm:$0x4] %vm161, %v140
        %237 = vst.msk [vmem:[#allocation2 + $0x59] sm:$0x4] %vm161, %v142
        %238 = vst.msk [vmem:[#allocation2 + $0x89] sm:$0x4] %vm161, %v144
        %239 = vst.msk [vmem:[#allocation2 - $0x5] sm:$0x40] %vm157, %v141
        %240 = vst.msk [vmem:[#allocation2 + $0x2b] sm:$0x40] %vm157, %v143
        %241 = vst.msk [vmem:[#allocation2 + $0x5b] sm:$0x40] %vm157, %v145
        %242 = vst.msk [vmem:[#allocation2 + $0x2b] sm:$0x2] %vm153, %v140
        %243 = vst.msk [vmem:[#allocation2 + $0x5b] sm:$0x2] %vm153, %v142
        %244 = vst.msk [vmem:[#allocation2 + $0x8b] sm:$0x2] %vm153, %v144
        %245 = vst.msk [vmem:[#allocation2 - $0x7] sm:$0x80] %vm195, %v141
        %246 = vst.msk [vmem:[#allocation2 + $0x29] sm:$0x80] %vm195, %v143
        %247 = vst.msk [vmem:[#allocation2 + $0x59] sm:$0x80] %vm195, %v145
        %248 = vst.msk [vmem:[#allocation2 + $0x2d] sm:$0x1] %vm199, %v140
        %249 = vst.msk [vmem:[#allocation2 + $0x5d] sm:$0x1] %vm199, %v142
        %250 = vst.msk [vmem:[#allocation2 + $0x8d] sm:$0x1] %vm199, %v144
        %v251 = vld [vmem:[#allocation2] sm:$0xff]
        %v252 = vld [vmem:[#allocation2 + $0x8] sm:$0xff]
        %v253 = vld [vmem:[#allocation2 + $0x10] sm:$0xff]
        %v254 = vld [vmem:[#allocation2 + $0x18] sm:$0xff]
        %v255 = vld [vmem:[#allocation2 + $0x20] sm:$0xff]
        %v256 = vld [vmem:[#allocation2 + $0x28] sm:$0x3f]
        %v257 = vld [vmem:[#allocation2 + $0x30] sm:$0xff]
        %v258 = vld [vmem:[#allocation2 + $0x38] sm:$0xff]
        %v259 = vld [vmem:[#allocation2 + $0x40] sm:$0xff]
        %v260 = vld [vmem:[#allocation2 + $0x48] sm:$0xff]
        %v261 = vld [vmem:[#allocation2 + $0x50] sm:$0xff]
        %v262 = vld [vmem:[#allocation2 + $0x58] sm:$0x3f]
        %v263 = vld [vmem:[#allocation2 + $0x60] sm:$0xff]
        %v264 = vld [vmem:[#allocation2 + $0x68] sm:$0xff]
        %v265 = vld [vmem:[#allocation2 + $0x70] sm:$0xff]
        %v266 = vld [vmem:[#allocation2 + $0x78] sm:$0xff]
        %v267 = vld [vmem:[#allocation2 + $0x80] sm:$0xff]
        %v268 = vld [vmem:[#allocation2 + $0x88] sm:$0x3f]
        %v269 = vmul.f32 %v251, 0.0
        %v270 = vmul.f32 %v252, 0.0
        %v271 = vmul.f32 %v257, 0.0
        %v272 = vmul.f32 %v258, 0.0
        %v273 = vmul.f32 %v263, 0.0
        %v274 = vmul.f32 %v264, 0.0
        %v275 = vmul.f32 %v253, 0.0
        %v276 = vmul.f32 %v259, 0.0
        %v277 = vmul.f32 %v265, 0.0
        %vm287 = vcmask 1046528
        %v288 = vrot.slane %v269, 1
        %v289 = vrot.slane %v270, 1
        %v290 = vsel %vm287, %v288, %v289
        %v291 = vrot.slane %v275, 1
        %v292 = vsel %vm287, %v289, %v291
        %v293 = vrot.slane %v271, 1
        %v294 = vrot.slane %v272, 1
        %v295 = vsel %vm287, %v293, %v294
        %v296 = vrot.slane %v276, 1
        %v297 = vsel %vm287, %v294, %v296
        %v298 = vrot.slane %v273, 1
        %v299 = vrot.slane %v274, 1
        %v300 = vsel %vm287, %v298, %v299
        %v301 = vrot.slane %v277, 1
        %v302 = vsel %vm287, %v299, %v301
        %v309 = vadd.f32 %v269, %v290
        %v310 = vadd.f32 %v270, %v292
        %v311 = vadd.f32 %v271, %v295
        %v312 = vadd.f32 %v272, %v297
        %v313 = vadd.f32 %v273, %v300
        %v314 = vadd.f32 %v274, %v302
        %vm315 = vcmask 1045504
        %v316 = vrot.slane %v269, 2
        %v317 = vrot.slane %v270, 2
        %v318 = vsel %vm315, %v316, %v317
        %v319 = vrot.slane %v275, 2
        %v320 = vsel %vm315, %v317, %v319
        %v321 = vrot.slane %v271, 2
        %v322 = vrot.slane %v272, 2
        %v323 = vsel %vm315, %v321, %v322
        %v324 = vrot.slane %v276, 2
        %v325 = vsel %vm315, %v322, %v324
        %v326 = vrot.slane %v273, 2
        %v327 = vrot.slane %v274, 2
        %v328 = vsel %vm315, %v326, %v327
        %v329 = vrot.slane %v277, 2
        %v330 = vsel %vm315, %v327, %v329
        %v337 = vadd.f32 %v309, %v318
        %v338 = vadd.f32 %v310, %v320
        %v339 = vadd.f32 %v311, %v323
        %v340 = vadd.f32 %v312, %v325
        %v341 = vadd.f32 %v313, %v328
        %v342 = vadd.f32 %v314, %v330
        %v343 = vmul.f32 %v251, 4.4611344e-05
        %v344 = vmul.f32 %v252, 4.4611344e-05
        %v345 = vmul.f32 %v253, 4.4611344e-05
        %v346 = vmul.f32 %v257, 4.4611344e-05
        %v347 = vmul.f32 %v258, 4.4611344e-05
        %v348 = vmul.f32 %v259, 4.4611344e-05
        %v349 = vmul.f32 %v263, 4.4611344e-05
        %v350 = vmul.f32 %v264, 4.4611344e-05
        %v351 = vmul.f32 %v265, 4.4611344e-05
        %vm361 = vcmask 1044480
        %v362 = vrot.slane %v343, 3
        %v363 = vrot.slane %v344, 3
        %v364 = vsel %vm361, %v362, %v363
        %v365 = vrot.slane %v345, 3
        %v366 = vsel %vm361, %v363, %v365
        %v367 = vrot.slane %v346, 3
        %v368 = vrot.slane %v347, 3
        %v369 = vsel %vm361, %v367, %v368
        %v370 = vrot.slane %v348, 3
        %v371 = vsel %vm361, %v368, %v370
        %v372 = vrot.slane %v349, 3
        %v373 = vrot.slane %v350, 3
        %v374 = vsel %vm361, %v372, %v373
        %v375 = vrot.slane %v351, 3
        %v376 = vsel %vm361, %v373, %v375
        %v383 = vadd.f32 %v337, %v364
        %v384 = vadd.f32 %v338, %v366
        %v385 = vadd.f32 %v339, %v369
        %v386 = vadd.f32 %v340, %v371
        %v387 = vadd.f32 %v341, %v374
        %v388 = vadd.f32 %v342, %v376
        %v389 = vmul.f32 %v251, 0.00016009477
        %v390 = vmul.f32 %v252, 0.00016009477
        %v391 = vmul.f32 %v253, 0.00016009477
        %v392 = vmul.f32 %v257, 0.00016009477
        %v393 = vmul.f32 %v258, 0.00016009477
        %v394 = vmul.f32 %v259, 0.00016009477
        %v395 = vmul.f32 %v263, 0.00016009477
        %v396 = vmul.f32 %v264, 0.00016009477
        %v397 = vmul.f32 %v265, 0.00016009477
        %vm407 = vcmask 1043456
        %v408 = vrot.slane %v389, 4
        %v409 = vrot.slane %v390, 4
        %v410 = vsel %vm407, %v408, %v409
        %v411 = vrot.slane %v391, 4
        %v412 = vsel %vm407, %v409, %v411
        %v413 = vrot.slane %v392, 4
        %v414 = vrot.slane %v393, 4
        %v415 = vsel %vm407, %v413, %v414
        %v416 = vrot.slane %v394, 4
        %v417 = vsel %vm407, %v414, %v416
        %v418 = vrot.slane %v395, 4
        %v419 = vrot.slane %v396, 4
        %v420 = vsel %vm407, %v418, %v419
        %v421 = vrot.slane %v397, 4
        %v422 = vsel %vm407, %v419, %v421
        %v429 = vadd.f32 %v383, %v410
        %v430 = vadd.f32 %v384, %v412
        %v431 = vadd.f32 %v385, %v415
        %v432 = vadd.f32 %v386, %v417
        %v433 = vadd.f32 %v387, %v420
        %v434 = vadd.f32 %v388, %v422
        %v435 = vmul.f32 %v251, 0.0005141076
        %v436 = vmul.f32 %v252, 0.0005141076
        %v437 = vmul.f32 %v253, 0.0005141076
        %v438 = vmul.f32 %v257, 0.0005141076
        %v439 = vmul.f32 %v258, 0.0005141076
        %v440 = vmul.f32 %v259, 0.0005141076
        %v441 = vmul.f32 %v263, 0.0005141076
        %v442 = vmul.f32 %v264, 0.0005141076
        %v443 = vmul.f32 %v265, 0.0005141076
        %vm453 = vcmask 1042432
        %v454 = vrot.slane %v435, 5
        %v455 = vrot.slane %v436, 5
        %v456 = vsel %vm453, %v454, %v455
        %v457 = vrot.slane %v437, 5
        %v458 = vsel %vm453, %v455, %v457
        %v459 = vrot.slane %v438, 5
        %v460 = vrot.slane %v439, 5
        %v461 = vsel %vm453, %v459, %v460
        %v462 = vrot.slane %v440, 5
        %v463 = vsel %vm453, %v460, %v462
        %v464 = vrot.slane %v441, 5
        %v465 = vrot.slane %v442, 5
        %v466 = vsel %vm453, %v464, %v465
        %v467 = vrot.slane %v443, 5
        %v468 = vsel %vm453, %v465, %v467
        %v475 = vadd.f32 %v429, %v456
        %v476 = vadd.f32 %v430, %v458
        %v477 = vadd.f32 %v431, %v461
        %v478 = vadd.f32 %v432, %v463
        %v479 = vadd.f32 %v433, %v466
        %v480 = vadd.f32 %v434, %v468
        %v481 = vmul.f32 %v251, 0.0014773248
        %v482 = vmul.f32 %v252, 0.0014773248
        %v483 = vmul.f32 %v253, 0.0014773248
        %v484 = vmul.f32 %v257, 0.0014773248
        %v485 = vmul.f32 %v258, 0.0014773248
        %v486 = vmul.f32 %v259, 0.0014773248
        %v487 = vmul.f32 %v263, 0.0014773248
        %v488 = vmul.f32 %v264, 0.0014773248
        %v489 = vmul.f32 %v265, 0.0014773248
        %vm499 = vcmask 1041408
        %v500 = vrot.slane %v481, 6
        %v501 = vrot.slane %v482, 6
        %v502 = vsel %vm499, %v500, %v501
        %v503 = vrot.slane %v483, 6
        %v504 = vsel %vm499, %v501, %v503
        %v505 = vrot.slane %v484, 6
        %v506 = vrot.slane %v485, 6
        %v507 = vsel %vm499, %v505, %v506
        %v508 = vrot.slane %v486, 6
        %v509 = vsel %vm499, %v506, %v508
        %v510 = vrot.slane %v487, 6
        %v511 = vrot.slane %v488, 6
        %v512 = vsel %vm499, %v510, %v511
        %v513 = vrot.slane %v489, 6
        %v514 = vsel %vm499, %v511, %v513
        %v521 = vadd.f32 %v475, %v502
        %v522 = vadd.f32 %v476, %v504
        %v523 = vadd.f32 %v477, %v507
        %v524 = vadd.f32 %v478, %v509
        %v525 = vadd.f32 %v479, %v512
        %v526 = vadd.f32 %v480, %v514
        %v527 = vmul.f32 %v251, 0.00379877
        %v528 = vmul.f32 %v252, 0.00379877
        %v529 = vmul.f32 %v253, 0.00379877
        %v530 = vmul.f32 %v257, 0.00379877
        %v531 = vmul.f32 %v258, 0.00379877
        %v532 = vmul.f32 %v259, 0.00379877
        %v533 = vmul.f32 %v263, 0.00379877
        %v534 = vmul.f32 %v264, 0.00379877
        %v535 = vmul.f32 %v265, 0.00379877
        %vm545 = vcmask 1040384
        %v546 = vrot.slane %v527, 7
        %v547 = vrot.slane %v528, 7
        %v548 = vsel %vm545, %v546, %v547
        %v549 = vrot.slane %v529, 7
        %v550 = vsel %vm545, %v547, %v549
        %v551 = vrot.slane %v530, 7
        %v552 = vrot.slane %v531, 7
        %v553 = vsel %vm545, %v551, %v552
        %v554 = vrot.slane %v532, 7
        %v555 = vsel %vm545, %v552, %v554
        %v556 = vrot.slane %v533, 7
        %v557 = vrot.slane %v534, 7
        %v558 = vsel %vm545, %v556, %v557
        %v559 = vrot.slane %v535, 7
        %v560 = vsel %vm545, %v557, %v559
        %v567 = vadd.f32 %v521, %v548
        %v568 = vadd.f32 %v522, %v550
        %v569 = vadd.f32 %v523, %v553
        %v570 = vadd.f32 %v524, %v555
        %v571 = vadd.f32 %v525, %v558
        %v572 = vadd.f32 %v526, %v560
        %v573 = vmul.f32 %v252, 0.008740878
        %v574 = vmul.f32 %v253, 0.008740878
        %v575 = vmul.f32 %v258, 0.008740878
        %v576 = vmul.f32 %v259, 0.008740878
        %v577 = vmul.f32 %v264, 0.008740878
        %v578 = vmul.f32 %v265, 0.008740878
        %v579 = vadd.f32 %v567, %v573
        %v580 = vadd.f32 %v568, %v574
        %v581 = vadd.f32 %v569, %v575
        %v582 = vadd.f32 %v570, %v576
        %v583 = vadd.f32 %v571, %v577
        %v584 = vadd.f32 %v572, %v578
        %v585 = vmul.f32 %v252, 0.0179975
        %v586 = vmul.f32 %v253, 0.0179975
        %v587 = vmul.f32 %v254, 0.0179975
        %v588 = vmul.f32 %v258, 0.0179975
        %v589 = vmul.f32 %v259, 0.0179975
        %v590 = vmul.f32 %v260, 0.0179975
        %v591 = vmul.f32 %v264, 0.0179975
        %v592 = vmul.f32 %v265, 0.0179975
        %v593 = vmul.f32 %v266, 0.0179975
        %v603 = vrot.slane %v585, 1
        %v604 = vrot.slane %v586, 1
        %v605 = vsel %vm287, %v603, %v604
        %v606 = vrot.slane %v587, 1
        %v607 = vsel %vm287, %v604, %v606
        %v608 = vrot.slane %v588, 1
        %v609 = vrot.slane %v589, 1
        %v610 = vsel %vm287, %v608, %v609
        %v611 = vrot.slane %v590, 1
        %v612 = vsel %vm287, %v609, %v611
        %v613 = vrot.slane %v591, 1
        %v614 = vrot.slane %v592, 1
        %v615 = vsel %vm287, %v613, %v614
        %v616 = vrot.slane %v593, 1
        %v617 = vsel %vm287, %v614, %v616
        %v624 = vadd.f32 %v579, %v605
        %v625 = vadd.f32 %v580, %v607
        %v626 = vadd.f32 %v581, %v610
        %v627 = vadd.f32 %v582, %v612
        %v628 = vadd.f32 %v583, %v615
        %v629 = vadd.f32 %v584, %v617
        %v630 = vmul.f32 %v252, 0.03315999
        %v631 = vmul.f32 %v253, 0.03315999
        %v632 = vmul.f32 %v254, 0.03315999
        %v633 = vmul.f32 %v258, 0.03315999
        %v634 = vmul.f32 %v259, 0.03315999
        %v635 = vmul.f32 %v260, 0.03315999
        %v636 = vmul.f32 %v264, 0.03315999
        %v637 = vmul.f32 %v265, 0.03315999
        %v638 = vmul.f32 %v266, 0.03315999
        %v648 = vrot.slane %v630, 2
        %v649 = vrot.slane %v631, 2
        %v650 = vsel %vm315, %v648, %v649
        %v651 = vrot.slane %v632, 2
        %v652 = vsel %vm315, %v649, %v651
        %v653 = vrot.slane %v633, 2
        %v654 = vrot.slane %v634, 2
        %v655 = vsel %vm315, %v653, %v654
        %v656 = vrot.slane %v635, 2
        %v657 = vsel %vm315, %v654, %v656
        %v658 = vrot.slane %v636, 2
        %v659 = vrot.slane %v637, 2
        %v660 = vsel %vm315, %v658, %v659
        %v661 = vrot.slane %v638, 2
        %v662 = vsel %vm315, %v659, %v661
        %v669 = vadd.f32 %v624, %v650
        %v670 = vadd.f32 %v625, %v652
        %v671 = vadd.f32 %v626, %v655
        %v672 = vadd.f32 %v627, %v657
        %v673 = vadd.f32 %v628, %v660
        %v674 = vadd.f32 %v629, %v662
        %v675 = vmul.f32 %v252, 0.054671578
        %v676 = vmul.f32 %v253, 0.054671578
        %v677 = vmul.f32 %v254, 0.054671578
        %v678 = vmul.f32 %v258, 0.054671578
        %v679 = vmul.f32 %v259, 0.054671578
        %v680 = vmul.f32 %v260, 0.054671578
        %v681 = vmul.f32 %v264, 0.054671578
        %v682 = vmul.f32 %v265, 0.054671578
        %v683 = vmul.f32 %v266, 0.054671578
        %v693 = vrot.slane %v675, 3
        %v694 = vrot.slane %v676, 3
        %v695 = vsel %vm361, %v693, %v694
        %v696 = vrot.slane %v677, 3
        %v697 = vsel %vm361, %v694, %v696
        %v698 = vrot.slane %v678, 3
        %v699 = vrot.slane %v679, 3
        %v700 = vsel %vm361, %v698, %v699
        %v701 = vrot.slane %v680, 3
        %v702 = vsel %vm361, %v699, %v701
        %v703 = vrot.slane %v681, 3
        %v704 = vrot.slane %v682, 3
        %v705 = vsel %vm361, %v703, %v704
        %v706 = vrot.slane %v683, 3
        %v707 = vsel %vm361, %v704, %v706
        %v714 = vadd.f32 %v669, %v695
        %v715 = vadd.f32 %v670, %v697
        %v716 = vadd.f32 %v671, %v700
        %v717 = vadd.f32 %v672, %v702
        %v718 = vadd.f32 %v673, %v705
        %v719 = vadd.f32 %v674, %v707
        %v720 = vmul.f32 %v252, 0.0806592
        %v721 = vmul.f32 %v253, 0.0806592
        %v722 = vmul.f32 %v254, 0.0806592
        %v723 = vmul.f32 %v258, 0.0806592
        %v724 = vmul.f32 %v259, 0.0806592
        %v725 = vmul.f32 %v260, 0.0806592
        %v726 = vmul.f32 %v264, 0.0806592
        %v727 = vmul.f32 %v265, 0.0806592
        %v728 = vmul.f32 %v266, 0.0806592
        %v738 = vrot.slane %v720, 4
        %v739 = vrot.slane %v721, 4
        %v740 = vsel %vm407, %v738, %v739
        %v741 = vrot.slane %v722, 4
        %v742 = vsel %vm407, %v739, %v741
        %v743 = vrot.slane %v723, 4
        %v744 = vrot.slane %v724, 4
        %v745 = vsel %vm407, %v743, %v744
        %v746 = vrot.slane %v725, 4
        %v747 = vsel %vm407, %v744, %v746
        %v748 = vrot.slane %v726, 4
        %v749 = vrot.slane %v727, 4
        %v750 = vsel %vm407, %v748, %v749
        %v751 = vrot.slane %v728, 4
        %v752 = vsel %vm407, %v749, %v751
        %v759 = vadd.f32 %v714, %v740
        %v760 = vadd.f32 %v715, %v742
        %v761 = vadd.f32 %v716, %v745
        %v762 = vadd.f32 %v717, %v747
        %v763 = vadd.f32 %v718, %v750
        %v764 = vadd.f32 %v719, %v752
        %v765 = vmul.f32 %v252, 0.106485695
        %v766 = vmul.f32 %v253, 0.106485695
        %v767 = vmul.f32 %v254, 0.106485695
        %v768 = vmul.f32 %v258, 0.106485695
        %v769 = vmul.f32 %v259, 0.106485695
        %v770 = vmul.f32 %v260, 0.106485695
        %v771 = vmul.f32 %v264, 0.106485695
        %v772 = vmul.f32 %v265, 0.106485695
        %v773 = vmul.f32 %v266, 0.106485695
        %v783 = vrot.slane %v765, 5
        %v784 = vrot.slane %v766, 5
        %v785 = vsel %vm453, %v783, %v784
        %v786 = vrot.slane %v767, 5
        %v787 = vsel %vm453, %v784, %v786
        %v788 = vrot.slane %v768, 5
        %v789 = vrot.slane %v769, 5
        %v790 = vsel %vm453, %v788, %v789
        %v791 = vrot.slane %v770, 5
        %v792 = vsel %vm453, %v789, %v791
        %v793 = vrot.slane %v771, 5
        %v794 = vrot.slane %v772, 5
        %v795 = vsel %vm453, %v793, %v794
        %v796 = vrot.slane %v773, 5
        %v797 = vsel %vm453, %v794, %v796
        %v804 = vadd.f32 %v759, %v785
        %v805 = vadd.f32 %v760, %v787
        %v806 = vadd.f32 %v761, %v790
        %v807 = vadd.f32 %v762, %v792
        %v808 = vadd.f32 %v763, %v795
        %v809 = vadd.f32 %v764, %v797
        %v810 = vmul.f32 %v252, 0.12579799
        %v811 = vmul.f32 %v253, 0.12579799
        %v812 = vmul.f32 %v254, 0.12579799
        %v813 = vmul.f32 %v258, 0.12579799
        %v814 = vmul.f32 %v259, 0.12579799
        %v815 = vmul.f32 %v260, 0.12579799
        %v816 = vmul.f32 %v264, 0.12579799
        %v817 = vmul.f32 %v265, 0.12579799
        %v818 = vmul.f32 %v266, 0.12579799
        %v828 = vrot.slane %v810, 6
        %v829 = vrot.slane %v811, 6
        %v830 = vsel %vm499, %v828, %v829
        %v831 = vrot.slane %v812, 6
        %v832 = vsel %vm499, %v829, %v831
        %v833 = vrot.slane %v813, 6
        %v834 = vrot.slane %v814, 6
        %v835 = vsel %vm499, %v833, %v834
        %v836 = vrot.slane %v815, 6
        %v837 = vsel %vm499, %v834, %v836
        %v838 = vrot.slane %v816, 6
        %v839 = vrot.slane %v817, 6
        %v840 = vsel %vm499, %v838, %v839
        %v841 = vrot.slane %v818, 6
        %v842 = vsel %vm499, %v839, %v841
        %v849 = vadd.f32 %v804, %v830
        %v850 = vadd.f32 %v805, %v832
        %v851 = vadd.f32 %v806, %v835
        %v852 = vadd.f32 %v807, %v837
        %v853 = vadd.f32 %v808, %v840
        %v854 = vadd.f32 %v809, %v842
        %v855 = vmul.f32 %v252, 0.13298453
        %v856 = vmul.f32 %v253, 0.13298453
        %v857 = vmul.f32 %v254, 0.13298453
        %v858 = vmul.f32 %v258, 0.13298453
        %v859 = vmul.f32 %v259, 0.13298453
        %v860 = vmul.f32 %v260, 0.13298453
        %v861 = vmul.f32 %v264, 0.13298453
        %v862 = vmul.f32 %v265, 0.13298453
        %v863 = vmul.f32 %v266, 0.13298453
        %v873 = vrot.slane %v855, 7
        %v874 = vrot.slane %v856, 7
        %v875 = vsel %vm545, %v873, %v874
        %v876 = vrot.slane %v857, 7
        %v877 = vsel %vm545, %v874, %v876
        %v878 = vrot.slane %v858, 7
        %v879 = vrot.slane %v859, 7
        %v880 = vsel %vm545, %v878, %v879
        %v881 = vrot.slane %v860, 7
        %v882 = vsel %vm545, %v879, %v881
        %v883 = vrot.slane %v861, 7
        %v884 = vrot.slane %v862, 7
        %v885 = vsel %vm545, %v883, %v884
        %v886 = vrot.slane %v863, 7
        %v887 = vsel %vm545, %v884, %v886
        %v894 = vadd.f32 %v849, %v875
        %v895 = vadd.f32 %v850, %v877
        %v896 = vadd.f32 %v851, %v880
        %v897 = vadd.f32 %v852, %v882
        %v898 = vadd.f32 %v853, %v885
        %v899 = vadd.f32 %v854, %v887
        %v900 = vadd.f32 %v894, %v811
        %v901 = vadd.f32 %v895, %v812
        %v902 = vadd.f32 %v896, %v814
        %v903 = vadd.f32 %v897, %v815
        %v904 = vadd.f32 %v898, %v817
        %v905 = vadd.f32 %v899, %v818
        %v906 = vmul.f32 %v255, 0.106485695
        %v907 = vmul.f32 %v261, 0.106485695
        %v908 = vmul.f32 %v267, 0.106485695
        %v912 = vrot.slane %v766, 1
        %v913 = vrot.slane %v767, 1
        %v914 = vsel %vm287, %v912, %v913
        %v915 = vrot.slane %v906, 1
        %v916 = vsel %vm287, %v913, %v915
        %v917 = vrot.slane %v769, 1
        %v918 = vrot.slane %v770, 1
        %v919 = vsel %vm287, %v917, %v918
        %v920 = vrot.slane %v907, 1
        %v921 = vsel %vm287, %v918, %v920
        %v922 = vrot.slane %v772, 1
        %v923 = vrot.slane %v773, 1
        %v924 = vsel %vm287, %v922, %v923
        %v925 = vrot.slane %v908, 1
        %v926 = vsel %vm287, %v923, %v925
        %v933 = vadd.f32 %v900, %v914
        %v934 = vadd.f32 %v901, %v916
        %v935 = vadd.f32 %v902, %v919
        %v936 = vadd.f32 %v903, %v921
        %v937 = vadd.f32 %v904, %v924
        %v938 = vadd.f32 %v905, %v926
        %v939 = vmul.f32 %v255, 0.0806592
        %v940 = vmul.f32 %v261, 0.0806592
        %v941 = vmul.f32 %v267, 0.0806592
        %v945 = vrot.slane %v721, 2
        %v946 = vrot.slane %v722, 2
        %v947 = vsel %vm315, %v945, %v946
        %v948 = vrot.slane %v939, 2
        %v949 = vsel %vm315, %v946, %v948
        %v950 = vrot.slane %v724, 2
        %v951 = vrot.slane %v725, 2
        %v952 = vsel %vm315, %v950, %v951
        %v953 = vrot.slane %v940, 2
        %v954 = vsel %vm315, %v951, %v953
        %v955 = vrot.slane %v727, 2
        %v956 = vrot.slane %v728, 2
        %v957 = vsel %vm315, %v955, %v956
        %v958 = vrot.slane %v941, 2
        %v959 = vsel %vm315, %v956, %v958
        %v966 = vadd.f32 %v933, %v947
        %v967 = vadd.f32 %v934, %v949
        %v968 = vadd.f32 %v935, %v952
        %v969 = vadd.f32 %v936, %v954
        %v970 = vadd.f32 %v937, %v957
        %v971 = vadd.f32 %v938, %v959
        %v972 = vmul.f32 %v255, 0.054671578
        %v973 = vmul.f32 %v261, 0.054671578
        %v974 = vmul.f32 %v267, 0.054671578
        %v978 = vrot.slane %v972, 3
        %v979 = vsel %vm361, %v696, %v978
        %v980 = vrot.slane %v973, 3
        %v981 = vsel %vm361, %v701, %v980
        %v982 = vrot.slane %v974, 3
        %v983 = vsel %vm361, %v706, %v982
        %v987 = vadd.f32 %v966, %v697
        %v988 = vadd.f32 %v967, %v979
        %v989 = vadd.f32 %v968, %v702
        %v990 = vadd.f32 %v969, %v981
        %v991 = vadd.f32 %v970, %v707
        %v992 = vadd.f32 %v971, %v983
        %v993 = vmul.f32 %v255, 0.03315999
        %v994 = vmul.f32 %v261, 0.03315999
        %v995 = vmul.f32 %v267, 0.03315999
        %v999 = vrot.slane %v631, 4
        %v1000 = vrot.slane %v632, 4
        %v1001 = vsel %vm407, %v999, %v1000
        %v1002 = vrot.slane %v993, 4
        %v1003 = vsel %vm407, %v1000, %v1002
        %v1004 = vrot.slane %v634, 4
        %v1005 = vrot.slane %v635, 4
        %v1006 = vsel %vm407, %v1004, %v1005
        %v1007 = vrot.slane %v994, 4
        %v1008 = vsel %vm407, %v1005, %v1007
        %v1009 = vrot.slane %v637, 4
        %v1010 = vrot.slane %v638, 4
        %v1011 = vsel %vm407, %v1009, %v1010
        %v1012 = vrot.slane %v995, 4
        %v1013 = vsel %vm407, %v1010, %v1012
        %v1020 = vadd.f32 %v987, %v1001
        %v1021 = vadd.f32 %v988, %v1003
        %v1022 = vadd.f32 %v989, %v1006
        %v1023 = vadd.f32 %v990, %v1008
        %v1024 = vadd.f32 %v991, %v1011
        %v1025 = vadd.f32 %v992, %v1013
        %v1026 = vmul.f32 %v255, 0.0179975
        %v1027 = vmul.f32 %v261, 0.0179975
        %v1028 = vmul.f32 %v267, 0.0179975
        %v1032 = vrot.slane %v586, 5
        %v1033 = vrot.slane %v587, 5
        %v1034 = vsel %vm453, %v1032, %v1033
        %v1035 = vrot.slane %v1026, 5
        %v1036 = vsel %vm453, %v1033, %v1035
        %v1037 = vrot.slane %v589, 5
        %v1038 = vrot.slane %v590, 5
        %v1039 = vsel %vm453, %v1037, %v1038
        %v1040 = vrot.slane %v1027, 5
        %v1041 = vsel %vm453, %v1038, %v1040
        %v1042 = vrot.slane %v592, 5
        %v1043 = vrot.slane %v593, 5
        %v1044 = vsel %vm453, %v1042, %v1043
        %v1045 = vrot.slane %v1028, 5
        %v1046 = vsel %vm453, %v1043, %v1045
        %v1053 = vadd.f32 %v1020, %v1034
        %v1054 = vadd.f32 %v1021, %v1036
        %v1055 = vadd.f32 %v1022, %v1039
        %v1056 = vadd.f32 %v1023, %v1041
        %v1057 = vadd.f32 %v1024, %v1044
        %v1058 = vadd.f32 %v1025, %v1046
        %v1059 = vmul.f32 %v254, 0.008740878
        %v1060 = vmul.f32 %v255, 0.008740878
        %v1061 = vmul.f32 %v260, 0.008740878
        %v1062 = vmul.f32 %v261, 0.008740878
        %v1063 = vmul.f32 %v266, 0.008740878
        %v1064 = vmul.f32 %v267, 0.008740878
        %v1074 = vrot.slane %v574, 6
        %v1075 = vrot.slane %v1059, 6
        %v1076 = vsel %vm499, %v1074, %v1075
        %v1077 = vrot.slane %v1060, 6
        %v1078 = vsel %vm499, %v1075, %v1077
        %v1079 = vrot.slane %v576, 6
        %v1080 = vrot.slane %v1061, 6
        %v1081 = vsel %vm499, %v1079, %v1080
        %v1082 = vrot.slane %v1062, 6
        %v1083 = vsel %vm499, %v1080, %v1082
        %v1084 = vrot.slane %v578, 6
        %v1085 = vrot.slane %v1063, 6
        %v1086 = vsel %vm499, %v1084, %v1085
        %v1087 = vrot.slane %v1064, 6
        %v1088 = vsel %vm499, %v1085, %v1087
        %v1095 = vadd.f32 %v1053, %v1076
        %v1096 = vadd.f32 %v1054, %v1078
        %v1097 = vadd.f32 %v1055, %v1081
        %v1098 = vadd.f32 %v1056, %v1083
        %v1099 = vadd.f32 %v1057, %v1086
        %v1100 = vadd.f32 %v1058, %v1088
        %v1101 = vmul.f32 %v254, 0.00379877
        %v1102 = vmul.f32 %v255, 0.00379877
        %v1103 = vmul.f32 %v260, 0.00379877
        %v1104 = vmul.f32 %v261, 0.00379877
        %v1105 = vmul.f32 %v266, 0.00379877
        %v1106 = vmul.f32 %v267, 0.00379877
        %v1113 = vrot.slane %v1101, 7
        %v1114 = vsel %vm545, %v549, %v1113
        %v1115 = vrot.slane %v1102, 7
        %v1116 = vsel %vm545, %v1113, %v1115
        %v1117 = vrot.slane %v1103, 7
        %v1118 = vsel %vm545, %v554, %v1117
        %v1119 = vrot.slane %v1104, 7
        %v1120 = vsel %vm545, %v1117, %v1119
        %v1121 = vrot.slane %v1105, 7
        %v1122 = vsel %vm545, %v559, %v1121
        %v1123 = vrot.slane %v1106, 7
        %v1124 = vsel %vm545, %v1121, %v1123
        %v1131 = vadd.f32 %v1095, %v1114
        %v1132 = vadd.f32 %v1096, %v1116
        %v1133 = vadd.f32 %v1097, %v1118
        %v1134 = vadd.f32 %v1098, %v1120
        %v1135 = vadd.f32 %v1099, %v1122
        %v1136 = vadd.f32 %v1100, %v1124
        %v1137 = vmul.f32 %v254, 0.0014773248
        %v1138 = vmul.f32 %v255, 0.0014773248
        %v1139 = vmul.f32 %v260, 0.0014773248
        %v1140 = vmul.f32 %v261, 0.0014773248
        %v1141 = vmul.f32 %v266, 0.0014773248
        %v1142 = vmul.f32 %v267, 0.0014773248
        %v1143 = vadd.f32 %v1131, %v1137
        %v1144 = vadd.f32 %v1132, %v1138
        %v1145 = vadd.f32 %v1133, %v1139
        %v1146 = vadd.f32 %v1134, %v1140
        %v1147 = vadd.f32 %v1135, %v1141
        %v1148 = vadd.f32 %v1136, %v1142
        %v1149 = vmul.f32 %v254, 0.0005141076
        %v1150 = vmul.f32 %v255, 0.0005141076
        %v1151 = vmul.f32 %v256, 0.0005141076
        %v1152 = vmul.f32 %v260, 0.0005141076
        %v1153 = vmul.f32 %v261, 0.0005141076
        %v1154 = vmul.f32 %v262, 0.0005141076
        %v1155 = vmul.f32 %v266, 0.0005141076
        %v1156 = vmul.f32 %v267, 0.0005141076
        %v1157 = vmul.f32 %v268, 0.0005141076
        %v1167 = vrot.slane %v1149, 1
        %v1168 = vrot.slane %v1150, 1
        %v1169 = vsel %vm287, %v1167, %v1168
        %v1170 = vrot.slane %v1151, 1
        %v1171 = vsel %vm287, %v1168, %v1170
        %v1172 = vrot.slane %v1152, 1
        %v1173 = vrot.slane %v1153, 1
        %v1174 = vsel %vm287, %v1172, %v1173
        %v1175 = vrot.slane %v1154, 1
        %v1176 = vsel %vm287, %v1173, %v1175
        %v1177 = vrot.slane %v1155, 1
        %v1178 = vrot.slane %v1156, 1
        %v1179 = vsel %vm287, %v1177, %v1178
        %v1180 = vrot.slane %v1157, 1
        %v1181 = vsel %vm287, %v1178, %v1180
        %v1188 = vadd.f32 %v1143, %v1169
        %v1189 = vadd.f32 %v1144, %v1171
        %v1190 = vadd.f32 %v1145, %v1174
        %v1191 = vadd.f32 %v1146, %v1176
        %v1192 = vadd.f32 %v1147, %v1179
        %v1193 = vadd.f32 %v1148, %v1181
        %v1194 = vmul.f32 %v254, 0.00016009477
        %v1195 = vmul.f32 %v255, 0.00016009477
        %v1196 = vmul.f32 %v256, 0.00016009477
        %v1197 = vmul.f32 %v260, 0.00016009477
        %v1198 = vmul.f32 %v261, 0.00016009477
        %v1199 = vmul.f32 %v262, 0.00016009477
        %v1200 = vmul.f32 %v266, 0.00016009477
        %v1201 = vmul.f32 %v267, 0.00016009477
        %v1202 = vmul.f32 %v268, 0.00016009477
        %v1212 = vrot.slane %v1194, 2
        %v1213 = vrot.slane %v1195, 2
        %v1214 = vsel %vm315, %v1212, %v1213
        %v1215 = vrot.slane %v1196, 2
        %v1216 = vsel %vm315, %v1213, %v1215
        %v1217 = vrot.slane %v1197, 2
        %v1218 = vrot.slane %v1198, 2
        %v1219 = vsel %vm315, %v1217, %v1218
        %v1220 = vrot.slane %v1199, 2
        %v1221 = vsel %vm315, %v1218, %v1220
        %v1222 = vrot.slane %v1200, 2
        %v1223 = vrot.slane %v1201, 2
        %v1224 = vsel %vm315, %v1222, %v1223
        %v1225 = vrot.slane %v1202, 2
        %v1226 = vsel %vm315, %v1223, %v1225
        %v1233 = vadd.f32 %v1188, %v1214
        %v1234 = vadd.f32 %v1189, %v1216
        %v1235 = vadd.f32 %v1190, %v1219
        %v1236 = vadd.f32 %v1191, %v1221
        %v1237 = vadd.f32 %v1192, %v1224
        %v1238 = vadd.f32 %v1193, %v1226
        %v1239 = vmul.f32 %v254, 4.4611344e-05
        %v1240 = vmul.f32 %v255, 4.4611344e-05
        %v1241 = vmul.f32 %v256, 4.4611344e-05
        %v1242 = vmul.f32 %v260, 4.4611344e-05
        %v1243 = vmul.f32 %v261, 4.4611344e-05
        %v1244 = vmul.f32 %v262, 4.4611344e-05
        %v1245 = vmul.f32 %v266, 4.4611344e-05
        %v1246 = vmul.f32 %v267, 4.4611344e-05
        %v1247 = vmul.f32 %v268, 4.4611344e-05
        %v1257 = vrot.slane %v1239, 3
        %v1258 = vrot.slane %v1240, 3
        %v1259 = vsel %vm361, %v1257, %v1258
        %v1260 = vrot.slane %v1241, 3
        %v1261 = vsel %vm361, %v1258, %v1260
        %v1262 = vrot.slane %v1242, 3
        %v1263 = vrot.slane %v1243, 3
        %v1264 = vsel %vm361, %v1262, %v1263
        %v1265 = vrot.slane %v1244, 3
        %v1266 = vsel %vm361, %v1263, %v1265
        %v1267 = vrot.slane %v1245, 3
        %v1268 = vrot.slane %v1246, 3
        %v1269 = vsel %vm361, %v1267, %v1268
        %v1270 = vrot.slane %v1247, 3
        %v1271 = vsel %vm361, %v1268, %v1270
        %v1278 = vadd.f32 %v1233, %v1259
        %v1279 = vadd.f32 %v1234, %v1261
        %v1280 = vadd.f32 %v1235, %v1264
        %v1281 = vadd.f32 %v1236, %v1266
        %v1282 = vadd.f32 %v1237, %v1269
        %v1283 = vadd.f32 %v1238, %v1271
        %v1284 = vmul.f32 %v254, 0.0
        %v1285 = vmul.f32 %v255, 0.0
        %v1286 = vmul.f32 %v256, 0.0
        %v1287 = vmul.f32 %v260, 0.0
        %v1288 = vmul.f32 %v261, 0.0
        %v1289 = vmul.f32 %v262, 0.0
        %v1290 = vmul.f32 %v266, 0.0
        %v1291 = vmul.f32 %v267, 0.0
        %v1292 = vmul.f32 %v268, 0.0
        %v1302 = vrot.slane %v1284, 4
        %v1303 = vrot.slane %v1285, 4
        %v1304 = vsel %vm407, %v1302, %v1303
        %v1305 = vrot.slane %v1286, 4
        %v1306 = vsel %vm407, %v1303, %v1305
        %v1307 = vrot.slane %v1287, 4
        %v1308 = vrot.slane %v1288, 4
        %v1309 = vsel %vm407, %v1307, %v1308
        %v1310 = vrot.slane %v1289, 4
        %v1311 = vsel %vm407, %v1308, %v1310
        %v1312 = vrot.slane %v1290, 4
        %v1313 = vrot.slane %v1291, 4
        %v1314 = vsel %vm407, %v1312, %v1313
        %v1315 = vrot.slane %v1292, 4
        %v1316 = vsel %vm407, %v1313, %v1315
        %v1323 = vadd.f32 %v1278, %v1304
        %v1324 = vadd.f32 %v1279, %v1306
        %v1325 = vadd.f32 %v1280, %v1309
        %v1326 = vadd.f32 %v1281, %v1311
        %v1327 = vadd.f32 %v1282, %v1314
        %v1328 = vadd.f32 %v1283, %v1316
        %v1329 = vrot.slane %v1284, 5
        %v1330 = vrot.slane %v1285, 5
        %v1331 = vsel %vm453, %v1329, %v1330
        %v1332 = vrot.slane %v1286, 5
        %v1333 = vsel %vm453, %v1330, %v1332
        %v1334 = vrot.slane %v1287, 5
        %v1335 = vrot.slane %v1288, 5
        %v1336 = vsel %vm453, %v1334, %v1335
        %v1337 = vrot.slane %v1289, 5
        %v1338 = vsel %vm453, %v1335, %v1337
        %v1339 = vrot.slane %v1290, 5
        %v1340 = vrot.slane %v1291, 5
        %v1341 = vsel %vm453, %v1339, %v1340
        %v1342 = vrot.slane %v1292, 5
        %v1343 = vsel %vm453, %v1340, %v1342
        %v1350 = vadd.f32 %v1323, %v1331
        %v1351 = vadd.f32 %v1324, %v1333
        %v1352 = vadd.f32 %v1325, %v1336
        %v1353 = vadd.f32 %v1326, %v1338
        %v1354 = vadd.f32 %v1327, %v1341
        %v1355 = vadd.f32 %v1328, %v1343
        %v1356 = vrot.slane %v1284, 6
        %v1357 = vrot.slane %v1285, 6
        %v1358 = vsel %vm499, %v1356, %v1357
        %v1359 = vrot.slane %v1286, 6
        %v1360 = vsel %vm499, %v1357, %v1359
        %v1361 = vrot.slane %v1287, 6
        %v1362 = vrot.slane %v1288, 6
        %v1363 = vsel %vm499, %v1361, %v1362
        %v1364 = vrot.slane %v1289, 6
        %v1365 = vsel %vm499, %v1362, %v1364
        %v1366 = vrot.slane %v1290, 6
        %v1367 = vrot.slane %v1291, 6
        %v1368 = vsel %vm499, %v1366, %v1367
        %v1369 = vrot.slane %v1292, 6
        %v1370 = vsel %vm499, %v1367, %v1369
        %v1377 = vadd.f32 %v1350, %v1358
        %v1378 = vadd.f32 %v1351, %v1360
        %v1379 = vadd.f32 %v1352, %v1363
        %v1380 = vadd.f32 %v1353, %v1365
        %v1381 = vadd.f32 %v1354, %v1368
        %v1382 = vadd.f32 %v1355, %v1370
        %1389 = vrot.lane.b32.xlu0 %v1377, 15
        %v1390 = vpop.permute.xlu0 %1389
        %1391 = vrot.lane.b32.xlu0 %v1378, 15
        %v1392 = vpop.permute.xlu0 %1391
        %1393 = vrot.lane.b32.xlu0 %v1379, 15
        %v1394 = vpop.permute.xlu0 %1393
        %1395 = vrot.lane.b32.xlu0 %v1380, 15
        %v1396 = vpop.permute.xlu0 %1395
        %1397 = vrot.lane.b32.xlu0 %v1381, 15
        %v1398 = vpop.permute.xlu0 %1397
        %1399 = vrot.lane.b32.xlu0 %v1382, 15
        %v1400 = vpop.permute.xlu0 %1399
        %vm1407 = vcmask 253048
        %1408 = vst.msk [vmem:[#allocation3] sm:$0xff] %vm1407, %v1390
        %1409 = vst.msk [vmem:[#allocation3 + $0x8] sm:$0xff] %vm1407, %v1392
        %1410 = vst.msk [vmem:[#allocation3 + $0x10] sm:$0xff] %vm1407, %v1394
        %1411 = vst.msk [vmem:[#allocation3 + $0x18] sm:$0xff] %vm1407, %v1396
        %1412 = vst.msk [vmem:[#allocation3 + $0x20] sm:$0xff] %vm1407, %v1398
        %1413 = vst.msk [vmem:[#allocation3 + $0x28] sm:$0xff] %vm1407, %v1400
        %1414 = vrot.lane.b32.xlu0 %v1377, 13
        %v1415 = vpop.permute.xlu0 %1414
        %1416 = vrot.lane.b32.xlu0 %v1378, 13
        %v1417 = vpop.permute.xlu0 %1416
        %1418 = vrot.lane.b32.xlu0 %v1379, 13
        %v1419 = vpop.permute.xlu0 %1418
        %1420 = vrot.lane.b32.xlu0 %v1380, 13
        %v1421 = vpop.permute.xlu0 %1420
        %1422 = vrot.lane.b32.xlu0 %v1381, 13
        %v1423 = vpop.permute.xlu0 %1422
        %1424 = vrot.lane.b32.xlu0 %v1382, 13
        %v1425 = vpop.permute.xlu0 %1424
        %vm1432 = vcmask 121968
        %1433 = vst.msk [vmem:[#allocation3] sm:$0xff] %vm1432, %v1415
        %1434 = vst.msk [vmem:[#allocation3 + $0x8] sm:$0xff] %vm1432, %v1417
        %1435 = vst.msk [vmem:[#allocation3 + $0x10] sm:$0xff] %vm1432, %v1419
        %1436 = vst.msk [vmem:[#allocation3 + $0x18] sm:$0xff] %vm1432, %v1421
        %1437 = vst.msk [vmem:[#allocation3 + $0x20] sm:$0xff] %vm1432, %v1423
        %1438 = vst.msk [vmem:[#allocation3 + $0x28] sm:$0xff] %vm1432, %v1425
        %1439 = vrot.lane.b32.xlu0 %v1377, 17
        %v1440 = vpop.permute.xlu0 %1439
        %1441 = vrot.lane.b32.xlu0 %v1378, 17
        %v1442 = vpop.permute.xlu0 %1441
        %1443 = vrot.lane.b32.xlu0 %v1379, 17
        %v1444 = vpop.permute.xlu0 %1443
        %1445 = vrot.lane.b32.xlu0 %v1380, 17
        %v1446 = vpop.permute.xlu0 %1445
        %1447 = vrot.lane.b32.xlu0 %v1381, 17
        %v1448 = vpop.permute.xlu0 %1447
        %1449 = vrot.lane.b32.xlu0 %v1382, 17
        %v1450 = vpop.permute.xlu0 %1449
        %vm1457 = vcmask 261368
        %1458 = vst.msk [vmem:[#allocation3] sm:$0xff] %vm1457, %v1440
        %1459 = vst.msk [vmem:[#allocation3 + $0x8] sm:$0xff] %vm1457, %v1442
        %1460 = vst.msk [vmem:[#allocation3 + $0x10] sm:$0xff] %vm1457, %v1444
        %1461 = vst.msk [vmem:[#allocation3 + $0x18] sm:$0xff] %vm1457, %v1446
        %1462 = vst.msk [vmem:[#allocation3 + $0x20] sm:$0xff] %vm1457, %v1448
        %1463 = vst.msk [vmem:[#allocation3 + $0x28] sm:$0xff] %vm1457, %v1450
        %1464 = vrot.lane.b32.xlu0 %v1377, 11
        %v1465 = vpop.permute.xlu0 %1464
        %1466 = vrot.lane.b32.xlu0 %v1378, 11
        %v1467 = vpop.permute.xlu0 %1466
        %1468 = vrot.lane.b32.xlu0 %v1379, 11
        %v1469 = vpop.permute.xlu0 %1468
        %1470 = vrot.lane.b32.xlu0 %v1380, 11
        %v1471 = vpop.permute.xlu0 %1470
        %1472 = vrot.lane.b32.xlu0 %v1381, 11
        %v1473 = vpop.permute.xlu0 %1472
        %1474 = vrot.lane.b32.xlu0 %v1382, 11
        %v1475 = vpop.permute.xlu0 %1474
        %vm1482 = vcmask 113768
        %1483 = vst.msk [vmem:[#allocation3] sm:$0xff] %vm1482, %v1465
        %1484 = vst.msk [vmem:[#allocation3 + $0x8] sm:$0xff] %vm1482, %v1467
        %1485 = vst.msk [vmem:[#allocation3 + $0x10] sm:$0xff] %vm1482, %v1469
        %1486 = vst.msk [vmem:[#allocation3 + $0x18] sm:$0xff] %vm1482, %v1471
        %1487 = vst.msk [vmem:[#allocation3 + $0x20] sm:$0xff] %vm1482, %v1473
        %1488 = vst.msk [vmem:[#allocation3 + $0x28] sm:$0xff] %vm1482, %v1475
        %1489 = vrot.lane.b32.xlu0 %v1377, 19
        %v1490 = vpop.permute.xlu0 %1489
        %1491 = vrot.lane.b32.xlu0 %v1378, 19
        %v1492 = vpop.permute.xlu0 %1491
        %1493 = vrot.lane.b32.xlu0 %v1379, 19
        %v1494 = vpop.permute.xlu0 %1493
        %1495 = vrot.lane.b32.xlu0 %v1380, 19
        %v1496 = vpop.permute.xlu0 %1495
        %1497 = vrot.lane.b32.xlu0 %v1381, 19
        %v1498 = vpop.permute.xlu0 %1497
        %1499 = vrot.lane.b32.xlu0 %v1382, 19
        %v1500 = vpop.permute.xlu0 %1499
        %vm1507 = vcmask 269568
        %1508 = vst.msk [vmem:[#allocation3] sm:$0xff] %vm1507, %v1490
        %1509 = vst.msk [vmem:[#allocation3 + $0x8] sm:$0xff] %vm1507, %v1492
        %1510 = vst.msk [vmem:[#allocation3 + $0x10] sm:$0xff] %vm1507, %v1494
        %1511 = vst.msk [vmem:[#allocation3 + $0x18] sm:$0xff] %vm1507, %v1496
        %1512 = vst.msk [vmem:[#allocation3 + $0x20] sm:$0xff] %vm1507, %v1498
        %1513 = vst.msk [vmem:[#allocation3 + $0x28] sm:$0xff] %vm1507, %v1500
        %1514 = vrot.lane.b32.xlu0 %v1377, 9
        %v1515 = vpop.permute.xlu0 %1514
        %1516 = vrot.lane.b32.xlu0 %v1378, 9
        %v1517 = vpop.permute.xlu0 %1516
        %1518 = vrot.lane.b32.xlu0 %v1379, 9
        %v1519 = vpop.permute.xlu0 %1518
        %1520 = vrot.lane.b32.xlu0 %v1380, 9
        %v1521 = vpop.permute.xlu0 %1520
        %1522 = vrot.lane.b32.xlu0 %v1381, 9
        %v1523 = vpop.permute.xlu0 %1522
        %1524 = vrot.lane.b32.xlu0 %v1382, 9
        %v1525 = vpop.permute.xlu0 %1524
        %vm1532 = vcmask 105568
        %1533 = vst.msk [vmem:[#allocation3] sm:$0xff] %vm1532, %v1515
        %1534 = vst.msk [vmem:[#allocation3 + $0x8] sm:$0xff] %vm1532, %v1517
        %1535 = vst.msk [vmem:[#allocation3 + $0x10] sm:$0xff] %vm1532, %v1519
        %1536 = vst.msk [vmem:[#allocation3 + $0x18] sm:$0xff] %vm1532, %v1521
        %1537 = vst.msk [vmem:[#allocation3 + $0x20] sm:$0xff] %vm1532, %v1523
        %1538 = vst.msk [vmem:[#allocation3 + $0x28] sm:$0xff] %vm1532, %v1525
        %1539 = vrot.lane.b32.xlu0 %v1377, 21
        %v1540 = vpop.permute.xlu0 %1539
        %1541 = vrot.lane.b32.xlu0 %v1378, 21
        %v1542 = vpop.permute.xlu0 %1541
        %1543 = vrot.lane.b32.xlu0 %v1379, 21
        %v1544 = vpop.permute.xlu0 %1543
        %1545 = vrot.lane.b32.xlu0 %v1380, 21
        %v1546 = vpop.permute.xlu0 %1545
        %1547 = vrot.lane.b32.xlu0 %v1381, 21
        %v1548 = vpop.permute.xlu0 %1547
        %1549 = vrot.lane.b32.xlu0 %v1382, 21
        %v1550 = vpop.permute.xlu0 %1549
        %vm1557 = vcmask 277768
        %1558 = vst.msk [vmem:[#allocation3] sm:$0xff] %vm1557, %v1540
        %1559 = vst.msk [vmem:[#allocation3 + $0x8] sm:$0xff] %vm1557, %v1542
        %1560 = vst.msk [vmem:[#allocation3 + $0x10] sm:$0xff] %vm1557, %v1544
        %1561 = vst.msk [vmem:[#allocation3 + $0x18] sm:$0xff] %vm1557, %v1546
        %1562 = vst.msk [vmem:[#allocation3 + $0x20] sm:$0xff] %vm1557, %v1548
        %1563 = vst.msk [vmem:[#allocation3 + $0x28] sm:$0xff] %vm1557, %v1550
        %1564 = vrot.lane.b32.xlu0 %v1377, 7
        %v1565 = vpop.permute.xlu0 %1564
        %1566 = vrot.lane.b32.xlu0 %v1378, 7
        %v1567 = vpop.permute.xlu0 %1566
        %1568 = vrot.lane.b32.xlu0 %v1379, 7
        %v1569 = vpop.permute.xlu0 %1568
        %1570 = vrot.lane.b32.xlu0 %v1380, 7
        %v1571 = vpop.permute.xlu0 %1570
        %1572 = vrot.lane.b32.xlu0 %v1381, 7
        %v1573 = vpop.permute.xlu0 %1572
        %1574 = vrot.lane.b32.xlu0 %v1382, 7
        %v1575 = vpop.permute.xlu0 %1574
        %vm1582 = vcmask 97368
        %1583 = vst.msk [vmem:[#allocation3] sm:$0xff] %vm1582, %v1565
        %1584 = vst.msk [vmem:[#allocation3 + $0x8] sm:$0xff] %vm1582, %v1567
        %1585 = vst.msk [vmem:[#allocation3 + $0x10] sm:$0xff] %vm1582, %v1569
        %1586 = vst.msk [vmem:[#allocation3 + $0x18] sm:$0xff] %vm1582, %v1571
        %1587 = vst.msk [vmem:[#allocation3 + $0x20] sm:$0xff] %vm1582, %v1573
        %1588 = vst.msk [vmem:[#allocation3 + $0x28] sm:$0xff] %vm1582, %v1575
        %1589 = vrot.lane.b32.xlu0 %v1377, 23
        %v1590 = vpop.permute.xlu0 %1589
        %1591 = vrot.lane.b32.xlu0 %v1378, 23
        %v1592 = vpop.permute.xlu0 %1591
        %1593 = vrot.lane.b32.xlu0 %v1379, 23
        %v1594 = vpop.permute.xlu0 %1593
        %1595 = vrot.lane.b32.xlu0 %v1380, 23
        %v1596 = vpop.permute.xlu0 %1595
        %1597 = vrot.lane.b32.xlu0 %v1381, 23
        %v1598 = vpop.permute.xlu0 %1597
        %1599 = vrot.lane.b32.xlu0 %v1382, 23
        %v1600 = vpop.permute.xlu0 %1599
        %vm1607 = vcmask 285968
        %1608 = vst.msk [vmem:[#allocation3] sm:$0xff] %vm1607, %v1590
        %1609 = vst.msk [vmem:[#allocation3 + $0x8] sm:$0xff] %vm1607, %v1592
        %1610 = vst.msk [vmem:[#allocation3 + $0x10] sm:$0xff] %vm1607, %v1594
        %1611 = vst.msk [vmem:[#allocation3 + $0x18] sm:$0xff] %vm1607, %v1596
        %1612 = vst.msk [vmem:[#allocation3 + $0x20] sm:$0xff] %vm1607, %v1598
        %1613 = vst.msk [vmem:[#allocation3 + $0x28] sm:$0xff] %vm1607, %v1600
        %1614 = vrot.lane.b32.xlu0 %v1377, 5
        %v1615 = vpop.permute.xlu0 %1614
        %1616 = vrot.lane.b32.xlu0 %v1378, 5
        %v1617 = vpop.permute.xlu0 %1616
        %1618 = vrot.lane.b32.xlu0 %v1379, 5
        %v1619 = vpop.permute.xlu0 %1618
        %1620 = vrot.lane.b32.xlu0 %v1380, 5
        %v1621 = vpop.permute.xlu0 %1620
        %1622 = vrot.lane.b32.xlu0 %v1381, 5
        %v1623 = vpop.permute.xlu0 %1622
        %1624 = vrot.lane.b32.xlu0 %v1382, 5
        %v1625 = vpop.permute.xlu0 %1624
        %vm1632 = vcmask 89168
        %1633 = vst.msk [vmem:[#allocation3] sm:$0xff] %vm1632, %v1615
        %1634 = vst.msk [vmem:[#allocation3 + $0x8] sm:$0xff] %vm1632, %v1617
        %1635 = vst.msk [vmem:[#allocation3 + $0x10] sm:$0xff] %vm1632, %v1619
        %1636 = vst.msk [vmem:[#allocation3 + $0x18] sm:$0xff] %vm1632, %v1621
        %1637 = vst.msk [vmem:[#allocation3 + $0x20] sm:$0xff] %vm1632, %v1623
        %1638 = vst.msk [vmem:[#allocation3 + $0x28] sm:$0xff] %vm1632, %v1625
        %1639 = vrot.lane.b32.xlu0 %v1377, 25
        %v1640 = vpop.permute.xlu0 %1639
        %1641 = vrot.lane.b32.xlu0 %v1378, 25
        %v1642 = vpop.permute.xlu0 %1641
        %1643 = vrot.lane.b32.xlu0 %v1379, 25
        %v1644 = vpop.permute.xlu0 %1643
        %1645 = vrot.lane.b32.xlu0 %v1380, 25
        %v1646 = vpop.permute.xlu0 %1645
        %1647 = vrot.lane.b32.xlu0 %v1381, 25
        %v1648 = vpop.permute.xlu0 %1647
        %1649 = vrot.lane.b32.xlu0 %v1382, 25
        %v1650 = vpop.permute.xlu0 %1649
        %vm1657 = vcmask 294168
        %1658 = vst.msk [vmem:[#allocation3] sm:$0xff] %vm1657, %v1640
        %1659 = vst.msk [vmem:[#allocation3 + $0x8] sm:$0xff] %vm1657, %v1642
        %1660 = vst.msk [vmem:[#allocation3 + $0x10] sm:$0xff] %vm1657, %v1644
        %1661 = vst.msk [vmem:[#allocation3 + $0x18] sm:$0xff] %vm1657, %v1646
        %1662 = vst.msk [vmem:[#allocation3 + $0x20] sm:$0xff] %vm1657, %v1648
        %1663 = vst.msk [vmem:[#allocation3 + $0x28] sm:$0xff] %vm1657, %v1650
        %1664 = vrot.lane.b32.xlu0 %v1377, 3
        %v1665 = vpop.permute.xlu0 %1664
        %1666 = vrot.lane.b32.xlu0 %v1378, 3
        %v1667 = vpop.permute.xlu0 %1666
        %1668 = vrot.lane.b32.xlu0 %v1379, 3
        %v1669 = vpop.permute.xlu0 %1668
        %1670 = vrot.lane.b32.xlu0 %v1380, 3
        %v1671 = vpop.permute.xlu0 %1670
        %1672 = vrot.lane.b32.xlu0 %v1381, 3
        %v1673 = vpop.permute.xlu0 %1672
        %1674 = vrot.lane.b32.xlu0 %v1382, 3
        %v1675 = vpop.permute.xlu0 %1674
        %vm1682 = vcmask 80968
        %1683 = vst.msk [vmem:[#allocation3] sm:$0xff] %vm1682, %v1665
        %1684 = vst.msk [vmem:[#allocation3 + $0x8] sm:$0xff] %vm1682, %v1667
        %1685 = vst.msk [vmem:[#allocation3 + $0x10] sm:$0xff] %vm1682, %v1669
        %1686 = vst.msk [vmem:[#allocation3 + $0x18] sm:$0xff] %vm1682, %v1671
        %1687 = vst.msk [vmem:[#allocation3 + $0x20] sm:$0xff] %vm1682, %v1673
        %1688 = vst.msk [vmem:[#allocation3 + $0x28] sm:$0xff] %vm1682, %v1675
        %1689 = vrot.lane.b32.xlu0 %v1377, 27
        %v1690 = vpop.permute.xlu0 %1689
        %1691 = vrot.lane.b32.xlu0 %v1378, 27
        %v1692 = vpop.permute.xlu0 %1691
        %1693 = vrot.lane.b32.xlu0 %v1379, 27
        %v1694 = vpop.permute.xlu0 %1693
        %1695 = vrot.lane.b32.xlu0 %v1380, 27
        %v1696 = vpop.permute.xlu0 %1695
        %1697 = vrot.lane.b32.xlu0 %v1381, 27
        %v1698 = vpop.permute.xlu0 %1697
        %1699 = vrot.lane.b32.xlu0 %v1382, 27
        %v1700 = vpop.permute.xlu0 %1699
        %vm1707 = vcmask 302368
        %1708 = vst.msk [vmem:[#allocation3] sm:$0xff] %vm1707, %v1690
        %1709 = vst.msk [vmem:[#allocation3 + $0x8] sm:$0xff] %vm1707, %v1692
        %1710 = vst.msk [vmem:[#allocation3 + $0x10] sm:$0xff] %vm1707, %v1694
        %1711 = vst.msk [vmem:[#allocation3 + $0x18] sm:$0xff] %vm1707, %v1696
        %1712 = vst.msk [vmem:[#allocation3 + $0x20] sm:$0xff] %vm1707, %v1698
        %1713 = vst.msk [vmem:[#allocation3 + $0x28] sm:$0xff] %vm1707, %v1700
        %1714 = vrot.lane.b32.xlu0 %v1377, 1
        %v1715 = vpop.permute.xlu0 %1714
        %1716 = vrot.lane.b32.xlu0 %v1378, 1
        %v1717 = vpop.permute.xlu0 %1716
        %1718 = vrot.lane.b32.xlu0 %v1379, 1
        %v1719 = vpop.permute.xlu0 %1718
        %1720 = vrot.lane.b32.xlu0 %v1380, 1
        %v1721 = vpop.permute.xlu0 %1720
        %1722 = vrot.lane.b32.xlu0 %v1381, 1
        %v1723 = vpop.permute.xlu0 %1722
        %1724 = vrot.lane.b32.xlu0 %v1382, 1
        %v1725 = vpop.permute.xlu0 %1724
        %vm1732 = vcmask 72768
        %1733 = vst.msk [vmem:[#allocation3] sm:$0xff] %vm1732, %v1715
        %1734 = vst.msk [vmem:[#allocation3 + $0x8] sm:$0xff] %vm1732, %v1717
        %1735 = vst.msk [vmem:[#allocation3 + $0x10] sm:$0xff] %vm1732, %v1719
        %1736 = vst.msk [vmem:[#allocation3 + $0x18] sm:$0xff] %vm1732, %v1721
        %1737 = vst.msk [vmem:[#allocation3 + $0x20] sm:$0xff] %vm1732, %v1723
        %1738 = vst.msk [vmem:[#allocation3 + $0x28] sm:$0xff] %vm1732, %v1725
        %1739 = vrot.lane.b32.xlu0 %v1377, 29
        %v1740 = vpop.permute.xlu0 %1739
        %1741 = vrot.lane.b32.xlu0 %v1378, 29
        %v1742 = vpop.permute.xlu0 %1741
        %1743 = vrot.lane.b32.xlu0 %v1379, 29
        %v1744 = vpop.permute.xlu0 %1743
        %1745 = vrot.lane.b32.xlu0 %v1380, 29
        %v1746 = vpop.permute.xlu0 %1745
        %1747 = vrot.lane.b32.xlu0 %v1381, 29
        %v1748 = vpop.permute.xlu0 %1747
        %1749 = vrot.lane.b32.xlu0 %v1382, 29
        %v1750 = vpop.permute.xlu0 %1749
        %vm1757 = vcmask 310568
        %1758 = vst.msk [vmem:[#allocation3] sm:$0xff] %vm1757, %v1740
        %1759 = vst.msk [vmem:[#allocation3 + $0x8] sm:$0xff] %vm1757, %v1742
        %1760 = vst.msk [vmem:[#allocation3 + $0x10] sm:$0xff] %vm1757, %v1744
        %1761 = vst.msk [vmem:[#allocation3 + $0x18] sm:$0xff] %vm1757, %v1746
        %1762 = vst.msk [vmem:[#allocation3 + $0x20] sm:$0xff] %vm1757, %v1748
        %1763 = vst.msk [vmem:[#allocation3 + $0x28] sm:$0xff] %vm1757, %v1750
        %1764 = vrot.lane.b32.xlu0 %v1377, 127
        %v1765 = vpop.permute.xlu0 %1764
        %1766 = vrot.lane.b32.xlu0 %v1378, 127
        %v1767 = vpop.permute.xlu0 %1766
        %1768 = vrot.lane.b32.xlu0 %v1379, 127
        %v1769 = vpop.permute.xlu0 %1768
        %1770 = vrot.lane.b32.xlu0 %v1380, 127
        %v1771 = vpop.permute.xlu0 %1770
        %1772 = vrot.lane.b32.xlu0 %v1381, 127
        %v1773 = vpop.permute.xlu0 %1772
        %1774 = vrot.lane.b32.xlu0 %v1382, 127
        %v1775 = vpop.permute.xlu0 %1774
        %vm1782 = vcmask 64568
        %1783 = vst.msk [vmem:[#allocation3] sm:$0xff] %vm1782, %v1765
        %1784 = vst.msk [vmem:[#allocation3 + $0x8] sm:$0xff] %vm1782, %v1767
        %1785 = vst.msk [vmem:[#allocation3 + $0x10] sm:$0xff] %vm1782, %v1769
        %1786 = vst.msk [vmem:[#allocation3 + $0x18] sm:$0xff] %vm1782, %v1771
        %1787 = vst.msk [vmem:[#allocation3 + $0x20] sm:$0xff] %vm1782, %v1773
        %1788 = vst.msk [vmem:[#allocation3 + $0x28] sm:$0xff] %vm1782, %v1775
        %1789 = vrot.lane.b32.xlu0 %v1377, 31
        %v1790 = vpop.permute.xlu0 %1789
        %1791 = vrot.lane.b32.xlu0 %v1378, 31
        %v1792 = vpop.permute.xlu0 %1791
        %1793 = vrot.lane.b32.xlu0 %v1379, 31
        %v1794 = vpop.permute.xlu0 %1793
        %1795 = vrot.lane.b32.xlu0 %v1380, 31
        %v1796 = vpop.permute.xlu0 %1795
        %1797 = vrot.lane.b32.xlu0 %v1381, 31
        %v1798 = vpop.permute.xlu0 %1797
        %1799 = vrot.lane.b32.xlu0 %v1382, 31
        %v1800 = vpop.permute.xlu0 %1799
        %vm1807 = vcmask 318768
        %1808 = vst.msk [vmem:[#allocation3] sm:$0xff] %vm1807, %v1790
        %1809 = vst.msk [vmem:[#allocation3 + $0x8] sm:$0xff] %vm1807, %v1792
        %1810 = vst.msk [vmem:[#allocation3 + $0x10] sm:$0xff] %vm1807, %v1794
        %1811 = vst.msk [vmem:[#allocation3 + $0x18] sm:$0xff] %vm1807, %v1796
        %1812 = vst.msk [vmem:[#allocation3 + $0x20] sm:$0xff] %vm1807, %v1798
        %1813 = vst.msk [vmem:[#allocation3 + $0x28] sm:$0xff] %vm1807, %v1800
        %1814 = vrot.lane.b32.xlu0 %v1377, 125
        %v1815 = vpop.permute.xlu0 %1814
        %1816 = vrot.lane.b32.xlu0 %v1378, 125
        %v1817 = vpop.permute.xlu0 %1816
        %1818 = vrot.lane.b32.xlu0 %v1379, 125
        %v1819 = vpop.permute.xlu0 %1818
        %1820 = vrot.lane.b32.xlu0 %v1380, 125
        %v1821 = vpop.permute.xlu0 %1820
        %1822 = vrot.lane.b32.xlu0 %v1381, 125
        %v1823 = vpop.permute.xlu0 %1822
        %1824 = vrot.lane.b32.xlu0 %v1382, 125
        %v1825 = vpop.permute.xlu0 %1824
        %vm1832 = vcmask 56368
        %1833 = vst.msk [vmem:[#allocation3] sm:$0xff] %vm1832, %v1815
        %1834 = vst.msk [vmem:[#allocation3 + $0x8] sm:$0xff] %vm1832, %v1817
        %1835 = vst.msk [vmem:[#allocation3 + $0x10] sm:$0xff] %vm1832, %v1819
        %1836 = vst.msk [vmem:[#allocation3 + $0x18] sm:$0xff] %vm1832, %v1821
        %1837 = vst.msk [vmem:[#allocation3 + $0x20] sm:$0xff] %vm1832, %v1823
        %1838 = vst.msk [vmem:[#allocation3 + $0x28] sm:$0xff] %vm1832, %v1825
        %1839 = vrot.lane.b32.xlu0 %v1377, 33
        %v1840 = vpop.permute.xlu0 %1839
        %1841 = vrot.lane.b32.xlu0 %v1378, 33
        %v1842 = vpop.permute.xlu0 %1841
        %1843 = vrot.lane.b32.xlu0 %v1379, 33
        %v1844 = vpop.permute.xlu0 %1843
        %1845 = vrot.lane.b32.xlu0 %v1380, 33
        %v1846 = vpop.permute.xlu0 %1845
        %1847 = vrot.lane.b32.xlu0 %v1381, 33
        %v1848 = vpop.permute.xlu0 %1847
        %1849 = vrot.lane.b32.xlu0 %v1382, 33
        %v1850 = vpop.permute.xlu0 %1849
        %vm1857 = vcmask 326968
        %1858 = vst.msk [vmem:[#allocation3] sm:$0xff] %vm1857, %v1840
        %1859 = vst.msk [vmem:[#allocation3 + $0x8] sm:$0xff] %vm1857, %v1842
        %1860 = vst.msk [vmem:[#allocation3 + $0x10] sm:$0xff] %vm1857, %v1844
        %1861 = vst.msk [vmem:[#allocation3 + $0x18] sm:$0xff] %vm1857, %v1846
        %1862 = vst.msk [vmem:[#allocation3 + $0x20] sm:$0xff] %vm1857, %v1848
        %1863 = vst.msk [vmem:[#allocation3 + $0x28] sm:$0xff] %vm1857, %v1850
        %1864 = vrot.lane.b32.xlu0 %v1377, 123
        %v1865 = vpop.permute.xlu0 %1864
        %1866 = vrot.lane.b32.xlu0 %v1378, 123
        %v1867 = vpop.permute.xlu0 %1866
        %1868 = vrot.lane.b32.xlu0 %v1379, 123
        %v1869 = vpop.permute.xlu0 %1868
        %1870 = vrot.lane.b32.xlu0 %v1380, 123
        %v1871 = vpop.permute.xlu0 %1870
        %1872 = vrot.lane.b32.xlu0 %v1381, 123
        %v1873 = vpop.permute.xlu0 %1872
        %1874 = vrot.lane.b32.xlu0 %v1382, 123
        %v1875 = vpop.permute.xlu0 %1874
        %vm1882 = vcmask 48168
        %1883 = vst.msk [vmem:[#allocation3] sm:$0xff] %vm1882, %v1865
        %1884 = vst.msk [vmem:[#allocation3 + $0x8] sm:$0xff] %vm1882, %v1867
        %1885 = vst.msk [vmem:[#allocation3 + $0x10] sm:$0xff] %vm1882, %v1869
        %1886 = vst.msk [vmem:[#allocation3 + $0x18] sm:$0xff] %vm1882, %v1871
        %1887 = vst.msk [vmem:[#allocation3 + $0x20] sm:$0xff] %vm1882, %v1873
        %1888 = vst.msk [vmem:[#allocation3 + $0x28] sm:$0xff] %vm1882, %v1875
        %1889 = vrot.lane.b32.xlu0 %v1377, 35
        %v1890 = vpop.permute.xlu0 %1889
        %1891 = vrot.lane.b32.xlu0 %v1378, 35
        %v1892 = vpop.permute.xlu0 %1891
        %1893 = vrot.lane.b32.xlu0 %v1379, 35
        %v1894 = vpop.permute.xlu0 %1893
        %1895 = vrot.lane.b32.xlu0 %v1380, 35
        %v1896 = vpop.permute.xlu0 %1895
        %1897 = vrot.lane.b32.xlu0 %v1381, 35
        %v1898 = vpop.permute.xlu0 %1897
        %1899 = vrot.lane.b32.xlu0 %v1382, 35
        %v1900 = vpop.permute.xlu0 %1899
        %vm1907 = vcmask 335168
        %1908 = vst.msk [vmem:[#allocation3] sm:$0xff] %vm1907, %v1890
        %1909 = vst.msk [vmem:[#allocation3 + $0x8] sm:$0xff] %vm1907, %v1892
        %1910 = vst.msk [vmem:[#allocation3 + $0x10] sm:$0xff] %vm1907, %v1894
        %1911 = vst.msk [vmem:[#allocation3 + $0x18] sm:$0xff] %vm1907, %v1896
        %1912 = vst.msk [vmem:[#allocation3 + $0x20] sm:$0xff] %vm1907, %v1898
        %1913 = vst.msk [vmem:[#allocation3 + $0x28] sm:$0xff] %vm1907, %v1900
        %1914 = vrot.lane.b32.xlu0 %v1377, 121
        %v1915 = vpop.permute.xlu0 %1914
        %1916 = vrot.lane.b32.xlu0 %v1378, 121
        %v1917 = vpop.permute.xlu0 %1916
        %1918 = vrot.lane.b32.xlu0 %v1379, 121
        %v1919 = vpop.permute.xlu0 %1918
        %1920 = vrot.lane.b32.xlu0 %v1380, 121
        %v1921 = vpop.permute.xlu0 %1920
        %1922 = vrot.lane.b32.xlu0 %v1381, 121
        %v1923 = vpop.permute.xlu0 %1922
        %1924 = vrot.lane.b32.xlu0 %v1382, 121
        %v1925 = vpop.permute.xlu0 %1924
        %vm1932 = vcmask 39968
        %1933 = vst.msk [vmem:[#allocation3] sm:$0xff] %vm1932, %v1915
        %1934 = vst.msk [vmem:[#allocation3 + $0x8] sm:$0xff] %vm1932, %v1917
        %1935 = vst.msk [vmem:[#allocation3 + $0x10] sm:$0xff] %vm1932, %v1919
        %1936 = vst.msk [vmem:[#allocation3 + $0x18] sm:$0xff] %vm1932, %v1921
        %1937 = vst.msk [vmem:[#allocation3 + $0x20] sm:$0xff] %vm1932, %v1923
        %1938 = vst.msk [vmem:[#allocation3 + $0x28] sm:$0xff] %vm1932, %v1925
        %1939 = vrot.lane.b32.xlu0 %v1377, 37
        %v1940 = vpop.permute.xlu0 %1939
        %1941 = vrot.lane.b32.xlu0 %v1378, 37
        %v1942 = vpop.permute.xlu0 %1941
        %1943 = vrot.lane.b32.xlu0 %v1379, 37
        %v1944 = vpop.permute.xlu0 %1943
        %1945 = vrot.lane.b32.xlu0 %v1380, 37
        %v1946 = vpop.permute.xlu0 %1945
        %1947 = vrot.lane.b32.xlu0 %v1381, 37
        %v1948 = vpop.permute.xlu0 %1947
        %1949 = vrot.lane.b32.xlu0 %v1382, 37
        %v1950 = vpop.permute.xlu0 %1949
        %vm1957 = vcmask 343368
        %1958 = vst.msk [vmem:[#allocation3] sm:$0xff] %vm1957, %v1940
        %1959 = vst.msk [vmem:[#allocation3 + $0x8] sm:$0xff] %vm1957, %v1942
        %1960 = vst.msk [vmem:[#allocation3 + $0x10] sm:$0xff] %vm1957, %v1944
        %1961 = vst.msk [vmem:[#allocation3 + $0x18] sm:$0xff] %vm1957, %v1946
        %1962 = vst.msk [vmem:[#allocation3 + $0x20] sm:$0xff] %vm1957, %v1948
        %1963 = vst.msk [vmem:[#allocation3 + $0x28] sm:$0xff] %vm1957, %v1950
        %1964 = vrot.lane.b32.xlu0 %v1377, 119
        %v1965 = vpop.permute.xlu0 %1964
        %1966 = vrot.lane.b32.xlu0 %v1378, 119
        %v1967 = vpop.permute.xlu0 %1966
        %1968 = vrot.lane.b32.xlu0 %v1379, 119
        %v1969 = vpop.permute.xlu0 %1968
        %1970 = vrot.lane.b32.xlu0 %v1380, 119
        %v1971 = vpop.permute.xlu0 %1970
        %1972 = vrot.lane.b32.xlu0 %v1381, 119
        %v1973 = vpop.permute.xlu0 %1972
        %1974 = vrot.lane.b32.xlu0 %v1382, 119
        %v1975 = vpop.permute.xlu0 %1974
        %vm1982 = vcmask 31768
        %1983 = vst.msk [vmem:[#allocation3] sm:$0xff] %vm1982, %v1965
        %1984 = vst.msk [vmem:[#allocation3 + $0x8] sm:$0xff] %vm1982, %v1967
        %1985 = vst.msk [vmem:[#allocation3 + $0x10] sm:$0xff] %vm1982, %v1969
        %1986 = vst.msk [vmem:[#allocation3 + $0x18] sm:$0xff] %vm1982, %v1971
        %1987 = vst.msk [vmem:[#allocation3 + $0x20] sm:$0xff] %vm1982, %v1973
        %1988 = vst.msk [vmem:[#allocation3 + $0x28] sm:$0xff] %vm1982, %v1975
        %1989 = vrot.lane.b32.xlu0 %v1377, 39
        %v1990 = vpop.permute.xlu0 %1989
        %1991 = vrot.lane.b32.xlu0 %v1378, 39
        %v1992 = vpop.permute.xlu0 %1991
        %1993 = vrot.lane.b32.xlu0 %v1379, 39
        %v1994 = vpop.permute.xlu0 %1993
        %1995 = vrot.lane.b32.xlu0 %v1380, 39
        %v1996 = vpop.permute.xlu0 %1995
        %1997 = vrot.lane.b32.xlu0 %v1381, 39
        %v1998 = vpop.permute.xlu0 %1997
        %1999 = vrot.lane.b32.xlu0 %v1382, 39
        %v2000 = vpop.permute.xlu0 %1999
        %vm2007 = vcmask 351568
        %2008 = vst.msk [vmem:[#allocation3] sm:$0xff] %vm2007, %v1990
        %2009 = vst.msk [vmem:[#allocation3 + $0x8] sm:$0xff] %vm2007, %v1992
        %2010 = vst.msk [vmem:[#allocation3 + $0x10] sm:$0xff] %vm2007, %v1994
        %2011 = vst.msk [vmem:[#allocation3 + $0x18] sm:$0xff] %vm2007, %v1996
        %2012 = vst.msk [vmem:[#allocation3 + $0x20] sm:$0xff] %vm2007, %v1998
        %2013 = vst.msk [vmem:[#allocation3 + $0x28] sm:$0xff] %vm2007, %v2000
        %2014 = vrot.lane.b32.xlu0 %v1377, 117
        %v2015 = vpop.permute.xlu0 %2014
        %2016 = vrot.lane.b32.xlu0 %v1378, 117
        %v2017 = vpop.permute.xlu0 %2016
        %2018 = vrot.lane.b32.xlu0 %v1379, 117
        %v2019 = vpop.permute.xlu0 %2018
        %2020 = vrot.lane.b32.xlu0 %v1380, 117
        %v2021 = vpop.permute.xlu0 %2020
        %2022 = vrot.lane.b32.xlu0 %v1381, 117
        %v2023 = vpop.permute.xlu0 %2022
        %2024 = vrot.lane.b32.xlu0 %v1382, 117
        %v2025 = vpop.permute.xlu0 %2024
        %vm2032 = vcmask 23568
        %2033 = vst.msk [vmem:[#allocation3] sm:$0xff] %vm2032, %v2015
        %2034 = vst.msk [vmem:[#allocation3 + $0x8] sm:$0xff] %vm2032, %v2017
        %2035 = vst.msk [vmem:[#allocation3 + $0x10] sm:$0xff] %vm2032, %v2019
        %2036 = vst.msk [vmem:[#allocation3 + $0x18] sm:$0xff] %vm2032, %v2021
        %2037 = vst.msk [vmem:[#allocation3 + $0x20] sm:$0xff] %vm2032, %v2023
        %2038 = vst.msk [vmem:[#allocation3 + $0x28] sm:$0xff] %vm2032, %v2025
        %2039 = vrot.lane.b32.xlu0 %v1377, 41
        %v2040 = vpop.permute.xlu0 %2039
        %2041 = vrot.lane.b32.xlu0 %v1378, 41
        %v2042 = vpop.permute.xlu0 %2041
        %2043 = vrot.lane.b32.xlu0 %v1379, 41
        %v2044 = vpop.permute.xlu0 %2043
        %2045 = vrot.lane.b32.xlu0 %v1380, 41
        %v2046 = vpop.permute.xlu0 %2045
        %2047 = vrot.lane.b32.xlu0 %v1381, 41
        %v2048 = vpop.permute.xlu0 %2047
        %2049 = vrot.lane.b32.xlu0 %v1382, 41
        %v2050 = vpop.permute.xlu0 %2049
        %vm2057 = vcmask 359768
        %2058 = vst.msk [vmem:[#allocation3] sm:$0xff] %vm2057, %v2040
        %2059 = vst.msk [vmem:[#allocation3 + $0x8] sm:$0xff] %vm2057, %v2042
        %2060 = vst.msk [vmem:[#allocation3 + $0x10] sm:$0xff] %vm2057, %v2044
        %2061 = vst.msk [vmem:[#allocation3 + $0x18] sm:$0xff] %vm2057, %v2046
        %2062 = vst.msk [vmem:[#allocation3 + $0x20] sm:$0xff] %vm2057, %v2048
        %2063 = vst.msk [vmem:[#allocation3 + $0x28] sm:$0xff] %vm2057, %v2050
        %2064 = vrot.lane.b32.xlu0 %v1377, 115
        %v2065 = vpop.permute.xlu0 %2064
        %2066 = vrot.lane.b32.xlu0 %v1378, 115
        %v2067 = vpop.permute.xlu0 %2066
        %2068 = vrot.lane.b32.xlu0 %v1379, 115
        %v2069 = vpop.permute.xlu0 %2068
        %2070 = vrot.lane.b32.xlu0 %v1380, 115
        %v2071 = vpop.permute.xlu0 %2070
        %2072 = vrot.lane.b32.xlu0 %v1381, 115
        %v2073 = vpop.permute.xlu0 %2072
        %2074 = vrot.lane.b32.xlu0 %v1382, 115
        %v2075 = vpop.permute.xlu0 %2074
        %vm2082 = vcmask 15368
        %2083 = vst.msk [vmem:[#allocation3] sm:$0xff] %vm2082, %v2065
        %2084 = vst.msk [vmem:[#allocation3 + $0x8] sm:$0xff] %vm2082, %v2067
        %2085 = vst.msk [vmem:[#allocation3 + $0x10] sm:$0xff] %vm2082, %v2069
        %2086 = vst.msk [vmem:[#allocation3 + $0x18] sm:$0xff] %vm2082, %v2071
        %2087 = vst.msk [vmem:[#allocation3 + $0x20] sm:$0xff] %vm2082, %v2073
        %2088 = vst.msk [vmem:[#allocation3 + $0x28] sm:$0xff] %vm2082, %v2075
        %2089 = vrot.lane.b32.xlu0 %v1377, 43
        %v2090 = vpop.permute.xlu0 %2089
        %2091 = vrot.lane.b32.xlu0 %v1378, 43
        %v2092 = vpop.permute.xlu0 %2091
        %2093 = vrot.lane.b32.xlu0 %v1379, 43
        %v2094 = vpop.permute.xlu0 %2093
        %2095 = vrot.lane.b32.xlu0 %v1380, 43
        %v2096 = vpop.permute.xlu0 %2095
        %2097 = vrot.lane.b32.xlu0 %v1381, 43
        %v2098 = vpop.permute.xlu0 %2097
        %2099 = vrot.lane.b32.xlu0 %v1382, 43
        %v2100 = vpop.permute.xlu0 %2099
        %vm2107 = vcmask 367968
        %2108 = vst.msk [vmem:[#allocation3] sm:$0xff] %vm2107, %v2090
        %2109 = vst.msk [vmem:[#allocation3 + $0x8] sm:$0xff] %vm2107, %v2092
        %2110 = vst.msk [vmem:[#allocation3 + $0x10] sm:$0xff] %vm2107, %v2094
        %2111 = vst.msk [vmem:[#allocation3 + $0x18] sm:$0xff] %vm2107, %v2096
        %2112 = vst.msk [vmem:[#allocation3 + $0x20] sm:$0xff] %vm2107, %v2098
        %2113 = vst.msk [vmem:[#allocation3 + $0x28] sm:$0xff] %vm2107, %v2100
        %2114 = vrot.lane.b32.xlu0 %v1377, 113
        %v2115 = vpop.permute.xlu0 %2114
        %2116 = vrot.lane.b32.xlu0 %v1378, 113
        %v2117 = vpop.permute.xlu0 %2116
        %2118 = vrot.lane.b32.xlu0 %v1379, 113
        %v2119 = vpop.permute.xlu0 %2118
        %2120 = vrot.lane.b32.xlu0 %v1380, 113
        %v2121 = vpop.permute.xlu0 %2120
        %2122 = vrot.lane.b32.xlu0 %v1381, 113
        %v2123 = vpop.permute.xlu0 %2122
        %2124 = vrot.lane.b32.xlu0 %v1382, 113
        %v2125 = vpop.permute.xlu0 %2124
        %vm2132 = vcmask 7168
        %2133 = vst.msk [vmem:[#allocation3] sm:$0xff] %vm2132, %v2115
        %2134 = vst.msk [vmem:[#allocation3 + $0x8] sm:$0xff] %vm2132, %v2117
        %2135 = vst.msk [vmem:[#allocation3 + $0x10] sm:$0xff] %vm2132, %v2119
        %2136 = vst.msk [vmem:[#allocation3 + $0x18] sm:$0xff] %vm2132, %v2121
        %2137 = vst.msk [vmem:[#allocation3 + $0x20] sm:$0xff] %vm2132, %v2123
        %2138 = vst.msk [vmem:[#allocation3 + $0x28] sm:$0xff] %vm2132, %v2125
        %2139 = vrot.lane.b32.xlu0 %v1377, 45
        %v2140 = vpop.permute.xlu0 %2139
        %2141 = vrot.lane.b32.xlu0 %v1378, 45
        %v2142 = vpop.permute.xlu0 %2141
        %2143 = vrot.lane.b32.xlu0 %v1379, 45
        %v2144 = vpop.permute.xlu0 %2143
        %2145 = vrot.lane.b32.xlu0 %v1380, 45
        %v2146 = vpop.permute.xlu0 %2145
        %2147 = vrot.lane.b32.xlu0 %v1381, 45
        %v2148 = vpop.permute.xlu0 %2147
        %2149 = vrot.lane.b32.xlu0 %v1382, 45
        %v2150 = vpop.permute.xlu0 %2149
        %vm2157 = vcmask 376168
        %2158 = vst.msk [vmem:[#allocation3] sm:$0xff] %vm2157, %v2140
        %2159 = vst.msk [vmem:[#allocation3 + $0x8] sm:$0xff] %vm2157, %v2142
        %2160 = vst.msk [vmem:[#allocation3 + $0x10] sm:$0xff] %vm2157, %v2144
        %2161 = vst.msk [vmem:[#allocation3 + $0x18] sm:$0xff] %vm2157, %v2146
        %2162 = vst.msk [vmem:[#allocation3 + $0x20] sm:$0xff] %vm2157, %v2148
        %2163 = vst.msk [vmem:[#allocation3 + $0x28] sm:$0xff] %vm2157, %v2150
        %v2164 = vld [vmem:[#allocation3] sm:$0xff]
        %v2165 = vld [vmem:[#allocation3 + $0x8] sm:$0xff]
        %v2166 = vld [vmem:[#allocation3 + $0x10] sm:$0xff]
        %v2167 = vld [vmem:[#allocation3 + $0x18] sm:$0xff]
        %v2168 = vld [vmem:[#allocation3 + $0x20] sm:$0xff]
        %v2169 = vld [vmem:[#allocation3 + $0x28] sm:$0xff]
        %v2170 = vmul.f32 %v2164, 0.0
        %v2171 = vmul.f32 %v2165, 0.0
        %v2172 = vmul.f32 %v2166, 0.0
        %v2173 = vmul.f32 %v2167, 0.0
        %v2174 = vmul.f32 %v2168, 0.0
        %v2175 = vmul.f32 %v2169, 0.0
        %2182 = vrot.lane.b32.xlu0 %v2170, 127
        %v2183 = vpop.permute.xlu0 %2182
        %2184 = vrot.lane.b32.xlu0 %v2171, 127
        %v2185 = vpop.permute.xlu0 %2184
        %2186 = vrot.lane.b32.xlu0 %v2172, 127
        %v2187 = vpop.permute.xlu0 %2186
        %2188 = vrot.lane.b32.xlu0 %v2173, 127
        %v2189 = vpop.permute.xlu0 %2188
        %2190 = vrot.lane.b32.xlu0 %v2174, 127
        %v2191 = vpop.permute.xlu0 %2190
        %2192 = vrot.lane.b32.xlu0 %v2175, 127
        %v2193 = vpop.permute.xlu0 %2192
        %v2200 = vadd.f32 %v2170, %v2183
        %v2201 = vadd.f32 %v2171, %v2185
        %v2202 = vadd.f32 %v2172, %v2187
        %v2203 = vadd.f32 %v2173, %v2189
        %v2204 = vadd.f32 %v2174, %v2191
        %v2205 = vadd.f32 %v2175, %v2193
        %2206 = vrot.lane.b32.xlu0 %v2170, 126
        %v2207 = vpop.permute.xlu0 %2206
        %2208 = vrot.lane.b32.xlu0 %v2171, 126
        %v2209 = vpop.permute.xlu0 %2208
        %2210 = vrot.lane.b32.xlu0 %v2172, 126
        %v2211 = vpop.permute.xlu0 %2210
        %2212 = vrot.lane.b32.xlu0 %v2173, 126
        %v2213 = vpop.permute.xlu0 %2212
        %2214 = vrot.lane.b32.xlu0 %v2174, 126
        %v2215 = vpop.permute.xlu0 %2214
        %2216 = vrot.lane.b32.xlu0 %v2175, 126
        %v2217 = vpop.permute.xlu0 %2216
        %v2224 = vadd.f32 %v2200, %v2207
        %v2225 = vadd.f32 %v2201, %v2209
        %v2226 = vadd.f32 %v2202, %v2211
        %v2227 = vadd.f32 %v2203, %v2213
        %v2228 = vadd.f32 %v2204, %v2215
        %v2229 = vadd.f32 %v2205, %v2217
        %v2230 = vmul.f32 %v2164, 4.4611344e-05
        %v2231 = vmul.f32 %v2165, 4.4611344e-05
        %v2232 = vmul.f32 %v2166, 4.4611344e-05
        %v2233 = vmul.f32 %v2167, 4.4611344e-05
        %v2234 = vmul.f32 %v2168, 4.4611344e-05
        %v2235 = vmul.f32 %v2169, 4.4611344e-05
        %2242 = vrot.lane.b32.xlu0 %v2230, 125
        %v2243 = vpop.permute.xlu0 %2242
        %2244 = vrot.lane.b32.xlu0 %v2231, 125
        %v2245 = vpop.permute.xlu0 %2244
        %2246 = vrot.lane.b32.xlu0 %v2232, 125
        %v2247 = vpop.permute.xlu0 %2246
        %2248 = vrot.lane.b32.xlu0 %v2233, 125
        %v2249 = vpop.permute.xlu0 %2248
        %2250 = vrot.lane.b32.xlu0 %v2234, 125
        %v2251 = vpop.permute.xlu0 %2250
        %2252 = vrot.lane.b32.xlu0 %v2235, 125
        %v2253 = vpop.permute.xlu0 %2252
        %v2260 = vadd.f32 %v2224, %v2243
        %v2261 = vadd.f32 %v2225, %v2245
        %v2262 = vadd.f32 %v2226, %v2247
        %v2263 = vadd.f32 %v2227, %v2249
        %v2264 = vadd.f32 %v2228, %v2251
        %v2265 = vadd.f32 %v2229, %v2253
        %v2266 = vmul.f32 %v2164, 0.00016009477
        %v2267 = vmul.f32 %v2165, 0.00016009477
        %v2268 = vmul.f32 %v2166, 0.00016009477
        %v2269 = vmul.f32 %v2167, 0.00016009477
        %v2270 = vmul.f32 %v2168, 0.00016009477
        %v2271 = vmul.f32 %v2169, 0.00016009477
        %2278 = vrot.lane.b32.xlu0 %v2266, 124
        %v2279 = vpop.permute.xlu0 %2278
        %2280 = vrot.lane.b32.xlu0 %v2267, 124
        %v2281 = vpop.permute.xlu0 %2280
        %2282 = vrot.lane.b32.xlu0 %v2268, 124
        %v2283 = vpop.permute.xlu0 %2282
        %2284 = vrot.lane.b32.xlu0 %v2269, 124
        %v2285 = vpop.permute.xlu0 %2284
        %2286 = vrot.lane.b32.xlu0 %v2270, 124
        %v2287 = vpop.permute.xlu0 %2286
        %2288 = vrot.lane.b32.xlu0 %v2271, 124
        %v2289 = vpop.permute.xlu0 %2288
        %v2296 = vadd.f32 %v2260, %v2279
        %v2297 = vadd.f32 %v2261, %v2281
        %v2298 = vadd.f32 %v2262, %v2283
        %v2299 = vadd.f32 %v2263, %v2285
        %v2300 = vadd.f32 %v2264, %v2287
        %v2301 = vadd.f32 %v2265, %v2289
        %v2302 = vmul.f32 %v2164, 0.0005141076
        %v2303 = vmul.f32 %v2165, 0.0005141076
        %v2304 = vmul.f32 %v2166, 0.0005141076
        %v2305 = vmul.f32 %v2167, 0.0005141076
        %v2306 = vmul.f32 %v2168, 0.0005141076
        %v2307 = vmul.f32 %v2169, 0.0005141076
        %2314 = vrot.lane.b32.xlu0 %v2302, 123
        %v2315 = vpop.permute.xlu0 %2314
        %2316 = vrot.lane.b32.xlu0 %v2303, 123
        %v2317 = vpop.permute.xlu0 %2316
        %2318 = vrot.lane.b32.xlu0 %v2304, 123
        %v2319 = vpop.permute.xlu0 %2318
        %2320 = vrot.lane.b32.xlu0 %v2305, 123
        %v2321 = vpop.permute.xlu0 %2320
        %2322 = vrot.lane.b32.xlu0 %v2306, 123
        %v2323 = vpop.permute.xlu0 %2322
        %2324 = vrot.lane.b32.xlu0 %v2307, 123
        %v2325 = vpop.permute.xlu0 %2324
        %v2332 = vadd.f32 %v2296, %v2315
        %v2333 = vadd.f32 %v2297, %v2317
        %v2334 = vadd.f32 %v2298, %v2319
        %v2335 = vadd.f32 %v2299, %v2321
        %v2336 = vadd.f32 %v2300, %v2323
        %v2337 = vadd.f32 %v2301, %v2325
        %v2338 = vmul.f32 %v2164, 0.0014773248
        %v2339 = vmul.f32 %v2165, 0.0014773248
        %v2340 = vmul.f32 %v2166, 0.0014773248
        %v2341 = vmul.f32 %v2167, 0.0014773248
        %v2342 = vmul.f32 %v2168, 0.0014773248
        %v2343 = vmul.f32 %v2169, 0.0014773248
        %2350 = vrot.lane.b32.xlu0 %v2338, 122
        %v2351 = vpop.permute.xlu0 %2350
        %2352 = vrot.lane.b32.xlu0 %v2339, 122
        %v2353 = vpop.permute.xlu0 %2352
        %2354 = vrot.lane.b32.xlu0 %v2340, 122
        %v2355 = vpop.permute.xlu0 %2354
        %2356 = vrot.lane.b32.xlu0 %v2341, 122
        %v2357 = vpop.permute.xlu0 %2356
        %2358 = vrot.lane.b32.xlu0 %v2342, 122
        %v2359 = vpop.permute.xlu0 %2358
        %2360 = vrot.lane.b32.xlu0 %v2343, 122
        %v2361 = vpop.permute.xlu0 %2360
        %v2368 = vadd.f32 %v2332, %v2351
        %v2369 = vadd.f32 %v2333, %v2353
        %v2370 = vadd.f32 %v2334, %v2355
        %v2371 = vadd.f32 %v2335, %v2357
        %v2372 = vadd.f32 %v2336, %v2359
        %v2373 = vadd.f32 %v2337, %v2361
        %v2374 = vmul.f32 %v2164, 0.00379877
        %v2375 = vmul.f32 %v2165, 0.00379877
        %v2376 = vmul.f32 %v2166, 0.00379877
        %v2377 = vmul.f32 %v2167, 0.00379877
        %v2378 = vmul.f32 %v2168, 0.00379877
        %v2379 = vmul.f32 %v2169, 0.00379877
        %2386 = vrot.lane.b32.xlu0 %v2374, 121
        %v2387 = vpop.permute.xlu0 %2386
        %2388 = vrot.lane.b32.xlu0 %v2375, 121
        %v2389 = vpop.permute.xlu0 %2388
        %2390 = vrot.lane.b32.xlu0 %v2376, 121
        %v2391 = vpop.permute.xlu0 %2390
        %2392 = vrot.lane.b32.xlu0 %v2377, 121
        %v2393 = vpop.permute.xlu0 %2392
        %2394 = vrot.lane.b32.xlu0 %v2378, 121
        %v2395 = vpop.permute.xlu0 %2394
        %2396 = vrot.lane.b32.xlu0 %v2379, 121
        %v2397 = vpop.permute.xlu0 %2396
        %v2404 = vadd.f32 %v2368, %v2387
        %v2405 = vadd.f32 %v2369, %v2389
        %v2406 = vadd.f32 %v2370, %v2391
        %v2407 = vadd.f32 %v2371, %v2393
        %v2408 = vadd.f32 %v2372, %v2395
        %v2409 = vadd.f32 %v2373, %v2397
        %v2410 = vmul.f32 %v2164, 0.008740878
        %v2411 = vmul.f32 %v2165, 0.008740878
        %v2412 = vmul.f32 %v2166, 0.008740878
        %v2413 = vmul.f32 %v2167, 0.008740878
        %v2414 = vmul.f32 %v2168, 0.008740878
        %v2415 = vmul.f32 %v2169, 0.008740878
        %2422 = vrot.lane.b32.xlu0 %v2410, 120
        %v2423 = vpop.permute.xlu0 %2422
        %2424 = vrot.lane.b32.xlu0 %v2411, 120
        %v2425 = vpop.permute.xlu0 %2424
        %2426 = vrot.lane.b32.xlu0 %v2412, 120
        %v2427 = vpop.permute.xlu0 %2426
        %2428 = vrot.lane.b32.xlu0 %v2413, 120
        %v2429 = vpop.permute.xlu0 %2428
        %2430 = vrot.lane.b32.xlu0 %v2414, 120
        %v2431 = vpop.permute.xlu0 %2430
        %2432 = vrot.lane.b32.xlu0 %v2415, 120
        %v2433 = vpop.permute.xlu0 %2432
        %v2440 = vadd.f32 %v2404, %v2423
        %v2441 = vadd.f32 %v2405, %v2425
        %v2442 = vadd.f32 %v2406, %v2427
        %v2443 = vadd.f32 %v2407, %v2429
        %v2444 = vadd.f32 %v2408, %v2431
        %v2445 = vadd.f32 %v2409, %v2433
        %v2446 = vmul.f32 %v2164, 0.0179975
        %v2447 = vmul.f32 %v2165, 0.0179975
        %v2448 = vmul.f32 %v2166, 0.0179975
        %v2449 = vmul.f32 %v2167, 0.0179975
        %v2450 = vmul.f32 %v2168, 0.0179975
        %v2451 = vmul.f32 %v2169, 0.0179975
        %2458 = vrot.lane.b32.xlu0 %v2446, 119
        %v2459 = vpop.permute.xlu0 %2458
        %2460 = vrot.lane.b32.xlu0 %v2447, 119
        %v2461 = vpop.permute.xlu0 %2460
        %2462 = vrot.lane.b32.xlu0 %v2448, 119
        %v2463 = vpop.permute.xlu0 %2462
        %2464 = vrot.lane.b32.xlu0 %v2449, 119
        %v2465 = vpop.permute.xlu0 %2464
        %2466 = vrot.lane.b32.xlu0 %v2450, 119
        %v2467 = vpop.permute.xlu0 %2466
        %2468 = vrot.lane.b32.xlu0 %v2451, 119
        %v2469 = vpop.permute.xlu0 %2468
        %v2476 = vadd.f32 %v2440, %v2459
        %v2477 = vadd.f32 %v2441, %v2461
        %v2478 = vadd.f32 %v2442, %v2463
        %v2479 = vadd.f32 %v2443, %v2465
        %v2480 = vadd.f32 %v2444, %v2467
        %v2481 = vadd.f32 %v2445, %v2469
        %v2482 = vmul.f32 %v2164, 0.03315999
        %v2483 = vmul.f32 %v2165, 0.03315999
        %v2484 = vmul.f32 %v2166, 0.03315999
        %v2485 = vmul.f32 %v2167, 0.03315999
        %v2486 = vmul.f32 %v2168, 0.03315999
        %v2487 = vmul.f32 %v2169, 0.03315999
        %2494 = vrot.lane.b32.xlu0 %v2482, 118
        %v2495 = vpop.permute.xlu0 %2494
        %2496 = vrot.lane.b32.xlu0 %v2483, 118
        %v2497 = vpop.permute.xlu0 %2496
        %2498 = vrot.lane.b32.xlu0 %v2484, 118
        %v2499 = vpop.permute.xlu0 %2498
        %2500 = vrot.lane.b32.xlu0 %v2485, 118
        %v2501 = vpop.permute.xlu0 %2500
        %2502 = vrot.lane.b32.xlu0 %v2486, 118
        %v2503 = vpop.permute.xlu0 %2502
        %2504 = vrot.lane.b32.xlu0 %v2487, 118
        %v2505 = vpop.permute.xlu0 %2504
        %v2512 = vadd.f32 %v2476, %v2495
        %v2513 = vadd.f32 %v2477, %v2497
        %v2514 = vadd.f32 %v2478, %v2499
        %v2515 = vadd.f32 %v2479, %v2501
        %v2516 = vadd.f32 %v2480, %v2503
        %v2517 = vadd.f32 %v2481, %v2505
        %v2518 = vmul.f32 %v2164, 0.054671578
        %v2519 = vmul.f32 %v2165, 0.054671578
        %v2520 = vmul.f32 %v2166, 0.054671578
        %v2521 = vmul.f32 %v2167, 0.054671578
        %v2522 = vmul.f32 %v2168, 0.054671578
        %v2523 = vmul.f32 %v2169, 0.054671578
        %2530 = vrot.lane.b32.xlu0 %v2518, 117
        %v2531 = vpop.permute.xlu0 %2530
        %2532 = vrot.lane.b32.xlu0 %v2519, 117
        %v2533 = vpop.permute.xlu0 %2532
        %2534 = vrot.lane.b32.xlu0 %v2520, 117
        %v2535 = vpop.permute.xlu0 %2534
        %2536 = vrot.lane.b32.xlu0 %v2521, 117
        %v2537 = vpop.permute.xlu0 %2536
        %2538 = vrot.lane.b32.xlu0 %v2522, 117
        %v2539 = vpop.permute.xlu0 %2538
        %2540 = vrot.lane.b32.xlu0 %v2523, 117
        %v2541 = vpop.permute.xlu0 %2540
        %v2548 = vadd.f32 %v2512, %v2531
        %v2549 = vadd.f32 %v2513, %v2533
        %v2550 = vadd.f32 %v2514, %v2535
        %v2551 = vadd.f32 %v2515, %v2537
        %v2552 = vadd.f32 %v2516, %v2539
        %v2553 = vadd.f32 %v2517, %v2541
        %v2554 = vmul.f32 %v2164, 0.0806592
        %v2555 = vmul.f32 %v2165, 0.0806592
        %v2556 = vmul.f32 %v2166, 0.0806592
        %v2557 = vmul.f32 %v2167, 0.0806592
        %v2558 = vmul.f32 %v2168, 0.0806592
        %v2559 = vmul.f32 %v2169, 0.0806592
        %2566 = vrot.lane.b32.xlu0 %v2554, 116
        %v2567 = vpop.permute.xlu0 %2566
        %2568 = vrot.lane.b32.xlu0 %v2555, 116
        %v2569 = vpop.permute.xlu0 %2568
        %2570 = vrot.lane.b32.xlu0 %v2556, 116
        %v2571 = vpop.permute.xlu0 %2570
        %2572 = vrot.lane.b32.xlu0 %v2557, 116
        %v2573 = vpop.permute.xlu0 %2572
        %2574 = vrot.lane.b32.xlu0 %v2558, 116
        %v2575 = vpop.permute.xlu0 %2574
        %2576 = vrot.lane.b32.xlu0 %v2559, 116
        %v2577 = vpop.permute.xlu0 %2576
        %v2584 = vadd.f32 %v2548, %v2567
        %v2585 = vadd.f32 %v2549, %v2569
        %v2586 = vadd.f32 %v2550, %v2571
        %v2587 = vadd.f32 %v2551, %v2573
        %v2588 = vadd.f32 %v2552, %v2575
        %v2589 = vadd.f32 %v2553, %v2577
        %v2590 = vmul.f32 %v2164, 0.106485695
        %v2591 = vmul.f32 %v2165, 0.106485695
        %v2592 = vmul.f32 %v2166, 0.106485695
        %v2593 = vmul.f32 %v2167, 0.106485695
        %v2594 = vmul.f32 %v2168, 0.106485695
        %v2595 = vmul.f32 %v2169, 0.106485695
        %2602 = vrot.lane.b32.xlu0 %v2590, 115
        %v2603 = vpop.permute.xlu0 %2602
        %2604 = vrot.lane.b32.xlu0 %v2591, 115
        %v2605 = vpop.permute.xlu0 %2604
        %2606 = vrot.lane.b32.xlu0 %v2592, 115
        %v2607 = vpop.permute.xlu0 %2606
        %2608 = vrot.lane.b32.xlu0 %v2593, 115
        %v2609 = vpop.permute.xlu0 %2608
        %2610 = vrot.lane.b32.xlu0 %v2594, 115
        %v2611 = vpop.permute.xlu0 %2610
        %2612 = vrot.lane.b32.xlu0 %v2595, 115
        %v2613 = vpop.permute.xlu0 %2612
        %v2620 = vadd.f32 %v2584, %v2603
        %v2621 = vadd.f32 %v2585, %v2605
        %v2622 = vadd.f32 %v2586, %v2607
        %v2623 = vadd.f32 %v2587, %v2609
        %v2624 = vadd.f32 %v2588, %v2611
        %v2625 = vadd.f32 %v2589, %v2613
        %v2626 = vmul.f32 %v2164, 0.12579799
        %v2627 = vmul.f32 %v2165, 0.12579799
        %v2628 = vmul.f32 %v2166, 0.12579799
        %v2629 = vmul.f32 %v2167, 0.12579799
        %v2630 = vmul.f32 %v2168, 0.12579799
        %v2631 = vmul.f32 %v2169, 0.12579799
        %2638 = vrot.lane.b32.xlu0 %v2626, 114
        %v2639 = vpop.permute.xlu0 %2638
        %2640 = vrot.lane.b32.xlu0 %v2627, 114
        %v2641 = vpop.permute.xlu0 %2640
        %2642 = vrot.lane.b32.xlu0 %v2628, 114
        %v2643 = vpop.permute.xlu0 %2642
        %2644 = vrot.lane.b32.xlu0 %v2629, 114
        %v2645 = vpop.permute.xlu0 %2644
        %2646 = vrot.lane.b32.xlu0 %v2630, 114
        %v2647 = vpop.permute.xlu0 %2646
        %2648 = vrot.lane.b32.xlu0 %v2631, 114
        %v2649 = vpop.permute.xlu0 %2648
        %v2656 = vadd.f32 %v2620, %v2639
        %v2657 = vadd.f32 %v2621, %v2641
        %v2658 = vadd.f32 %v2622, %v2643
        %v2659 = vadd.f32 %v2623, %v2645
        %v2660 = vadd.f32 %v2624, %v2647
        %v2661 = vadd.f32 %v2625, %v2649
        %v2662 = vmul.f32 %v2164, 0.13298453
        %v2663 = vmul.f32 %v2165, 0.13298453
        %v2664 = vmul.f32 %v2166, 0.13298453
        %v2665 = vmul.f32 %v2167, 0.13298453
        %v2666 = vmul.f32 %v2168, 0.13298453
        %v2667 = vmul.f32 %v2169, 0.13298453
        %2674 = vrot.lane.b32.xlu0 %v2662, 113
        %v2675 = vpop.permute.xlu0 %2674
        %2676 = vrot.lane.b32.xlu0 %v2663, 113
        %v2677 = vpop.permute.xlu0 %2676
        %2678 = vrot.lane.b32.xlu0 %v2664, 113
        %v2679 = vpop.permute.xlu0 %2678
        %2680 = vrot.lane.b32.xlu0 %v2665, 113
        %v2681 = vpop.permute.xlu0 %2680
        %2682 = vrot.lane.b32.xlu0 %v2666, 113
        %v2683 = vpop.permute.xlu0 %2682
        %2684 = vrot.lane.b32.xlu0 %v2667, 113
        %v2685 = vpop.permute.xlu0 %2684
        %v2692 = vadd.f32 %v2656, %v2675
        %v2693 = vadd.f32 %v2657, %v2677
        %v2694 = vadd.f32 %v2658, %v2679
        %v2695 = vadd.f32 %v2659, %v2681
        %v2696 = vadd.f32 %v2660, %v2683
        %v2697 = vadd.f32 %v2661, %v2685
        %2698 = vrot.lane.b32.xlu0 %v2626, 112
        %v2699 = vpop.permute.xlu0 %2698
        %2700 = vrot.lane.b32.xlu0 %v2627, 112
        %v2701 = vpop.permute.xlu0 %2700
        %2702 = vrot.lane.b32.xlu0 %v2628, 112
        %v2703 = vpop.permute.xlu0 %2702
        %2704 = vrot.lane.b32.xlu0 %v2629, 112
        %v2705 = vpop.permute.xlu0 %2704
        %2706 = vrot.lane.b32.xlu0 %v2630, 112
        %v2707 = vpop.permute.xlu0 %2706
        %2708 = vrot.lane.b32.xlu0 %v2631, 112
        %v2709 = vpop.permute.xlu0 %2708
        %v2716 = vadd.f32 %v2692, %v2699
        %v2717 = vadd.f32 %v2693, %v2701
        %v2718 = vadd.f32 %v2694, %v2703
        %v2719 = vadd.f32 %v2695, %v2705
        %v2720 = vadd.f32 %v2696, %v2707
        %v2721 = vadd.f32 %v2697, %v2709
        %2722 = vrot.lane.b32.xlu0 %v2590, 111
        %v2723 = vpop.permute.xlu0 %2722
        %2724 = vrot.lane.b32.xlu0 %v2591, 111
        %v2725 = vpop.permute.xlu0 %2724
        %2726 = vrot.lane.b32.xlu0 %v2592, 111
        %v2727 = vpop.permute.xlu0 %2726
        %2728 = vrot.lane.b32.xlu0 %v2593, 111
        %v2729 = vpop.permute.xlu0 %2728
        %2730 = vrot.lane.b32.xlu0 %v2594, 111
        %v2731 = vpop.permute.xlu0 %2730
        %2732 = vrot.lane.b32.xlu0 %v2595, 111
        %v2733 = vpop.permute.xlu0 %2732
        %v2740 = vadd.f32 %v2716, %v2723
        %v2741 = vadd.f32 %v2717, %v2725
        %v2742 = vadd.f32 %v2718, %v2727
        %v2743 = vadd.f32 %v2719, %v2729
        %v2744 = vadd.f32 %v2720, %v2731
        %v2745 = vadd.f32 %v2721, %v2733
        %2746 = vrot.lane.b32.xlu0 %v2554, 110
        %v2747 = vpop.permute.xlu0 %2746
        %2748 = vrot.lane.b32.xlu0 %v2555, 110
        %v2749 = vpop.permute.xlu0 %2748
        %2750 = vrot.lane.b32.xlu0 %v2556, 110
        %v2751 = vpop.permute.xlu0 %2750
        %2752 = vrot.lane.b32.xlu0 %v2557, 110
        %v2753 = vpop.permute.xlu0 %2752
        %2754 = vrot.lane.b32.xlu0 %v2558, 110
        %v2755 = vpop.permute.xlu0 %2754
        %2756 = vrot.lane.b32.xlu0 %v2559, 110
        %v2757 = vpop.permute.xlu0 %2756
        %v2764 = vadd.f32 %v2740, %v2747
        %v2765 = vadd.f32 %v2741, %v2749
        %v2766 = vadd.f32 %v2742, %v2751
        %v2767 = vadd.f32 %v2743, %v2753
        %v2768 = vadd.f32 %v2744, %v2755
        %v2769 = vadd.f32 %v2745, %v2757
        %2770 = vrot.lane.b32.xlu0 %v2518, 109
        %v2771 = vpop.permute.xlu0 %2770
        %2772 = vrot.lane.b32.xlu0 %v2519, 109
        %v2773 = vpop.permute.xlu0 %2772
        %2774 = vrot.lane.b32.xlu0 %v2520, 109
        %v2775 = vpop.permute.xlu0 %2774
        %2776 = vrot.lane.b32.xlu0 %v2521, 109
        %v2777 = vpop.permute.xlu0 %2776
        %2778 = vrot.lane.b32.xlu0 %v2522, 109
        %v2779 = vpop.permute.xlu0 %2778
        %2780 = vrot.lane.b32.xlu0 %v2523, 109
        %v2781 = vpop.permute.xlu0 %2780
        %v2788 = vadd.f32 %v2764, %v2771
        %v2789 = vadd.f32 %v2765, %v2773
        %v2790 = vadd.f32 %v2766, %v2775
        %v2791 = vadd.f32 %v2767, %v2777
        %v2792 = vadd.f32 %v2768, %v2779
        %v2793 = vadd.f32 %v2769, %v2781
        %2794 = vrot.lane.b32.xlu0 %v2482, 108
        %v2795 = vpop.permute.xlu0 %2794
        %2796 = vrot.lane.b32.xlu0 %v2483, 108
        %v2797 = vpop.permute.xlu0 %2796
        %2798 = vrot.lane.b32.xlu0 %v2484, 108
        %v2799 = vpop.permute.xlu0 %2798
        %2800 = vrot.lane.b32.xlu0 %v2485, 108
        %v2801 = vpop.permute.xlu0 %2800
        %2802 = vrot.lane.b32.xlu0 %v2486, 108
        %v2803 = vpop.permute.xlu0 %2802
        %2804 = vrot.lane.b32.xlu0 %v2487, 108
        %v2805 = vpop.permute.xlu0 %2804
        %v2812 = vadd.f32 %v2788, %v2795
        %v2813 = vadd.f32 %v2789, %v2797
        %v2814 = vadd.f32 %v2790, %v2799
        %v2815 = vadd.f32 %v2791, %v2801
        %v2816 = vadd.f32 %v2792, %v2803
        %v2817 = vadd.f32 %v2793, %v2805
        %2818 = vrot.lane.b32.xlu0 %v2446, 107
        %v2819 = vpop.permute.xlu0 %2818
        %2820 = vrot.lane.b32.xlu0 %v2447, 107
        %v2821 = vpop.permute.xlu0 %2820
        %2822 = vrot.lane.b32.xlu0 %v2448, 107
        %v2823 = vpop.permute.xlu0 %2822
        %2824 = vrot.lane.b32.xlu0 %v2449, 107
        %v2825 = vpop.permute.xlu0 %2824
        %2826 = vrot.lane.b32.xlu0 %v2450, 107
        %v2827 = vpop.permute.xlu0 %2826
        %2828 = vrot.lane.b32.xlu0 %v2451, 107
        %v2829 = vpop.permute.xlu0 %2828
        %v2836 = vadd.f32 %v2812, %v2819
        %v2837 = vadd.f32 %v2813, %v2821
        %v2838 = vadd.f32 %v2814, %v2823
        %v2839 = vadd.f32 %v2815, %v2825
        %v2840 = vadd.f32 %v2816, %v2827
        %v2841 = vadd.f32 %v2817, %v2829
        %2842 = vrot.lane.b32.xlu0 %v2410, 106
        %v2843 = vpop.permute.xlu0 %2842
        %2844 = vrot.lane.b32.xlu0 %v2411, 106
        %v2845 = vpop.permute.xlu0 %2844
        %2846 = vrot.lane.b32.xlu0 %v2412, 106
        %v2847 = vpop.permute.xlu0 %2846
        %2848 = vrot.lane.b32.xlu0 %v2413, 106
        %v2849 = vpop.permute.xlu0 %2848
        %2850 = vrot.lane.b32.xlu0 %v2414, 106
        %v2851 = vpop.permute.xlu0 %2850
        %2852 = vrot.lane.b32.xlu0 %v2415, 106
        %v2853 = vpop.permute.xlu0 %2852
        %v2860 = vadd.f32 %v2836, %v2843
        %v2861 = vadd.f32 %v2837, %v2845
        %v2862 = vadd.f32 %v2838, %v2847
        %v2863 = vadd.f32 %v2839, %v2849
        %v2864 = vadd.f32 %v2840, %v2851
        %v2865 = vadd.f32 %v2841, %v2853
        %2866 = vrot.lane.b32.xlu0 %v2374, 105
        %v2867 = vpop.permute.xlu0 %2866
        %2868 = vrot.lane.b32.xlu0 %v2375, 105
        %v2869 = vpop.permute.xlu0 %2868
        %2870 = vrot.lane.b32.xlu0 %v2376, 105
        %v2871 = vpop.permute.xlu0 %2870
        %2872 = vrot.lane.b32.xlu0 %v2377, 105
        %v2873 = vpop.permute.xlu0 %2872
        %2874 = vrot.lane.b32.xlu0 %v2378, 105
        %v2875 = vpop.permute.xlu0 %2874
        %2876 = vrot.lane.b32.xlu0 %v2379, 105
        %v2877 = vpop.permute.xlu0 %2876
        %v2884 = vadd.f32 %v2860, %v2867
        %v2885 = vadd.f32 %v2861, %v2869
        %v2886 = vadd.f32 %v2862, %v2871
        %v2887 = vadd.f32 %v2863, %v2873
        %v2888 = vadd.f32 %v2864, %v2875
        %v2889 = vadd.f32 %v2865, %v2877
        %2890 = vrot.lane.b32.xlu0 %v2338, 104
        %v2891 = vpop.permute.xlu0 %2890
        %2892 = vrot.lane.b32.xlu0 %v2339, 104
        %v2893 = vpop.permute.xlu0 %2892
        %2894 = vrot.lane.b32.xlu0 %v2340, 104
        %v2895 = vpop.permute.xlu0 %2894
        %2896 = vrot.lane.b32.xlu0 %v2341, 104
        %v2897 = vpop.permute.xlu0 %2896
        %2898 = vrot.lane.b32.xlu0 %v2342, 104
        %v2899 = vpop.permute.xlu0 %2898
        %2900 = vrot.lane.b32.xlu0 %v2343, 104
        %v2901 = vpop.permute.xlu0 %2900
        %v2908 = vadd.f32 %v2884, %v2891
        %v2909 = vadd.f32 %v2885, %v2893
        %v2910 = vadd.f32 %v2886, %v2895
        %v2911 = vadd.f32 %v2887, %v2897
        %v2912 = vadd.f32 %v2888, %v2899
        %v2913 = vadd.f32 %v2889, %v2901
        %2914 = vrot.lane.b32.xlu0 %v2302, 103
        %v2915 = vpop.permute.xlu0 %2914
        %2916 = vrot.lane.b32.xlu0 %v2303, 103
        %v2917 = vpop.permute.xlu0 %2916
        %2918 = vrot.lane.b32.xlu0 %v2304, 103
        %v2919 = vpop.permute.xlu0 %2918
        %2920 = vrot.lane.b32.xlu0 %v2305, 103
        %v2921 = vpop.permute.xlu0 %2920
        %2922 = vrot.lane.b32.xlu0 %v2306, 103
        %v2923 = vpop.permute.xlu0 %2922
        %2924 = vrot.lane.b32.xlu0 %v2307, 103
        %v2925 = vpop.permute.xlu0 %2924
        %v2932 = vadd.f32 %v2908, %v2915
        %v2933 = vadd.f32 %v2909, %v2917
        %v2934 = vadd.f32 %v2910, %v2919
        %v2935 = vadd.f32 %v2911, %v2921
        %v2936 = vadd.f32 %v2912, %v2923
        %v2937 = vadd.f32 %v2913, %v2925
        %2938 = vrot.lane.b32.xlu0 %v2266, 102
        %v2939 = vpop.permute.xlu0 %2938
        %2940 = vrot.lane.b32.xlu0 %v2267, 102
        %v2941 = vpop.permute.xlu0 %2940
        %2942 = vrot.lane.b32.xlu0 %v2268, 102
        %v2943 = vpop.permute.xlu0 %2942
        %2944 = vrot.lane.b32.xlu0 %v2269, 102
        %v2945 = vpop.permute.xlu0 %2944
        %2946 = vrot.lane.b32.xlu0 %v2270, 102
        %v2947 = vpop.permute.xlu0 %2946
        %2948 = vrot.lane.b32.xlu0 %v2271, 102
        %v2949 = vpop.permute.xlu0 %2948
        %v2956 = vadd.f32 %v2932, %v2939
        %v2957 = vadd.f32 %v2933, %v2941
        %v2958 = vadd.f32 %v2934, %v2943
        %v2959 = vadd.f32 %v2935, %v2945
        %v2960 = vadd.f32 %v2936, %v2947
        %v2961 = vadd.f32 %v2937, %v2949
        %2962 = vrot.lane.b32.xlu0 %v2230, 101
        %v2963 = vpop.permute.xlu0 %2962
        %2964 = vrot.lane.b32.xlu0 %v2231, 101
        %v2965 = vpop.permute.xlu0 %2964
        %2966 = vrot.lane.b32.xlu0 %v2232, 101
        %v2967 = vpop.permute.xlu0 %2966
        %2968 = vrot.lane.b32.xlu0 %v2233, 101
        %v2969 = vpop.permute.xlu0 %2968
        %2970 = vrot.lane.b32.xlu0 %v2234, 101
        %v2971 = vpop.permute.xlu0 %2970
        %2972 = vrot.lane.b32.xlu0 %v2235, 101
        %v2973 = vpop.permute.xlu0 %2972
        %v2980 = vadd.f32 %v2956, %v2963
        %v2981 = vadd.f32 %v2957, %v2965
        %v2982 = vadd.f32 %v2958, %v2967
        %v2983 = vadd.f32 %v2959, %v2969
        %v2984 = vadd.f32 %v2960, %v2971
        %v2985 = vadd.f32 %v2961, %v2973
        %2986 = vrot.lane.b32.xlu0 %v2170, 100
        %v2987 = vpop.permute.xlu0 %2986
        %2988 = vrot.lane.b32.xlu0 %v2171, 100
        %v2989 = vpop.permute.xlu0 %2988
        %2990 = vrot.lane.b32.xlu0 %v2172, 100
        %v2991 = vpop.permute.xlu0 %2990
        %2992 = vrot.lane.b32.xlu0 %v2173, 100
        %v2993 = vpop.permute.xlu0 %2992
        %2994 = vrot.lane.b32.xlu0 %v2174, 100
        %v2995 = vpop.permute.xlu0 %2994
        %2996 = vrot.lane.b32.xlu0 %v2175, 100
        %v2997 = vpop.permute.xlu0 %2996
        %v3004 = vadd.f32 %v2980, %v2987
        %v3005 = vadd.f32 %v2981, %v2989
        %v3006 = vadd.f32 %v2982, %v2991
        %v3007 = vadd.f32 %v2983, %v2993
        %v3008 = vadd.f32 %v2984, %v2995
        %v3009 = vadd.f32 %v2985, %v2997
        %3010 = vrot.lane.b32.xlu0 %v2170, 99
        %v3011 = vpop.permute.xlu0 %3010
        %3012 = vrot.lane.b32.xlu0 %v2171, 99
        %v3013 = vpop.permute.xlu0 %3012
        %3014 = vrot.lane.b32.xlu0 %v2172, 99
        %v3015 = vpop.permute.xlu0 %3014
        %3016 = vrot.lane.b32.xlu0 %v2173, 99
        %v3017 = vpop.permute.xlu0 %3016
        %3018 = vrot.lane.b32.xlu0 %v2174, 99
        %v3019 = vpop.permute.xlu0 %3018
        %3020 = vrot.lane.b32.xlu0 %v2175, 99
        %v3021 = vpop.permute.xlu0 %3020
        %v3028 = vadd.f32 %v3004, %v3011
        %v3029 = vadd.f32 %v3005, %v3013
        %v3030 = vadd.f32 %v3006, %v3015
        %v3031 = vadd.f32 %v3007, %v3017
        %v3032 = vadd.f32 %v3008, %v3019
        %v3033 = vadd.f32 %v3009, %v3021
        %3034 = vrot.lane.b32.xlu0 %v2170, 98
        %v3035 = vpop.permute.xlu0 %3034
        %3036 = vrot.lane.b32.xlu0 %v2171, 98
        %v3037 = vpop.permute.xlu0 %3036
        %3038 = vrot.lane.b32.xlu0 %v2172, 98
        %v3039 = vpop.permute.xlu0 %3038
        %3040 = vrot.lane.b32.xlu0 %v2173, 98
        %v3041 = vpop.permute.xlu0 %3040
        %3042 = vrot.lane.b32.xlu0 %v2174, 98
        %v3043 = vpop.permute.xlu0 %3042
        %3044 = vrot.lane.b32.xlu0 %v2175, 98
        %v3045 = vpop.permute.xlu0 %3044
        %v3052 = vadd.f32 %v3028, %v3035
        %v3053 = vadd.f32 %v3029, %v3037
        %v3054 = vadd.f32 %v3030, %v3039
        %v3055 = vadd.f32 %v3031, %v3041
        %v3056 = vadd.f32 %v3032, %v3043
        %v3057 = vadd.f32 %v3033, %v3045
        %3058 = vst.msk [vmem:[%s137] sm:$0xff] %vm146, %v3052
        %3059 = vst.msk [vmem:[%s137 + $0x8] sm:$0xff] %vm146, %v3053
        %3060 = vst.msk [vmem:[%s137 + $0x10] sm:$0xff] %vm146, %v3054
        %3061 = vst.msk [vmem:[%s137 + $0x18] sm:$0xff] %vm146, %v3055
        %3062 = vst.msk [vmem:[%s137 + $0x20] sm:$0xff] %vm146, %v3056
        %3063 = vst.msk [vmem:[%s137 + $0x28] sm:$0xff] %vm146, %v3057
        %s3064 = sand.u32 %s52, 1
        %s3065 = scalar_lea.sflag [#allocation6], %s3064
        %s3066 = sand.u32 %s52, 1
        %s3067 = smul.addr %s3066, 48
        %s3068 = scalar_lea.vmem [#allocation7], %s3067
        // Predicated region
        $region29: #{tpu_custom_call.1} parent=23 // pred_check
          %p3069 = pneg %p62
        $region30: #{tpu_custom_call.1} parent=23 // pred_check_branch
          %3071 = sbr.rel (%p3069) target = $region32
        $region31: #{tpu_custom_call.1} parent=23 // pred_region
          %s3072 = smul.u32 3, %s18
          %3074 = vsyncadd %s3065, 0
          %s3075 = smul.addr %s3072, 2
          %s3076 = smul.addr %s3075, 8
          %s3077 = scalar_lea.hbm %s1, %s3076
          %s3078 = sshll.u32 %s3068, 4
          %s3079 = int_to_ptr.vmem [resolvable:$true] %s3078
          %s3080 = sshll.u32 %s3077, 4
          %s3081 = int_to_ptr.hbm [resolvable:$true] %s3080
          %3086 = dma.vmem_to_hbm [thread:$0]  %s3079, 768, %s3081, %s3065, 128, 128, 8
        $region32: #{tpu_custom_call.1} parent=23 // pred_fallthru
          _
      $region24: #{tpu_custom_call.1} parent=5 // pred_fallthru
        _
      %p3087 = scmp.le.s32.totalorder 2, %s13
      // Predicated region
      $region33: #{tpu_custom_call.1} parent=5 // pred_check
        %p3088 = pneg %p3087
      $region34: #{tpu_custom_call.1} parent=5 // pred_check_branch
        %3090 = sbr.rel (%p3088) target = $region36
      $region35: #{tpu_custom_call.1} parent=5 // pred_region
        %s3091 = ssub.s32 %s13, 2
        // Predicated region
        $region37: #{tpu_custom_call.1} parent=35 // pred_check
          %p3092 = pneg %p68
        $region38: #{tpu_custom_call.1} parent=35 // pred_check_branch
          %3094 = sbr.rel (%p3092) target = $region40
        $region39: #{tpu_custom_call.1} parent=35 // pred_region
          %s3095 = sand.u32 %s53, 1
          %s3096 = scalar_lea.sflag [#allocation6], %s3095
          %s3097 = sand.u32 %s53, 1
          %s3098 = smul.addr %s3097, 48
          %s3099 = scalar_lea.vmem [#allocation7], %s3098
          %3101 = dma.done %s3096, 768
        $region40: #{tpu_custom_call.1} parent=35 // pred_fallthru
          _
      $region36: #{tpu_custom_call.1} parent=5 // pred_fallthru
        _
    $region6: #{tpu_custom_call.1} parent=1 // loop_footer
      %s17 = sadd.s32 1, %s13
    $region7: #{tpu_custom_call.1} parent=1 // loop_footer_branch
      %12 = sbr.rel target = $region3
    $region8: #{tpu_custom_call.1} parent=1 // loop_exit
      _
    %3102 = vsyncpa [#allocation5], 1
    %s3103 = scalar_lea.sflag [#allocation5], 1
    %3104 = vsyncpa %s3103, 1
    %3105 = vsyncpa [#allocation6], 1
    %s3106 = scalar_lea.sflag [#allocation6], 1
    %3107 = vsyncpa %s3106, 1

</llo_original>
